<compile_context>
chip_gen: v6e
topology: v6e:2x2x1
jax: 0.10.0
libtpu: 0.0.40
codegen_flags: <defaults>
</compile_context>

<pallas_src>
import jax
import jax.numpy as jnp
from jax.experimental import pallas as pl
from jax.experimental.pallas import tpu as pltpu

_LANE = 128


def _upsample_kernel(x_ref, w_ref, b_ref, out_ref, xpad_ref):
    """One batch image per grid step.

    x_ref:    (1, H, W, C)      compute-dtype (bf16) input block
    w_ref:    (4, 4C, C)        fused per-parity weight table (compute dtype)
    b_ref:    (1, C)            f32 bias
    out_ref:  (1, H, 2, W, 2C)  f32; [0, h, py, w, px*C + c] = y[2h+py, 2w+px, c]
    xpad_ref: (H+2, W+16, C)    f32 VMEM scratch; padded image columns live at
                                [7, W+9) with the interior starting at col 8 so
                                every store below is tile-aligned.
    """
    _, H, W, C = x_ref.shape
    cdt = x_ref.dtype

    # ---- in-kernel zero padding (all stores tile-aligned) ------------------
    xpad_ref[:, 0:8, :] = jnp.zeros((H + 2, 8, C), jnp.float32)
    xpad_ref[:, W + 8:W + 16, :] = jnp.zeros((H + 2, 8, C), jnp.float32)
    xpad_ref[0:1, :, :] = jnp.zeros((1, W + 16, C), jnp.float32)
    xpad_ref[H + 1:H + 2, :, :] = jnp.zeros((1, W + 16, C), jnp.float32)
    xpad_ref[1:H + 1, 8:W + 8, :] = x_ref[0].astype(jnp.float32)

    bias = b_ref[...]  # (1, C) f32 -- loaded once, reused for all 4 parities

    for py in range(2):
        halves = []
        for px in range(2):
            p = py * 2 + px
            # im2col for this parity: 4 shifted windows concatenated on the
            # channel (lane) axis -> (H*W, 4C).
            wins = []
            for dy in range(2):
                for dx in range(2):
                    r0 = py + dy           # padded row offset
                    c0 = 7 + px + dx       # padded col offset (+7 scratch shift)
                    win = xpad_ref[r0:r0 + H, c0:c0 + W, :]        # (H, W, C) f32
                    wins.append(win.reshape(H * W, C).astype(cdt))
            xcat = jnp.concatenate(wins, axis=-1)                  # (H*W, 4C) bf16
            # One MXU matmul per parity: K = 4C, f32 accumulation.
            y = jnp.dot(xcat, w_ref[p],
                        preferred_element_type=jnp.float32)        # (H*W, C) f32
            halves.append(y + bias)
        # Lane-concat the two x-parities: last dim becomes 2C (>=256 lanes,
        # unmasked dense stores), already in (px, c) order, so the spatial
        # interleave in the wrapper is a free reshape.
        row = jnp.concatenate(halves, axis=-1).reshape(H, W, 2 * C)
        out_ref[0, :, py, :, :] = row.astype(out_ref.dtype)


def upsample(x_nchw, weight, bias, *, compute_dtype=jnp.bfloat16):
    """ConvTranspose2d(dim, dim, 4, stride=2, padding=1) forward.

    x_nchw: (B, C, H, W) float32
    weight: (C_in, C_out, 4, 4) float32  (PyTorch ConvTranspose2d layout)
    bias:   (C_out,) float32
    returns (B, C, 2H, 2W) float32
    """
    B, C, H, W = x_nchw.shape
    Cp = ((C + _LANE - 1) // _LANE) * _LANE   # lane-dense channel count
    pc = Cp - C

    # NHWC + low-precision operands (f32 accumulation happens in the kernel).
    x = jnp.transpose(x_nchw, (0, 2, 3, 1)).astype(compute_dtype)   # (B, H, W, C)
    w = weight
    b = bias
    if pc:
        x = jnp.pad(x, ((0, 0), (0, 0), (0, 0), (0, pc)))
        w = jnp.pad(w, ((0, pc), (0, pc), (0, 0), (0, 0)))
        b = jnp.pad(b, ((0, pc),))

    # Fused per-parity weights: for parity p = (py, px) stack the 4 taps
    # (dy, dx) along Cin so each parity is a single (H*W, 4C) x (4C, C) matmul.
    mats = []
    for py in range(2):
        for px in range(2):
            taps = []
            for dy in range(2):
                for dx in range(2):
                    ky = 3 - 2 * dy - py
                    kx = 3 - 2 * dx - px
                    taps.append(w[:, :, ky, kx])                 # (Cin, Cout)
            mats.append(jnp.concatenate(taps, axis=0))           # (4Cp, Cp)
    w_tab = jnp.stack(mats, axis=0).astype(compute_dtype)        # (4, 4Cp, Cp)
    b2 = b.reshape(1, Cp).astype(jnp.float32)

    out = pl.pallas_call(
        _upsample_kernel,
        out_shape=jax.ShapeDtypeStruct((B, H, 2, W, 2 * Cp), jnp.float32),
        grid=(B,),
        in_specs=[
            pl.BlockSpec((1, H, W, Cp), lambda bi: (bi, 0, 0, 0)),
            pl.BlockSpec((4, 4 * Cp, Cp), lambda bi: (0, 0, 0)),
            pl.BlockSpec((1, Cp), lambda bi: (0, 0)),
        ],
        out_specs=pl.BlockSpec((1, H, 2, W, 2 * Cp), lambda bi: (bi, 0, 0, 0, 0)),
        scratch_shapes=[pltpu.VMEM((H + 2, W + 16, Cp), jnp.float32)],
        compiler_params=pltpu.CompilerParams(
            dimension_semantics=("parallel",)),
    )(x, w_tab, b2)

    # out[b, h, py, w, px*Cp + c] -> y[b, 2h+py, 2w+px, c]: pure (free) reshape.
    y = out.reshape(B, 2 * H, 2 * W, Cp)
    if pc:
        y = y[..., :C]
    return jnp.transpose(y, (0, 3, 1, 2))                         # back to NCHW


def _ref_conv_transpose(x_nchw, weight, bias):
    """Pure-JAX reference for PyTorch ConvTranspose2d(k=4, s=2, p=1)."""
    w_f = jnp.flip(weight, axis=(2, 3))                 # flip spatially
    w_oi = jnp.transpose(w_f, (1, 0, 2, 3))             # (Cout, Cin, kH, kW)
    y = jax.lax.conv_general_dilated(
        x_nchw, w_oi,
        window_strides=(1, 1),
        padding=((2, 2), (2, 2)),
        lhs_dilation=(2, 2),
        dimension_numbers=("NCHW", "OIHW", "NCHW"),
        precision=jax.lax.Precision.HIGHEST)
    return y + bias[None, :, None, None]


def _run_case(key, B, dim, H, W):
    kx, kw, kb = jax.random.split(key, 3)
    x = jax.random.normal(kx, (B, dim, H, W), dtype=jnp.float32)

    # Deterministic PyTorch-style uniform init: weight (dim, dim, 4, 4), bias (dim,)
    fan = dim * 4 * 4
    bound = 1.0 / (fan ** 0.5)
    weight = jax.random.uniform(kw, (dim, dim, 4, 4), jnp.float32, -bound, bound)
    bias = jax.random.uniform(kb, (dim,), jnp.float32, -bound, bound)

    y = jax.block_until_ready(upsample(x, weight, bias))

    # Reference computed on the same bf16-rounded operands: bf16 x bf16 products
    # are exact in f32, so only the f32 accumulation order differs.
    xq = x.astype(jnp.bfloat16).astype(jnp.float32)
    wq = weight.astype(jnp.bfloat16).astype(jnp.float32)
    y_ref = jax.block_until_ready(_ref_conv_transpose(xq, wq, bias))

    assert y.shape == (B, dim, 2 * H, 2 * W), y.shape
    err = float(jnp.max(jnp.abs(y - y_ref)))
    assert jnp.allclose(y, y_ref, rtol=1e-4, atol=1e-4), err


if __name__ == "__main__":
    key = jax.random.PRNGKey(0)
    k1, k2 = jax.random.split(key)
    _run_case(k1, B=2, dim=128, H=16, W=16)   # lane-dense fast path (dim % 128 == 0)
    _run_case(k2, B=2, dim=8, H=8, W=8)       # channel-padding path (dim < 128)
    print("KERNEL_OK")
</pallas_src>

<mosaic_0001>
module attributes {stable_mosaic.version = 11 : i64} {
  func.func @_upsample_kernel(%arg0: i32, %arg1: memref<1x16x16x128xbf16, #tpu.memory_space<vmem>>, %arg2: memref<4x512x128xbf16, #tpu.memory_space<vmem>>, %arg3: memref<1x128xf32, #tpu.memory_space<vmem>>, %arg4: memref<1x16x2x16x256xf32, #tpu.memory_space<vmem>>, %arg5: memref<18x32x128xf32, #tpu.memory_space<vmem>>) attributes {dimension_semantics = [#tpu.dimension_semantics<parallel>], iteration_bounds = array<i64: 2>, scalar_prefetch = 0 : i64, scratch_operands = 1 : i64, tpu.core_type = #tpu.core_type<tc>, window_params = [{transform_indices = @transform_0, window_bounds = array<i64: 1, 16, 16, 128>}, {pipeline_mode = #tpu.pipeline_mode<synchronous>, transform_indices = @transform_1, window_bounds = array<i64: 4, 512, 128>}, {pipeline_mode = #tpu.pipeline_mode<synchronous>, transform_indices = @transform_2, window_bounds = array<i64: 1, 128>}, {transform_indices = @transform_3, window_bounds = array<i64: 1, 16, 2, 16, 256>}]} {
    %cst = arith.constant 0.000000e+00 : f32
    %0 = vector.broadcast %cst : f32 to vector<18x8x128xf32>
    %c0 = arith.constant 0 : index
    %c0_0 = arith.constant 0 : index
    %c0_1 = arith.constant 0 : index
    %1 = vector.load %arg5[%c0, %c0_0, %c0_1] : memref<18x32x128xf32, #tpu.memory_space<vmem>>, vector<18x8x128xf32>
    tpu.vector_store %arg5[%c0, %c0_0, %c0_1], %0 {strides = array<i32>} : memref<18x32x128xf32, #tpu.memory_space<vmem>>, vector<18x8x128xf32>,
    %cst_2 = arith.constant 0.000000e+00 : f32
    %2 = vector.broadcast %cst_2 : f32 to vector<18x8x128xf32>
    %c0_3 = arith.constant 0 : index
    %c24 = arith.constant 24 : index
    %c0_4 = arith.constant 0 : index
    %3 = vector.load %arg5[%c0_3, %c24, %c0_4] : memref<18x32x128xf32, #tpu.memory_space<vmem>>, vector<18x8x128xf32>
    tpu.vector_store %arg5[%c0_3, %c24, %c0_4], %2 {strides = array<i32>} : memref<18x32x128xf32, #tpu.memory_space<vmem>>, vector<18x8x128xf32>,
    %cst_5 = arith.constant 0.000000e+00 : f32
    %4 = vector.broadcast %cst_5 : f32 to vector<1x32x128xf32>
    %c0_6 = arith.constant 0 : index
    %c0_7 = arith.constant 0 : index
    %c0_8 = arith.constant 0 : index
    %5 = vector.load %arg5[%c0_6, %c0_7, %c0_8] : memref<18x32x128xf32, #tpu.memory_space<vmem>>, vector<1x32x128xf32>
    tpu.vector_store %arg5[%c0_6, %c0_7, %c0_8], %4 {strides = array<i32>} : memref<18x32x128xf32, #tpu.memory_space<vmem>>, vector<1x32x128xf32>,
    %cst_9 = arith.constant 0.000000e+00 : f32
    %6 = vector.broadcast %cst_9 : f32 to vector<1x32x128xf32>
    %c17 = arith.constant 17 : index
    %c0_10 = arith.constant 0 : index
    %c0_11 = arith.constant 0 : index
    %7 = vector.load %arg5[%c17, %c0_10, %c0_11] : memref<18x32x128xf32, #tpu.memory_space<vmem>>, vector<1x32x128xf32>
    tpu.vector_store %arg5[%c17, %c0_10, %c0_11], %6 {strides = array<i32>} : memref<18x32x128xf32, #tpu.memory_space<vmem>>, vector<1x32x128xf32>,
    %c0_12 = arith.constant 0 : index
    %c0_13 = arith.constant 0 : index
    %c0_14 = arith.constant 0 : index
    %c0_15 = arith.constant 0 : index
    %8 = vector.load %arg1[%c0_12, %c0_13, %c0_14, %c0_15] : memref<1x16x16x128xbf16, #tpu.memory_space<vmem>>, vector<1x16x16x128xbf16>
    %9 = vector.shape_cast %8 : vector<1x16x16x128xbf16> to vector<16x16x128xbf16>
    %10 = arith.extf %9 : vector<16x16x128xbf16> to vector<16x16x128xf32>
    %c1 = arith.constant 1 : index
    %c8 = arith.constant 8 : index
    %c0_16 = arith.constant 0 : index
    %11 = vector.load %arg5[%c1, %c8, %c0_16] : memref<18x32x128xf32, #tpu.memory_space<vmem>>, vector<16x16x128xf32>
    tpu.vector_store %arg5[%c1, %c8, %c0_16], %10 {strides = array<i32>} : memref<18x32x128xf32, #tpu.memory_space<vmem>>, vector<16x16x128xf32>,
    %c0_17 = arith.constant 0 : index
    %c0_18 = arith.constant 0 : index
    %12 = vector.load %arg3[%c0_17, %c0_18] : memref<1x128xf32, #tpu.memory_space<vmem>>, vector<1x128xf32>
    %c0_19 = arith.constant 0 : index
    %c7 = arith.constant 7 : index
    %c0_20 = arith.constant 0 : index
    %13 = vector.load %arg5[%c0_19, %c7, %c0_20] : memref<18x32x128xf32, #tpu.memory_space<vmem>>, vector<16x16x128xf32>
    %14 = vector.shape_cast %13 : vector<16x16x128xf32> to vector<256x128xf32>
    %15 = arith.truncf %14 : vector<256x128xf32> to vector<256x128xbf16>
    %c0_21 = arith.constant 0 : index
    %c8_22 = arith.constant 8 : index
    %c0_23 = arith.constant 0 : index
    %16 = vector.load %arg5[%c0_21, %c8_22, %c0_23] : memref<18x32x128xf32, #tpu.memory_space<vmem>>, vector<16x16x128xf32>
    %17 = vector.shape_cast %16 : vector<16x16x128xf32> to vector<256x128xf32>
    %18 = arith.truncf %17 : vector<256x128xf32> to vector<256x128xbf16>
    %c1_24 = arith.constant 1 : index
    %c7_25 = arith.constant 7 : index
    %c0_26 = arith.constant 0 : index
    %19 = vector.load %arg5[%c1_24, %c7_25, %c0_26] : memref<18x32x128xf32, #tpu.memory_space<vmem>>, vector<16x16x128xf32>
    %20 = vector.shape_cast %19 : vector<16x16x128xf32> to vector<256x128xf32>
    %21 = arith.truncf %20 : vector<256x128xf32> to vector<256x128xbf16>
    %c1_27 = arith.constant 1 : index
    %c8_28 = arith.constant 8 : index
    %c0_29 = arith.constant 0 : index
    %22 = vector.load %arg5[%c1_27, %c8_28, %c0_29] : memref<18x32x128xf32, #tpu.memory_space<vmem>>, vector<16x16x128xf32>
    %23 = vector.shape_cast %22 : vector<16x16x128xf32> to vector<256x128xf32>
    %24 = arith.truncf %23 : vector<256x128xf32> to vector<256x128xbf16>
    %25 = tpu.concatenate %15, %18, %21, %24 in 1 : vector<256x128xbf16>, vector<256x128xbf16>, vector<256x128xbf16>, vector<256x128xbf16> -> vector<256x512xbf16>
    %c0_30 = arith.constant 0 : index
    %c0_31 = arith.constant 0 : index
    %c0_32 = arith.constant 0 : index
    %26 = vector.load %arg2[%c0_30, %c0_31, %c0_32] : memref<4x512x128xbf16, #tpu.memory_space<vmem>>, vector<1x512x128xbf16>
    %27 = vector.shape_cast %26 : vector<1x512x128xbf16> to vector<512x128xbf16>
    %cst_33 = arith.constant dense<0.000000e+00> : vector<256x128xf32>
    %28 = tpu.matmul %25, %27, %cst_33 {dimension_numbers = #tpu.dot_dimension_numbers<[1], [0], [0], [1], [0, 0, 1, 1], [], []>} : vector<256x512xbf16>, vector<512x128xbf16>, vector<256x128xf32> -> vector<256x128xf32>
    %29 = vector.broadcast %12 : vector<1x128xf32> to vector<256x128xf32>
    %30 = arith.addf %28, %29 : vector<256x128xf32>
    %c0_34 = arith.constant 0 : index
    %c8_35 = arith.constant 8 : index
    %c0_36 = arith.constant 0 : index
    %31 = vector.load %arg5[%c0_34, %c8_35, %c0_36] : memref<18x32x128xf32, #tpu.memory_space<vmem>>, vector<16x16x128xf32>
    %32 = vector.shape_cast %31 : vector<16x16x128xf32> to vector<256x128xf32>
    %33 = arith.truncf %32 : vector<256x128xf32> to vector<256x128xbf16>
    %c0_37 = arith.constant 0 : index
    %c9 = arith.constant 9 : index
    %c0_38 = arith.constant 0 : index
    %34 = vector.load %arg5[%c0_37, %c9, %c0_38] : memref<18x32x128xf32, #tpu.memory_space<vmem>>, vector<16x16x128xf32>
    %35 = vector.shape_cast %34 : vector<16x16x128xf32> to vector<256x128xf32>
    %36 = arith.truncf %35 : vector<256x128xf32> to vector<256x128xbf16>
    %c1_39 = arith.constant 1 : index
    %c8_40 = arith.constant 8 : index
    %c0_41 = arith.constant 0 : index
    %37 = vector.load %arg5[%c1_39, %c8_40, %c0_41] : memref<18x32x128xf32, #tpu.memory_space<vmem>>, vector<16x16x128xf32>
    %38 = vector.shape_cast %37 : vector<16x16x128xf32> to vector<256x128xf32>
    %39 = arith.truncf %38 : vector<256x128xf32> to vector<256x128xbf16>
    %c1_42 = arith.constant 1 : index
    %c9_43 = arith.constant 9 : index
    %c0_44 = arith.constant 0 : index
    %40 = vector.load %arg5[%c1_42, %c9_43, %c0_44] : memref<18x32x128xf32, #tpu.memory_space<vmem>>, vector<16x16x128xf32>
    %41 = vector.shape_cast %40 : vector<16x16x128xf32> to vector<256x128xf32>
    %42 = arith.truncf %41 : vector<256x128xf32> to vector<256x128xbf16>
    %43 = tpu.concatenate %33, %36, %39, %42 in 1 : vector<256x128xbf16>, vector<256x128xbf16>, vector<256x128xbf16>, vector<256x128xbf16> -> vector<256x512xbf16>
    %c1_45 = arith.constant 1 : index
    %c0_46 = arith.constant 0 : index
    %c0_47 = arith.constant 0 : index
    %44 = vector.load %arg2[%c1_45, %c0_46, %c0_47] : memref<4x512x128xbf16, #tpu.memory_space<vmem>>, vector<1x512x128xbf16>
    %45 = vector.shape_cast %44 : vector<1x512x128xbf16> to vector<512x128xbf16>
    %cst_48 = arith.constant dense<0.000000e+00> : vector<256x128xf32>
    %46 = tpu.matmul %43, %45, %cst_48 {dimension_numbers = #tpu.dot_dimension_numbers<[1], [0], [0], [1], [0, 0, 1, 1], [], []>} : vector<256x512xbf16>, vector<512x128xbf16>, vector<256x128xf32> -> vector<256x128xf32>
    %47 = vector.broadcast %12 : vector<1x128xf32> to vector<256x128xf32>
    %48 = arith.addf %46, %47 : vector<256x128xf32>
    %49 = tpu.concatenate %30, %48 in 1 : vector<256x128xf32>, vector<256x128xf32> -> vector<256x256xf32>
    %50 = vector.shape_cast %49 : vector<256x256xf32> to vector<16x16x256xf32>
    %c0_49 = arith.constant 0 : index
    %c0_50 = arith.constant 0 : index
    %c0_51 = arith.constant 0 : index
    %c0_52 = arith.constant 0 : index
    %c0_53 = arith.constant 0 : index
    %51 = vector.load %arg4[%c0_49, %c0_50, %c0_51, %c0_52, %c0_53] : memref<1x16x2x16x256xf32, #tpu.memory_space<vmem>>, vector<1x16x1x16x256xf32>
    %52 = vector.shape_cast %51 : vector<1x16x1x16x256xf32> to vector<16x16x256xf32>
    %53 = vector.shape_cast %50 : vector<16x16x256xf32> to vector<1x16x1x16x256xf32>
    tpu.vector_store %arg4[%c0_49, %c0_50, %c0_51, %c0_52, %c0_53], %53 {strides = array<i32>} : memref<1x16x2x16x256xf32, #tpu.memory_space<vmem>>, vector<1x16x1x16x256xf32>,
    %c1_54 = arith.constant 1 : index
    %c7_55 = arith.constant 7 : index
    %c0_56 = arith.constant 0 : index
    %54 = vector.load %arg5[%c1_54, %c7_55, %c0_56] : memref<18x32x128xf32, #tpu.memory_space<vmem>>, vector<16x16x128xf32>
    %55 = vector.shape_cast %54 : vector<16x16x128xf32> to vector<256x128xf32>
    %56 = arith.truncf %55 : vector<256x128xf32> to vector<256x128xbf16>
    %c1_57 = arith.constant 1 : index
    %c8_58 = arith.constant 8 : index
    %c0_59 = arith.constant 0 : index
    %57 = vector.load %arg5[%c1_57, %c8_58, %c0_59] : memref<18x32x128xf32, #tpu.memory_space<vmem>>, vector<16x16x128xf32>
    %58 = vector.shape_cast %57 : vector<16x16x128xf32> to vector<256x128xf32>
    %59 = arith.truncf %58 : vector<256x128xf32> to vector<256x128xbf16>
    %c2 = arith.constant 2 : index
    %c7_60 = arith.constant 7 : index
    %c0_61 = arith.constant 0 : index
    %60 = vector.load %arg5[%c2, %c7_60, %c0_61] : memref<18x32x128xf32, #tpu.memory_space<vmem>>, vector<16x16x128xf32>
    %61 = vector.shape_cast %60 : vector<16x16x128xf32> to vector<256x128xf32>
    %62 = arith.truncf %61 : vector<256x128xf32> to vector<256x128xbf16>
    %c2_62 = arith.constant 2 : index
    %c8_63 = arith.constant 8 : index
    %c0_64 = arith.constant 0 : index
    %63 = vector.load %arg5[%c2_62, %c8_63, %c0_64] : memref<18x32x128xf32, #tpu.memory_space<vmem>>, vector<16x16x128xf32>
    %64 = vector.shape_cast %63 : vector<16x16x128xf32> to vector<256x128xf32>
    %65 = arith.truncf %64 : vector<256x128xf32> to vector<256x128xbf16>
    %66 = tpu.concatenate %56, %59, %62, %65 in 1 : vector<256x128xbf16>, vector<256x128xbf16>, vector<256x128xbf16>, vector<256x128xbf16> -> vector<256x512xbf16>
    %c2_65 = arith.constant 2 : index
    %c0_66 = arith.constant 0 : index
    %c0_67 = arith.constant 0 : index
    %67 = vector.load %arg2[%c2_65, %c0_66, %c0_67] : memref<4x512x128xbf16, #tpu.memory_space<vmem>>, vector<1x512x128xbf16>
    %68 = vector.shape_cast %67 : vector<1x512x128xbf16> to vector<512x128xbf16>
    %cst_68 = arith.constant dense<0.000000e+00> : vector<256x128xf32>
    %69 = tpu.matmul %66, %68, %cst_68 {dimension_numbers = #tpu.dot_dimension_numbers<[1], [0], [0], [1], [0, 0, 1, 1], [], []>} : vector<256x512xbf16>, vector<512x128xbf16>, vector<256x128xf32> -> vector<256x128xf32>
    %70 = vector.broadcast %12 : vector<1x128xf32> to vector<256x128xf32>
    %71 = arith.addf %69, %70 : vector<256x128xf32>
    %c1_69 = arith.constant 1 : index
    %c8_70 = arith.constant 8 : index
    %c0_71 = arith.constant 0 : index
    %72 = vector.load %arg5[%c1_69, %c8_70, %c0_71] : memref<18x32x128xf32, #tpu.memory_space<vmem>>, vector<16x16x128xf32>
    %73 = vector.shape_cast %72 : vector<16x16x128xf32> to vector<256x128xf32>
    %74 = arith.truncf %73 : vector<256x128xf32> to vector<256x128xbf16>
    %c1_72 = arith.constant 1 : index
    %c9_73 = arith.constant 9 : index
    %c0_74 = arith.constant 0 : index
    %75 = vector.load %arg5[%c1_72, %c9_73, %c0_74] : memref<18x32x128xf32, #tpu.memory_space<vmem>>, vector<16x16x128xf32>
    %76 = vector.shape_cast %75 : vector<16x16x128xf32> to vector<256x128xf32>
    %77 = arith.truncf %76 : vector<256x128xf32> to vector<256x128xbf16>
    %c2_75 = arith.constant 2 : index
    %c8_76 = arith.constant 8 : index
    %c0_77 = arith.constant 0 : index
    %78 = vector.load %arg5[%c2_75, %c8_76, %c0_77] : memref<18x32x128xf32, #tpu.memory_space<vmem>>, vector<16x16x128xf32>
    %79 = vector.shape_cast %78 : vector<16x16x128xf32> to vector<256x128xf32>
    %80 = arith.truncf %79 : vector<256x128xf32> to vector<256x128xbf16>
    %c2_78 = arith.constant 2 : index
    %c9_79 = arith.constant 9 : index
    %c0_80 = arith.constant 0 : index
    %81 = vector.load %arg5[%c2_78, %c9_79, %c0_80] : memref<18x32x128xf32, #tpu.memory_space<vmem>>, vector<16x16x128xf32>
    %82 = vector.shape_cast %81 : vector<16x16x128xf32> to vector<256x128xf32>
    %83 = arith.truncf %82 : vector<256x128xf32> to vector<256x128xbf16>
    %84 = tpu.concatenate %74, %77, %80, %83 in 1 : vector<256x128xbf16>, vector<256x128xbf16>, vector<256x128xbf16>, vector<256x128xbf16> -> vector<256x512xbf16>
    %c3 = arith.constant 3 : index
    %c0_81 = arith.constant 0 : index
    %c0_82 = arith.constant 0 : index
    %85 = vector.load %arg2[%c3, %c0_81, %c0_82] : memref<4x512x128xbf16, #tpu.memory_space<vmem>>, vector<1x512x128xbf16>
    %86 = vector.shape_cast %85 : vector<1x512x128xbf16> to vector<512x128xbf16>
    %cst_83 = arith.constant dense<0.000000e+00> : vector<256x128xf32>
    %87 = tpu.matmul %84, %86, %cst_83 {dimension_numbers = #tpu.dot_dimension_numbers<[1], [0], [0], [1], [0, 0, 1, 1], [], []>} : vector<256x512xbf16>, vector<512x128xbf16>, vector<256x128xf32> -> vector<256x128xf32>
    %88 = vector.broadcast %12 : vector<1x128xf32> to vector<256x128xf32>
    %89 = arith.addf %87, %88 : vector<256x128xf32>
    %90 = tpu.concatenate %71, %89 in 1 : vector<256x128xf32>, vector<256x128xf32> -> vector<256x256xf32>
    %91 = vector.shape_cast %90 : vector<256x256xf32> to vector<16x16x256xf32>
    %c0_84 = arith.constant 0 : index
    %c0_85 = arith.constant 0 : index
    %c1_86 = arith.constant 1 : index
    %c0_87 = arith.constant 0 : index
    %c0_88 = arith.constant 0 : index
    %92 = vector.load %arg4[%c0_84, %c0_85, %c1_86, %c0_87, %c0_88] : memref<1x16x2x16x256xf32, #tpu.memory_space<vmem>>, vector<1x16x1x16x256xf32>
    %93 = vector.shape_cast %92 : vector<1x16x1x16x256xf32> to vector<16x16x256xf32>
    %94 = vector.shape_cast %91 : vector<16x16x256xf32> to vector<1x16x1x16x256xf32>
    tpu.vector_store %arg4[%c0_84, %c0_85, %c1_86, %c0_87, %c0_88], %94 {strides = array<i32>} : memref<1x16x2x16x256xf32, #tpu.memory_space<vmem>>, vector<1x16x1x16x256xf32>,
    return
  }
  func.func @transform_0(%arg0: i32) -> (i32, i32, i32, i32) {
    %c0_i32 = arith.constant 0 : i32
    %c0_i32_0 = arith.constant 0 : i32
    %c0_i32_1 = arith.constant 0 : i32
    %c0_i32_2 = arith.constant 0 : i32
    return %arg0, %c0_i32, %c0_i32_0, %c0_i32_1 : i32, i32, i32, i32
  }
  func.func @transform_1(%arg0: i32) -> (i32, i32, i32) {
    %c0_i32 = arith.constant 0 : i32
    %c0_i32_0 = arith.constant 0 : i32
    %c0_i32_1 = arith.constant 0 : i32
    %c0_i32_2 = arith.constant 0 : i32
    return %c0_i32, %c0_i32_0, %c0_i32_1 : i32, i32, i32
  }
  func.func @transform_2(%arg0: i32) -> (i32, i32) {
    %c0_i32 = arith.constant 0 : i32
    %c0_i32_0 = arith.constant 0 : i32
    %c0_i32_1 = arith.constant 0 : i32
    return %c0_i32, %c0_i32_0 : i32, i32
  }
  func.func @transform_3(%arg0: i32) -> (i32, i32, i32, i32, i32) {
    %c0_i32 = arith.constant 0 : i32
    %c0_i32_0 = arith.constant 0 : i32
    %c0_i32_1 = arith.constant 0 : i32
    %c0_i32_2 = arith.constant 0 : i32
    %c0_i32_3 = arith.constant 0 : i32
    return %arg0, %c0_i32, %c0_i32_0, %c0_i32_1, %c0_i32_2 : i32, i32, i32, i32, i32
  }
}

</mosaic_0001>

<llo_original>
// kernel: tpu_custom_call.1
$region0: #{tpu_custom_call.1}
  #allocation0 [shape = 'u32[]', space=smem, size = 0x4, offset = 0x4, fixed_abs, tag = 'smem constant byte address 0x4 - core index']
  #allocation1 [shape = 'u32[144,128]{1,0:T(1,128)}', space=vmem, size = 0x12000, scoped, tag = 'internal scratch']
  #allocation2 [shape = 'f32[18,32,128]{2,1,0:T(8,128)}', space=vmem, size = 0x48000, scoped, tag = 'scratch operand']
  %s0 = inlined_call_operand.hbm [shape: bf16[2,16,16,128], index: 0, kind: input, shape index: {}]
  %s1 = inlined_call_operand.hbm [shape: bf16[4,512,128], index: 1, kind: input, shape index: {}]
  %s2 = inlined_call_operand.vmem [shape: f32[1,128], index: 2, kind: input, shape index: {}]
  %s3 = inlined_call_operand.hbm [shape: f32[2,16,2,16,256], index: 3, kind: output, shape index: {}]
  %s4 = sld [smem:[#allocation0]]
  $region53: #{tpu_custom_call.1} parent=0
    _
  %s6 = ssub.s32 1, %s4
  %s7 = scalar_select 0, %s6, %s4
  $region1: #{tpu_custom_call.1} parent=0
    #allocation3 [shape = 'u8[131072]{0}', space=vmem, size = 0x20000, scoped, tag = 'input window, operand 0']
    #allocation4 [shape = 's32[2]{0}', space=sflag, size = 0x8, scoped, tag = 'scoped memory for tpu_custom_call.1']
    #allocation5 [shape = 's32[2]{0}', space=sflag, size = 0x8, scoped, tag = 'scoped memory for tpu_custom_call.1']
    #allocation6 [shape = 'u8[524288]{0}', space=vmem, size = 0x80000, scoped, tag = 'input window, operand 1, single buffered']
    #allocation7 [shape = 's32[1]{0}', space=sflag, size = 0x4, scoped, tag = 'scoped memory for tpu_custom_call.1']
    #allocation8 [shape = 'u8[1048576]{0}', space=vmem, size = 0x100000, scoped, tag = 'output window, operand 0']
    %8 = vsyncpa [#allocation4], 0
    %s9 = scalar_lea.sflag [#allocation4], 1
    %10 = vsyncpa %s9, 0
    %11 = vsyncpa [#allocation7], 0
    %12 = vsyncpa [#allocation5], 0
    %s13 = scalar_lea.sflag [#allocation5], 1
    %14 = vsyncpa %s13, 0
    loop: start=0, step=1, limit=4
    $region2: #{tpu_custom_call.1} parent=1 // loop_pre_header
      _
    $region3: #{tpu_custom_call.1} parent=1 // loop_header
      %s16 = sphi 0, %s20
      %p17 = scmp.ge.s32.totalorder %s16, 4
      %s26 = sphi 0, %s28
      %s29 = sphi 0, %s26
      %s30 = sphi 0, %s29
      %s46 = sphi 0, %s30
      %s50 = sphi 0, %s50
      %s52 = sphi 0, %s50
      %s53 = sphi 0, %s52
      %s67 = sphi 0, %s53
      %s71 = sphi 0, %s71
      %s73 = sphi 0, %s71
      %s74 = sphi 0, %s73
      %s88 = sphi 0, %s74
      %s94 = sphi 0, %s96
      %s97 = sphi 0, %s94
      %s98 = sphi 0, %s97
      %s114 = sphi 0, %s98
    $region4: #{tpu_custom_call.1} parent=1 // loop_header_branch
      %19 = sbr.rel (%p17) target = $region8
    $region5: #{tpu_custom_call.1} parent=1 // loop_body
      %s21 = ssub.s32 %s16, 1
      %s22 = ssub.s32 %s16, 2
      %s23 = sadd.s32 %s16, 1
      %s24 = ssub.s32 %s16, %s23
      %p25 = scmp.eq.s32.totalorder %s24, 0
      %s27 = sadd.s32 %s26, 1
      %s28 = scalar_select %p25, %s26, %s27
      %p31 = pneg %p25
      %p32 = scmp.eq.s32.totalorder %s16, 1
      %p33 = por %p31, %p32
      %p34 = scmp.ne.s32.totalorder %s26, %s29
      %p35 = scmp.eq.s32.totalorder %s16, 0
      %p36 = por %p34, %p35
      %p37 = scmp.ne.s32.totalorder %s26, %s29
      %p38 = scmp.eq.s32.totalorder %s21, 1
      %p39 = por %p37, %p38
      %p40 = scmp.ne.s32.totalorder %s29, %s30
      %p41 = scmp.eq.s32.totalorder %s21, 0
      %p42 = por %p40, %p41
      %p43 = scmp.ne.s32.totalorder %s29, %s30
      %p44 = scmp.eq.s32.totalorder %s22, 1
      %p45 = por %p43, %p44
      %p47 = scmp.ne.s32.totalorder %s30, %s46
      %p48 = scmp.eq.s32.totalorder %s22, 0
      %p49 = por %p47, %p48
      %s51 = sadd.s32 %s50, 1
      %p54 = scmp.eq.s32.totalorder %s16, 1
      %p55 = scmp.ne.s32.totalorder %s50, %s52
      %p56 = scmp.eq.s32.totalorder %s16, 0
      %p57 = por %p55, %p56
      %p58 = scmp.ne.s32.totalorder %s50, %s52
      %p59 = scmp.eq.s32.totalorder %s21, 1
      %p60 = por %p58, %p59
      %p61 = scmp.ne.s32.totalorder %s52, %s53
      %p62 = scmp.eq.s32.totalorder %s21, 0
      %p63 = por %p61, %p62
      %p64 = scmp.ne.s32.totalorder %s52, %s53
      %p65 = scmp.eq.s32.totalorder %s22, 1
      %p66 = por %p64, %p65
      %p68 = scmp.ne.s32.totalorder %s53, %s67
      %p69 = scmp.eq.s32.totalorder %s22, 0
      %p70 = por %p68, %p69
      %s72 = sadd.s32 %s71, 1
      %p75 = scmp.eq.s32.totalorder %s16, 1
      %p76 = scmp.ne.s32.totalorder %s71, %s73
      %p77 = scmp.eq.s32.totalorder %s16, 0
      %p78 = por %p76, %p77
      %p79 = scmp.ne.s32.totalorder %s71, %s73
      %p80 = scmp.eq.s32.totalorder %s21, 1
      %p81 = por %p79, %p80
      %p82 = scmp.ne.s32.totalorder %s73, %s74
      %p83 = scmp.eq.s32.totalorder %s21, 0
      %p84 = por %p82, %p83
      %p85 = scmp.ne.s32.totalorder %s73, %s74
      %p86 = scmp.eq.s32.totalorder %s22, 1
      %p87 = por %p85, %p86
      %p89 = scmp.ne.s32.totalorder %s74, %s88
      %p90 = scmp.eq.s32.totalorder %s22, 0
      %p91 = por %p89, %p90
      %s92 = ssub.s32 %s16, %s23
      %p93 = scmp.eq.s32.totalorder %s92, 0
      %s95 = sadd.s32 %s94, 1
      %s96 = scalar_select %p93, %s94, %s95
      %p99 = pneg %p93
      %p100 = scmp.eq.s32.totalorder %s16, 1
      %p101 = por %p99, %p100
      %p102 = scmp.ne.s32.totalorder %s94, %s97
      %p103 = scmp.eq.s32.totalorder %s16, 0
      %p104 = por %p102, %p103
      %p105 = scmp.ne.s32.totalorder %s94, %s97
      %p106 = scmp.eq.s32.totalorder %s21, 1
      %p107 = por %p105, %p106
      %p108 = scmp.ne.s32.totalorder %s97, %s98
      %p109 = scmp.eq.s32.totalorder %s21, 0
      %p110 = por %p108, %p109
      %p111 = scmp.ne.s32.totalorder %s97, %s98
      %p112 = scmp.eq.s32.totalorder %s22, 1
      %p113 = por %p111, %p112
      %p115 = scmp.ne.s32.totalorder %s98, %s114
      %p116 = scmp.eq.s32.totalorder %s22, 0
      %p117 = por %p115, %p116
      %p118 = scmp.le.s32.totalorder 1, %s16
      %p119 = scmp.lt.s32.totalorder %s16, 3
      %p120 = pnand %p118, %p119
      %p121 = pneg %p120
      // Predicated region
      $region9: #{tpu_custom_call.1} parent=5 // pred_check
        _
      $region10: #{tpu_custom_call.1} parent=5 // pred_check_branch
        %123 = sbr.rel (%p120) target = $region12
      $region11: #{tpu_custom_call.1} parent=5 // pred_region
        %s124 = ssub.s32 %s16, 1
        // Predicated region
        $region13: #{tpu_custom_call.1} parent=11 // pred_check
          %p125 = pneg %p63
        $region14: #{tpu_custom_call.1} parent=11 // pred_check_branch
          %127 = sbr.rel (%p125) target = $region16
        $region15: #{tpu_custom_call.1} parent=11 // pred_region
          %s129 = ssub.s32 16384, 16384
          %130 = vsyncadd [#allocation7], %s129
          %s131 = sshll.u32 [#allocation6], 4
          %s132 = int_to_ptr.vmem [resolvable:$true] %s131
          %137 = dma.hbm_to_vmem [thread:$0]  %s1, 16384, %s132, [#allocation7], 64, 64, 4
        $region16: #{tpu_custom_call.1} parent=11 // pred_fallthru
          _
        // Predicated region
        $region17: #{tpu_custom_call.1} parent=11 // pred_check
          %p138 = pneg %p84
        $region18: #{tpu_custom_call.1} parent=11 // pred_check_branch
          %140 = sbr.rel (%p138) target = $region20
        $region19: #{tpu_custom_call.1} parent=11 // pred_region
          _
        $region20: #{tpu_custom_call.1} parent=11 // pred_fallthru
          _
      $region12: #{tpu_custom_call.1} parent=5 // pred_fallthru
        _
      %p141 = scmp.lt.s32.totalorder %s16, 2
      // Predicated region
      $region21: #{tpu_custom_call.1} parent=5 // pred_check
        %p142 = pneg %p141
      $region22: #{tpu_custom_call.1} parent=5 // pred_check_branch
        %144 = sbr.rel (%p142) target = $region24
      $region23: #{tpu_custom_call.1} parent=5 // pred_region
        // Predicated region
        $region25: #{tpu_custom_call.1} parent=23 // pred_check
          %p145 = pneg %p36
        $region26: #{tpu_custom_call.1} parent=23 // pred_check_branch
          %147 = sbr.rel (%p145) target = $region28
        $region27: #{tpu_custom_call.1} parent=23 // pred_region
          %s148 = sand.u32 %s26, 1
          %s149 = scalar_lea.sflag [#allocation4], %s148
          %s150 = sand.u32 %s26, 1
          %s151 = smul.addr %s150, 128
          %s152 = scalar_lea.vmem [#allocation3], %s151
          %s154 = ssub.s32 2048, 2048
          %155 = vsyncadd %s149, %s154
          %s156 = smul.addr %s16, 32
          %s157 = smul.addr %s156, 64
          %s158 = scalar_lea.hbm %s0, %s157
          %s159 = sshll.u32 %s152, 4
          %s160 = int_to_ptr.vmem [resolvable:$true] %s159
          %165 = dma.hbm_to_vmem [thread:$0]  %s158, 2048, %s160, %s149, 64, 64, 4
        $region28: #{tpu_custom_call.1} parent=23 // pred_fallthru
          _
      $region24: #{tpu_custom_call.1} parent=5 // pred_fallthru
        _
      %p166 = scmp.le.s32.totalorder 1, %s16
      %p167 = scmp.lt.s32.totalorder %s16, 3
      %p168 = pnand %p166, %p167
      %p169 = pneg %p168
      // Predicated region
      $region29: #{tpu_custom_call.1} parent=5 // pred_check
        _
      $region30: #{tpu_custom_call.1} parent=5 // pred_check_branch
        %171 = sbr.rel (%p168) target = $region32
      $region31: #{tpu_custom_call.1} parent=5 // pred_region
        %s172 = ssub.s32 %s16, 1
        %s173 = sand.u32 %s29, 1
        %s174 = scalar_lea.sflag [#allocation4], %s173
        %s175 = sand.u32 %s29, 1
        %s176 = smul.addr %s175, 128
        %s177 = scalar_lea.vmem [#allocation3], %s176
        // Predicated region
        $region33: #{tpu_custom_call.1} parent=31 // pred_check
          %p178 = pneg %p42
        $region34: #{tpu_custom_call.1} parent=31 // pred_check_branch
          %180 = sbr.rel (%p178) target = $region36
        $region35: #{tpu_custom_call.1} parent=31 // pred_region
          %181 = dma.done %s174, 2048
        $region36: #{tpu_custom_call.1} parent=31 // pred_fallthru
          _
        // Predicated region
        $region37: #{tpu_custom_call.1} parent=31 // pred_check
          %p182 = pneg %p63
        $region38: #{tpu_custom_call.1} parent=31 // pred_check_branch
          %184 = sbr.rel (%p182) target = $region40
        $region39: #{tpu_custom_call.1} parent=31 // pred_region
          %185 = dma.done [#allocation7], 16384
        $region40: #{tpu_custom_call.1} parent=31 // pred_fallthru
          _
        %s186 = sand.u32 %s29, 1
        %s187 = scalar_lea.sflag [#allocation4], %s186
        %s188 = sand.u32 %s29, 1
        %s189 = smul.addr %s188, 128
        %s190 = scalar_lea.vmem [#allocation3], %s189
        %p191 = pneg %p42
        %p192 = pneg %p39
        %p193 = pneg %p63
        %p194 = pneg %p60
        %p195 = pneg %p84
        %p196 = pneg %p81
        %p197 = pneg %p110
        %p198 = pneg %p107
        %s199 = sand.u32 %s97, 1
        %s200 = scalar_lea.sflag [#allocation5], %s199
        %s201 = sand.u32 %s97, 1
        %s202 = smul.addr %s201, 1024
        %s203 = scalar_lea.vmem [#allocation8], %s202
        %205 = vst [vmem:[#allocation2] sm:$0xff] 0.0
        %206 = vst [vmem:[#allocation2 + $0x20] sm:$0xff] 0.0
        %207 = vst [vmem:[#allocation2 + $0x40] sm:$0xff] 0.0
        %208 = vst [vmem:[#allocation2 + $0x60] sm:$0xff] 0.0
        %209 = vst [vmem:[#allocation2 + $0x80] sm:$0xff] 0.0
        %210 = vst [vmem:[#allocation2 + $0xa0] sm:$0xff] 0.0
        %211 = vst [vmem:[#allocation2 + $0xc0] sm:$0xff] 0.0
        %212 = vst [vmem:[#allocation2 + $0xe0] sm:$0xff] 0.0
        %213 = vst [vmem:[#allocation2 + $0x100] sm:$0xff] 0.0
        %214 = vst [vmem:[#allocation2 + $0x120] sm:$0xff] 0.0
        %215 = vst [vmem:[#allocation2 + $0x140] sm:$0xff] 0.0
        %216 = vst [vmem:[#allocation2 + $0x160] sm:$0xff] 0.0
        %217 = vst [vmem:[#allocation2 + $0x180] sm:$0xff] 0.0
        %218 = vst [vmem:[#allocation2 + $0x1a0] sm:$0xff] 0.0
        %219 = vst [vmem:[#allocation2 + $0x1c0] sm:$0xff] 0.0
        %220 = vst [vmem:[#allocation2 + $0x1e0] sm:$0xff] 0.0
        %221 = vst [vmem:[#allocation2 + $0x200] sm:$0xff] 0.0
        %222 = vst [vmem:[#allocation2 + $0x220] sm:$0xff] 0.0
        %223 = vst [vmem:[#allocation2 + $0x18] sm:$0xff] 0.0
        %224 = vst [vmem:[#allocation2 + $0x38] sm:$0xff] 0.0
        %225 = vst [vmem:[#allocation2 + $0x58] sm:$0xff] 0.0
        %226 = vst [vmem:[#allocation2 + $0x78] sm:$0xff] 0.0
        %227 = vst [vmem:[#allocation2 + $0x98] sm:$0xff] 0.0
        %228 = vst [vmem:[#allocation2 + $0xb8] sm:$0xff] 0.0
        %229 = vst [vmem:[#allocation2 + $0xd8] sm:$0xff] 0.0
        %230 = vst [vmem:[#allocation2 + $0xf8] sm:$0xff] 0.0
        %231 = vst [vmem:[#allocation2 + $0x118] sm:$0xff] 0.0
        %232 = vst [vmem:[#allocation2 + $0x138] sm:$0xff] 0.0
        %233 = vst [vmem:[#allocation2 + $0x158] sm:$0xff] 0.0
        %234 = vst [vmem:[#allocation2 + $0x178] sm:$0xff] 0.0
        %235 = vst [vmem:[#allocation2 + $0x198] sm:$0xff] 0.0
        %236 = vst [vmem:[#allocation2 + $0x1b8] sm:$0xff] 0.0
        %237 = vst [vmem:[#allocation2 + $0x1d8] sm:$0xff] 0.0
        %238 = vst [vmem:[#allocation2 + $0x1f8] sm:$0xff] 0.0
        %239 = vst [vmem:[#allocation2 + $0x218] sm:$0xff] 0.0
        %240 = vst [vmem:[#allocation2 + $0x238] sm:$0xff] 0.0
        %241 = vst [vmem:[#allocation2] sm:$0xff] 0.0
        %242 = vst [vmem:[#allocation2 + $0x8] sm:$0xff] 0.0
        %243 = vst [vmem:[#allocation2 + $0x10] sm:$0xff] 0.0
        %244 = vst [vmem:[#allocation2 + $0x18] sm:$0xff] 0.0
        %s245 = scalar_lea.vmem [#allocation2], 544
        %246 = vst [vmem:[%s245] sm:$0xff] 0.0
        %247 = vst [vmem:[%s245 + $0x8] sm:$0xff] 0.0
        %248 = vst [vmem:[%s245 + $0x10] sm:$0xff] 0.0
        %249 = vst [vmem:[%s245 + $0x18] sm:$0xff] 0.0
        %v250 = vld [vmem:[%s177] sm:$0xf]
        %v251 = vld [vmem:[%s177 + $0x4] sm:$0xf]
        %v252 = vld [vmem:[%s177 + $0x8] sm:$0xf]
        %v253 = vld [vmem:[%s177 + $0xc] sm:$0xf]
        %v254 = vld [vmem:[%s177 + $0x10] sm:$0xf]
        %v255 = vld [vmem:[%s177 + $0x14] sm:$0xf]
        %v256 = vld [vmem:[%s177 + $0x18] sm:$0xf]
        %v257 = vld [vmem:[%s177 + $0x1c] sm:$0xf]
        %v258 = vld [vmem:[%s177 + $0x20] sm:$0xf]
        %v259 = vld [vmem:[%s177 + $0x24] sm:$0xf]
        %v260 = vld [vmem:[%s177 + $0x28] sm:$0xf]
        %v261 = vld [vmem:[%s177 + $0x2c] sm:$0xf]
        %v262 = vld [vmem:[%s177 + $0x30] sm:$0xf]
        %v263 = vld [vmem:[%s177 + $0x34] sm:$0xf]
        %v264 = vld [vmem:[%s177 + $0x38] sm:$0xf]
        %v265 = vld [vmem:[%s177 + $0x3c] sm:$0xf]
        %v266 = vld [vmem:[%s177 + $0x40] sm:$0xf]
        %v267 = vld [vmem:[%s177 + $0x44] sm:$0xf]
        %v268 = vld [vmem:[%s177 + $0x48] sm:$0xf]
        %v269 = vld [vmem:[%s177 + $0x4c] sm:$0xf]
        %v270 = vld [vmem:[%s177 + $0x50] sm:$0xf]
        %v271 = vld [vmem:[%s177 + $0x54] sm:$0xf]
        %v272 = vld [vmem:[%s177 + $0x58] sm:$0xf]
        %v273 = vld [vmem:[%s177 + $0x5c] sm:$0xf]
        %v274 = vld [vmem:[%s177 + $0x60] sm:$0xf]
        %v275 = vld [vmem:[%s177 + $0x64] sm:$0xf]
        %v276 = vld [vmem:[%s177 + $0x68] sm:$0xf]
        %v277 = vld [vmem:[%s177 + $0x6c] sm:$0xf]
        %v278 = vld [vmem:[%s177 + $0x70] sm:$0xf]
        %v279 = vld [vmem:[%s177 + $0x74] sm:$0xf]
        %v280 = vld [vmem:[%s177 + $0x78] sm:$0xf]
        %v281 = vld [vmem:[%s177 + $0x7c] sm:$0xf]
        %v282 = vunpack.c.l.bf16 %v250
        %v283 = vunpack.c.l.bf16 %v251
        %v284 = vunpack.c.l.bf16 %v252
        %v285 = vunpack.c.l.bf16 %v253
        %v286 = vunpack.c.l.bf16 %v254
        %v287 = vunpack.c.l.bf16 %v255
        %v288 = vunpack.c.l.bf16 %v256
        %v289 = vunpack.c.l.bf16 %v257
        %v290 = vunpack.c.l.bf16 %v258
        %v291 = vunpack.c.l.bf16 %v259
        %v292 = vunpack.c.l.bf16 %v260
        %v293 = vunpack.c.l.bf16 %v261
        %v294 = vunpack.c.l.bf16 %v262
        %v295 = vunpack.c.l.bf16 %v263
        %v296 = vunpack.c.l.bf16 %v264
        %v297 = vunpack.c.l.bf16 %v265
        %v298 = vunpack.c.l.bf16 %v266
        %v299 = vunpack.c.l.bf16 %v267
        %v300 = vunpack.c.l.bf16 %v268
        %v301 = vunpack.c.l.bf16 %v269
        %v302 = vunpack.c.l.bf16 %v270
        %v303 = vunpack.c.l.bf16 %v271
        %v304 = vunpack.c.l.bf16 %v272
        %v305 = vunpack.c.l.bf16 %v273
        %v306 = vunpack.c.l.bf16 %v274
        %v307 = vunpack.c.l.bf16 %v275
        %v308 = vunpack.c.l.bf16 %v276
        %v309 = vunpack.c.l.bf16 %v277
        %v310 = vunpack.c.l.bf16 %v278
        %v311 = vunpack.c.l.bf16 %v279
        %v312 = vunpack.c.l.bf16 %v280
        %v313 = vunpack.c.l.bf16 %v281
        %s314 = scalar_lea.vmem [#allocation2], 32
        %315 = vst [vmem:[%s314 + $0x8] sm:$0xff] %v282
        %316 = vst [vmem:[%s314 + $0x10] sm:$0xff] %v283
        %317 = vst [vmem:[%s314 + $0x28] sm:$0xff] %v284
        %318 = vst [vmem:[%s314 + $0x30] sm:$0xff] %v285
        %319 = vst [vmem:[%s314 + $0x48] sm:$0xff] %v286
        %320 = vst [vmem:[%s314 + $0x50] sm:$0xff] %v287
        %321 = vst [vmem:[%s314 + $0x68] sm:$0xff] %v288
        %322 = vst [vmem:[%s314 + $0x70] sm:$0xff] %v289
        %323 = vst [vmem:[%s314 + $0x88] sm:$0xff] %v290
        %324 = vst [vmem:[%s314 + $0x90] sm:$0xff] %v291
        %325 = vst [vmem:[%s314 + $0xa8] sm:$0xff] %v292
        %326 = vst [vmem:[%s314 + $0xb0] sm:$0xff] %v293
        %327 = vst [vmem:[%s314 + $0xc8] sm:$0xff] %v294
        %328 = vst [vmem:[%s314 + $0xd0] sm:$0xff] %v295
        %329 = vst [vmem:[%s314 + $0xe8] sm:$0xff] %v296
        %330 = vst [vmem:[%s314 + $0xf0] sm:$0xff] %v297
        %331 = vst [vmem:[%s314 + $0x108] sm:$0xff] %v298
        %332 = vst [vmem:[%s314 + $0x110] sm:$0xff] %v299
        %333 = vst [vmem:[%s314 + $0x128] sm:$0xff] %v300
        %334 = vst [vmem:[%s314 + $0x130] sm:$0xff] %v301
        %335 = vst [vmem:[%s314 + $0x148] sm:$0xff] %v302
        %336 = vst [vmem:[%s314 + $0x150] sm:$0xff] %v303
        %337 = vst [vmem:[%s314 + $0x168] sm:$0xff] %v304
        %338 = vst [vmem:[%s314 + $0x170] sm:$0xff] %v305
        %339 = vst [vmem:[%s314 + $0x188] sm:$0xff] %v306
        %340 = vst [vmem:[%s314 + $0x190] sm:$0xff] %v307
        %341 = vst [vmem:[%s314 + $0x1a8] sm:$0xff] %v308
        %342 = vst [vmem:[%s314 + $0x1b0] sm:$0xff] %v309
        %343 = vst [vmem:[%s314 + $0x1c8] sm:$0xff] %v310
        %344 = vst [vmem:[%s314 + $0x1d0] sm:$0xff] %v311
        %345 = vst [vmem:[%s314 + $0x1e8] sm:$0xff] %v312
        %346 = vst [vmem:[%s314 + $0x1f0] sm:$0xff] %v313
        %v347 = vld [vmem:[%s2] sm:$0x1]
        %v348 = vld [vmem:[#allocation2 + $0x7] sm:$0xff]
        %v349 = vld [vmem:[#allocation2 + $0xf] sm:$0xff]
        %v350 = vld [vmem:[#allocation2 + $0x27] sm:$0xff]
        %v351 = vld [vmem:[#allocation2 + $0x2f] sm:$0xff]
        %v352 = vld [vmem:[#allocation2 + $0x47] sm:$0xff]
        %v353 = vld [vmem:[#allocation2 + $0x4f] sm:$0xff]
        %v354 = vld [vmem:[#allocation2 + $0x67] sm:$0xff]
        %v355 = vld [vmem:[#allocation2 + $0x6f] sm:$0xff]
        %v356 = vld [vmem:[#allocation2 + $0x87] sm:$0xff]
        %v357 = vld [vmem:[#allocation2 + $0x8f] sm:$0xff]
        %v358 = vld [vmem:[#allocation2 + $0xa7] sm:$0xff]
        %v359 = vld [vmem:[#allocation2 + $0xaf] sm:$0xff]
        %v360 = vld [vmem:[#allocation2 + $0xc7] sm:$0xff]
        %v361 = vld [vmem:[#allocation2 + $0xcf] sm:$0xff]
        %v362 = vld [vmem:[#allocation2 + $0xe7] sm:$0xff]
        %v363 = vld [vmem:[#allocation2 + $0xef] sm:$0xff]
        %v364 = vld [vmem:[#allocation2 + $0x107] sm:$0xff]
        %v365 = vld [vmem:[#allocation2 + $0x10f] sm:$0xff]
        %v366 = vld [vmem:[#allocation2 + $0x127] sm:$0xff]
        %v367 = vld [vmem:[#allocation2 + $0x12f] sm:$0xff]
        %v368 = vld [vmem:[#allocation2 + $0x147] sm:$0xff]
        %v369 = vld [vmem:[#allocation2 + $0x14f] sm:$0xff]
        %v370 = vld [vmem:[#allocation2 + $0x167] sm:$0xff]
        %v371 = vld [vmem:[#allocation2 + $0x16f] sm:$0xff]
        %v372 = vld [vmem:[#allocation2 + $0x187] sm:$0xff]
        %v373 = vld [vmem:[#allocation2 + $0x18f] sm:$0xff]
        %v374 = vld [vmem:[#allocation2 + $0x1a7] sm:$0xff]
        %v375 = vld [vmem:[#allocation2 + $0x1af] sm:$0xff]
        %v376 = vld [vmem:[#allocation2 + $0x1c7] sm:$0xff]
        %v377 = vld [vmem:[#allocation2 + $0x1cf] sm:$0xff]
        %v378 = vld [vmem:[#allocation2 + $0x1e7] sm:$0xff]
        %v379 = vld [vmem:[#allocation2 + $0x1ef] sm:$0xff]
        %v380 = vpack.c.bf16 %v349, %v348
        %v381 = vpack.c.bf16 %v351, %v350
        %v382 = vpack.c.bf16 %v353, %v352
        %v383 = vpack.c.bf16 %v355, %v354
        %v384 = vpack.c.bf16 %v357, %v356
        %v385 = vpack.c.bf16 %v359, %v358
        %v386 = vpack.c.bf16 %v361, %v360
        %v387 = vpack.c.bf16 %v363, %v362
        %v388 = vpack.c.bf16 %v365, %v364
        %v389 = vpack.c.bf16 %v367, %v366
        %v390 = vpack.c.bf16 %v369, %v368
        %v391 = vpack.c.bf16 %v371, %v370
        %v392 = vpack.c.bf16 %v373, %v372
        %v393 = vpack.c.bf16 %v375, %v374
        %v394 = vpack.c.bf16 %v377, %v376
        %v395 = vpack.c.bf16 %v379, %v378
        %v396 = vld [vmem:[#allocation2 + $0x8] sm:$0xff]
        %v397 = vld [vmem:[#allocation2 + $0x10] sm:$0xff]
        %v398 = vld [vmem:[#allocation2 + $0x28] sm:$0xff]
        %v399 = vld [vmem:[#allocation2 + $0x30] sm:$0xff]
        %v400 = vld [vmem:[#allocation2 + $0x48] sm:$0xff]
        %v401 = vld [vmem:[#allocation2 + $0x50] sm:$0xff]
        %v402 = vld [vmem:[#allocation2 + $0x68] sm:$0xff]
        %v403 = vld [vmem:[#allocation2 + $0x70] sm:$0xff]
        %v404 = vld [vmem:[#allocation2 + $0x88] sm:$0xff]
        %v405 = vld [vmem:[#allocation2 + $0x90] sm:$0xff]
        %v406 = vld [vmem:[#allocation2 + $0xa8] sm:$0xff]
        %v407 = vld [vmem:[#allocation2 + $0xb0] sm:$0xff]
        %v408 = vld [vmem:[#allocation2 + $0xc8] sm:$0xff]
        %v409 = vld [vmem:[#allocation2 + $0xd0] sm:$0xff]
        %v410 = vld [vmem:[#allocation2 + $0xe8] sm:$0xff]
        %v411 = vld [vmem:[#allocation2 + $0xf0] sm:$0xff]
        %v412 = vld [vmem:[#allocation2 + $0x108] sm:$0xff]
        %v413 = vld [vmem:[#allocation2 + $0x110] sm:$0xff]
        %v414 = vld [vmem:[#allocation2 + $0x128] sm:$0xff]
        %v415 = vld [vmem:[#allocation2 + $0x130] sm:$0xff]
        %v416 = vld [vmem:[#allocation2 + $0x148] sm:$0xff]
        %v417 = vld [vmem:[#allocation2 + $0x150] sm:$0xff]
        %v418 = vld [vmem:[#allocation2 + $0x168] sm:$0xff]
        %v419 = vld [vmem:[#allocation2 + $0x170] sm:$0xff]
        %v420 = vld [vmem:[#allocation2 + $0x188] sm:$0xff]
        %v421 = vld [vmem:[#allocation2 + $0x190] sm:$0xff]
        %v422 = vld [vmem:[#allocation2 + $0x1a8] sm:$0xff]
        %v423 = vld [vmem:[#allocation2 + $0x1b0] sm:$0xff]
        %v424 = vld [vmem:[#allocation2 + $0x1c8] sm:$0xff]
        %v425 = vld [vmem:[#allocation2 + $0x1d0] sm:$0xff]
        %v426 = vld [vmem:[#allocation2 + $0x1e8] sm:$0xff]
        %v427 = vld [vmem:[#allocation2 + $0x1f0] sm:$0xff]
        %v428 = vpack.c.bf16 %v397, %v396
        %v429 = vpack.c.bf16 %v399, %v398
        %v430 = vpack.c.bf16 %v401, %v400
        %v431 = vpack.c.bf16 %v403, %v402
        %v432 = vpack.c.bf16 %v405, %v404
        %v433 = vpack.c.bf16 %v407, %v406
        %v434 = vpack.c.bf16 %v409, %v408
        %v435 = vpack.c.bf16 %v411, %v410
        %v436 = vpack.c.bf16 %v413, %v412
        %v437 = vpack.c.bf16 %v415, %v414
        %v438 = vpack.c.bf16 %v417, %v416
        %v439 = vpack.c.bf16 %v419, %v418
        %v440 = vpack.c.bf16 %v421, %v420
        %v441 = vpack.c.bf16 %v423, %v422
        %v442 = vpack.c.bf16 %v425, %v424
        %v443 = vpack.c.bf16 %v427, %v426
        %v444 = vld [vmem:[%s314 + $0x7] sm:$0xff]
        %v445 = vld [vmem:[%s314 + $0xf] sm:$0xff]
        %v446 = vld [vmem:[%s314 + $0x27] sm:$0xff]
        %v447 = vld [vmem:[%s314 + $0x2f] sm:$0xff]
        %v448 = vld [vmem:[%s314 + $0x47] sm:$0xff]
        %v449 = vld [vmem:[%s314 + $0x4f] sm:$0xff]
        %v450 = vld [vmem:[%s314 + $0x67] sm:$0xff]
        %v451 = vld [vmem:[%s314 + $0x6f] sm:$0xff]
        %v452 = vld [vmem:[%s314 + $0x87] sm:$0xff]
        %v453 = vld [vmem:[%s314 + $0x8f] sm:$0xff]
        %v454 = vld [vmem:[%s314 + $0xa7] sm:$0xff]
        %v455 = vld [vmem:[%s314 + $0xaf] sm:$0xff]
        %v456 = vld [vmem:[%s314 + $0xc7] sm:$0xff]
        %v457 = vld [vmem:[%s314 + $0xcf] sm:$0xff]
        %v458 = vld [vmem:[%s314 + $0xe7] sm:$0xff]
        %v459 = vld [vmem:[%s314 + $0xef] sm:$0xff]
        %v460 = vld [vmem:[%s314 + $0x107] sm:$0xff]
        %v461 = vld [vmem:[%s314 + $0x10f] sm:$0xff]
        %v462 = vld [vmem:[%s314 + $0x127] sm:$0xff]
        %v463 = vld [vmem:[%s314 + $0x12f] sm:$0xff]
        %v464 = vld [vmem:[%s314 + $0x147] sm:$0xff]
        %v465 = vld [vmem:[%s314 + $0x14f] sm:$0xff]
        %v466 = vld [vmem:[%s314 + $0x167] sm:$0xff]
        %v467 = vld [vmem:[%s314 + $0x16f] sm:$0xff]
        %v468 = vld [vmem:[%s314 + $0x187] sm:$0xff]
        %v469 = vld [vmem:[%s314 + $0x18f] sm:$0xff]
        %v470 = vld [vmem:[%s314 + $0x1a7] sm:$0xff]
        %v471 = vld [vmem:[%s314 + $0x1af] sm:$0xff]
        %v472 = vld [vmem:[%s314 + $0x1c7] sm:$0xff]
        %v473 = vld [vmem:[%s314 + $0x1cf] sm:$0xff]
        %v474 = vld [vmem:[%s314 + $0x1e7] sm:$0xff]
        %v475 = vld [vmem:[%s314 + $0x1ef] sm:$0xff]
        %v476 = vpack.c.bf16 %v445, %v444
        %v477 = vpack.c.bf16 %v447, %v446
        %v478 = vpack.c.bf16 %v449, %v448
        %v479 = vpack.c.bf16 %v451, %v450
        %v480 = vpack.c.bf16 %v453, %v452
        %v481 = vpack.c.bf16 %v455, %v454
        %v482 = vpack.c.bf16 %v457, %v456
        %v483 = vpack.c.bf16 %v459, %v458
        %v484 = vpack.c.bf16 %v461, %v460
        %v485 = vpack.c.bf16 %v463, %v462
        %v486 = vpack.c.bf16 %v465, %v464
        %v487 = vpack.c.bf16 %v467, %v466
        %v488 = vpack.c.bf16 %v469, %v468
        %v489 = vpack.c.bf16 %v471, %v470
        %v490 = vpack.c.bf16 %v473, %v472
        %v491 = vpack.c.bf16 %v475, %v474
        %v492 = vld [vmem:[%s314 + $0x8] sm:$0xff]
        %v493 = vld [vmem:[%s314 + $0x10] sm:$0xff]
        %v494 = vld [vmem:[%s314 + $0x28] sm:$0xff]
        %v495 = vld [vmem:[%s314 + $0x30] sm:$0xff]
        %v496 = vld [vmem:[%s314 + $0x48] sm:$0xff]
        %v497 = vld [vmem:[%s314 + $0x50] sm:$0xff]
        %v498 = vld [vmem:[%s314 + $0x68] sm:$0xff]
        %v499 = vld [vmem:[%s314 + $0x70] sm:$0xff]
        %v500 = vld [vmem:[%s314 + $0x88] sm:$0xff]
        %v501 = vld [vmem:[%s314 + $0x90] sm:$0xff]
        %v502 = vld [vmem:[%s314 + $0xa8] sm:$0xff]
        %v503 = vld [vmem:[%s314 + $0xb0] sm:$0xff]
        %v504 = vld [vmem:[%s314 + $0xc8] sm:$0xff]
        %v505 = vld [vmem:[%s314 + $0xd0] sm:$0xff]
        %v506 = vld [vmem:[%s314 + $0xe8] sm:$0xff]
        %v507 = vld [vmem:[%s314 + $0xf0] sm:$0xff]
        %v508 = vld [vmem:[%s314 + $0x108] sm:$0xff]
        %v509 = vld [vmem:[%s314 + $0x110] sm:$0xff]
        %v510 = vld [vmem:[%s314 + $0x128] sm:$0xff]
        %v511 = vld [vmem:[%s314 + $0x130] sm:$0xff]
        %v512 = vld [vmem:[%s314 + $0x148] sm:$0xff]
        %v513 = vld [vmem:[%s314 + $0x150] sm:$0xff]
        %v514 = vld [vmem:[%s314 + $0x168] sm:$0xff]
        %v515 = vld [vmem:[%s314 + $0x170] sm:$0xff]
        %v516 = vld [vmem:[%s314 + $0x188] sm:$0xff]
        %v517 = vld [vmem:[%s314 + $0x190] sm:$0xff]
        %v518 = vld [vmem:[%s314 + $0x1a8] sm:$0xff]
        %v519 = vld [vmem:[%s314 + $0x1b0] sm:$0xff]
        %v520 = vld [vmem:[%s314 + $0x1c8] sm:$0xff]
        %v521 = vld [vmem:[%s314 + $0x1d0] sm:$0xff]
        %v522 = vld [vmem:[%s314 + $0x1e8] sm:$0xff]
        %v523 = vld [vmem:[%s314 + $0x1f0] sm:$0xff]
        %v524 = vpack.c.bf16 %v493, %v492
        %v525 = vpack.c.bf16 %v495, %v494
        %v526 = vpack.c.bf16 %v497, %v496
        %v527 = vpack.c.bf16 %v499, %v498
        %v528 = vpack.c.bf16 %v501, %v500
        %v529 = vpack.c.bf16 %v503, %v502
        %v530 = vpack.c.bf16 %v505, %v504
        %v531 = vpack.c.bf16 %v507, %v506
        %v532 = vpack.c.bf16 %v509, %v508
        %v533 = vpack.c.bf16 %v511, %v510
        %v534 = vpack.c.bf16 %v513, %v512
        %v535 = vpack.c.bf16 %v515, %v514
        %v536 = vpack.c.bf16 %v517, %v516
        %v537 = vpack.c.bf16 %v519, %v518
        %v538 = vpack.c.bf16 %v521, %v520
        %v539 = vpack.c.bf16 %v523, %v522
        %v540 = vld [vmem:[#allocation6] sm:$0xf]
        %v541 = vld [vmem:[#allocation6 + $0x4] sm:$0xf]
        %v542 = vld [vmem:[#allocation6 + $0x8] sm:$0xf]
        %v543 = vld [vmem:[#allocation6 + $0xc] sm:$0xf]
        %v544 = vld [vmem:[#allocation6 + $0x10] sm:$0xf]
        %v545 = vld [vmem:[#allocation6 + $0x14] sm:$0xf]
        %v546 = vld [vmem:[#allocation6 + $0x18] sm:$0xf]
        %v547 = vld [vmem:[#allocation6 + $0x1c] sm:$0xf]
        %v548 = vld [vmem:[#allocation6 + $0x20] sm:$0xf]
        %v549 = vld [vmem:[#allocation6 + $0x24] sm:$0xf]
        %v550 = vld [vmem:[#allocation6 + $0x28] sm:$0xf]
        %v551 = vld [vmem:[#allocation6 + $0x2c] sm:$0xf]
        %v552 = vld [vmem:[#allocation6 + $0x30] sm:$0xf]
        %v553 = vld [vmem:[#allocation6 + $0x34] sm:$0xf]
        %v554 = vld [vmem:[#allocation6 + $0x38] sm:$0xf]
        %v555 = vld [vmem:[#allocation6 + $0x3c] sm:$0xf]
        %v556 = vld [vmem:[#allocation6 + $0x40] sm:$0xf]
        %v557 = vld [vmem:[#allocation6 + $0x44] sm:$0xf]
        %v558 = vld [vmem:[#allocation6 + $0x48] sm:$0xf]
        %v559 = vld [vmem:[#allocation6 + $0x4c] sm:$0xf]
        %v560 = vld [vmem:[#allocation6 + $0x50] sm:$0xf]
        %v561 = vld [vmem:[#allocation6 + $0x54] sm:$0xf]
        %v562 = vld [vmem:[#allocation6 + $0x58] sm:$0xf]
        %v563 = vld [vmem:[#allocation6 + $0x5c] sm:$0xf]
        %v564 = vld [vmem:[#allocation6 + $0x60] sm:$0xf]
        %v565 = vld [vmem:[#allocation6 + $0x64] sm:$0xf]
        %v566 = vld [vmem:[#allocation6 + $0x68] sm:$0xf]
        %v567 = vld [vmem:[#allocation6 + $0x6c] sm:$0xf]
        %v568 = vld [vmem:[#allocation6 + $0x70] sm:$0xf]
        %v569 = vld [vmem:[#allocation6 + $0x74] sm:$0xf]
        %v570 = vld [vmem:[#allocation6 + $0x78] sm:$0xf]
        %v571 = vld [vmem:[#allocation6 + $0x7c] sm:$0xf]
        %v572 = vld [vmem:[#allocation6 + $0x80] sm:$0xf]
        %v573 = vld [vmem:[#allocation6 + $0x84] sm:$0xf]
        %v574 = vld [vmem:[#allocation6 + $0x88] sm:$0xf]
        %v575 = vld [vmem:[#allocation6 + $0x8c] sm:$0xf]
        %v576 = vld [vmem:[#allocation6 + $0x90] sm:$0xf]
        %v577 = vld [vmem:[#allocation6 + $0x94] sm:$0xf]
        %v578 = vld [vmem:[#allocation6 + $0x98] sm:$0xf]
        %v579 = vld [vmem:[#allocation6 + $0x9c] sm:$0xf]
        %v580 = vld [vmem:[#allocation6 + $0xa0] sm:$0xf]
        %v581 = vld [vmem:[#allocation6 + $0xa4] sm:$0xf]
        %v582 = vld [vmem:[#allocation6 + $0xa8] sm:$0xf]
        %v583 = vld [vmem:[#allocation6 + $0xac] sm:$0xf]
        %v584 = vld [vmem:[#allocation6 + $0xb0] sm:$0xf]
        %v585 = vld [vmem:[#allocation6 + $0xb4] sm:$0xf]
        %v586 = vld [vmem:[#allocation6 + $0xb8] sm:$0xf]
        %v587 = vld [vmem:[#allocation6 + $0xbc] sm:$0xf]
        %v588 = vld [vmem:[#allocation6 + $0xc0] sm:$0xf]
        %v589 = vld [vmem:[#allocation6 + $0xc4] sm:$0xf]
        %v590 = vld [vmem:[#allocation6 + $0xc8] sm:$0xf]
        %v591 = vld [vmem:[#allocation6 + $0xcc] sm:$0xf]
        %v592 = vld [vmem:[#allocation6 + $0xd0] sm:$0xf]
        %v593 = vld [vmem:[#allocation6 + $0xd4] sm:$0xf]
        %v594 = vld [vmem:[#allocation6 + $0xd8] sm:$0xf]
        %v595 = vld [vmem:[#allocation6 + $0xdc] sm:$0xf]
        %v596 = vld [vmem:[#allocation6 + $0xe0] sm:$0xf]
        %v597 = vld [vmem:[#allocation6 + $0xe4] sm:$0xf]
        %v598 = vld [vmem:[#allocation6 + $0xe8] sm:$0xf]
        %v599 = vld [vmem:[#allocation6 + $0xec] sm:$0xf]
        %v600 = vld [vmem:[#allocation6 + $0xf0] sm:$0xf]
        %v601 = vld [vmem:[#allocation6 + $0xf4] sm:$0xf]
        %v602 = vld [vmem:[#allocation6 + $0xf8] sm:$0xf]
        %v603 = vld [vmem:[#allocation6 + $0xfc] sm:$0xf]
        %v605 = vlaneseq
        %v606 = vshrl.u32 %v605, 7
        %v607 = vsub.s32 0, %v606
        %v608 = vrot.slane %v347, %v607
        %v674 = vunpack.c.l.b16 %v540
        %v675 = vunpack.c.l.b16 %v541
        %v676 = vunpack.c.l.b16 %v542
        %v677 = vunpack.c.l.b16 %v543
        %v678 = vunpack.c.l.b16 %v544
        %v679 = vunpack.c.l.b16 %v545
        %v680 = vunpack.c.l.b16 %v546
        %v681 = vunpack.c.l.b16 %v547
        %v682 = vunpack.c.l.b16 %v548
        %v683 = vunpack.c.l.b16 %v549
        %v684 = vunpack.c.l.b16 %v550
        %v685 = vunpack.c.l.b16 %v551
        %v686 = vunpack.c.l.b16 %v552
        %v687 = vunpack.c.l.b16 %v553
        %v688 = vunpack.c.l.b16 %v554
        %v689 = vunpack.c.l.b16 %v555
        %v690 = vunpack.c.l.b16 %v556
        %v691 = vunpack.c.l.b16 %v557
        %v692 = vunpack.c.l.b16 %v558
        %v693 = vunpack.c.l.b16 %v559
        %v694 = vunpack.c.l.b16 %v560
        %v695 = vunpack.c.l.b16 %v561
        %v696 = vunpack.c.l.b16 %v562
        %v697 = vunpack.c.l.b16 %v563
        %v698 = vunpack.c.l.b16 %v564
        %v699 = vunpack.c.l.b16 %v565
        %v700 = vunpack.c.l.b16 %v566
        %v701 = vunpack.c.l.b16 %v567
        %v702 = vunpack.c.l.b16 %v568
        %v703 = vunpack.c.l.b16 %v569
        %v704 = vunpack.c.l.b16 %v570
        %v705 = vunpack.c.l.b16 %v571
        %v706 = vunpack.c.l.b16 %v572
        %v707 = vunpack.c.l.b16 %v573
        %v708 = vunpack.c.l.b16 %v574
        %v709 = vunpack.c.l.b16 %v575
        %v710 = vunpack.c.l.b16 %v576
        %v711 = vunpack.c.l.b16 %v577
        %v712 = vunpack.c.l.b16 %v578
        %v713 = vunpack.c.l.b16 %v579
        %v714 = vunpack.c.l.b16 %v580
        %v715 = vunpack.c.l.b16 %v581
        %v716 = vunpack.c.l.b16 %v582
        %v717 = vunpack.c.l.b16 %v583
        %v718 = vunpack.c.l.b16 %v584
        %v719 = vunpack.c.l.b16 %v585
        %v720 = vunpack.c.l.b16 %v586
        %v721 = vunpack.c.l.b16 %v587
        %v722 = vunpack.c.l.b16 %v588
        %v723 = vunpack.c.l.b16 %v589
        %v724 = vunpack.c.l.b16 %v590
        %v725 = vunpack.c.l.b16 %v591
        %v726 = vunpack.c.l.b16 %v592
        %v727 = vunpack.c.l.b16 %v593
        %v728 = vunpack.c.l.b16 %v594
        %v729 = vunpack.c.l.b16 %v595
        %v730 = vunpack.c.l.b16 %v596
        %v731 = vunpack.c.l.b16 %v597
        %v732 = vunpack.c.l.b16 %v598
        %v733 = vunpack.c.l.b16 %v599
        %v734 = vunpack.c.l.b16 %v600
        %v735 = vunpack.c.l.b16 %v601
        %v736 = vunpack.c.l.b16 %v602
        %v737 = vunpack.c.l.b16 %v603
        %v738 = vpack.c.b16 %v675, %v674
        %v739 = vpack.c.b16 %v677, %v676
        %v740 = vpack.c.b16 %v679, %v678
        %v741 = vpack.c.b16 %v681, %v680
        %v742 = vpack.c.b16 %v683, %v682
        %v743 = vpack.c.b16 %v685, %v684
        %v744 = vpack.c.b16 %v687, %v686
        %v745 = vpack.c.b16 %v689, %v688
        %v746 = vpack.c.b16 %v691, %v690
        %v747 = vpack.c.b16 %v693, %v692
        %v748 = vpack.c.b16 %v695, %v694
        %v749 = vpack.c.b16 %v697, %v696
        %v750 = vpack.c.b16 %v699, %v698
        %v751 = vpack.c.b16 %v701, %v700
        %v752 = vpack.c.b16 %v703, %v702
        %v753 = vpack.c.b16 %v705, %v704
        %v754 = vpack.c.b16 %v707, %v706
        %v755 = vpack.c.b16 %v709, %v708
        %v756 = vpack.c.b16 %v711, %v710
        %v757 = vpack.c.b16 %v713, %v712
        %v758 = vpack.c.b16 %v715, %v714
        %v759 = vpack.c.b16 %v717, %v716
        %v760 = vpack.c.b16 %v719, %v718
        %v761 = vpack.c.b16 %v721, %v720
        %v762 = vpack.c.b16 %v723, %v722
        %v763 = vpack.c.b16 %v725, %v724
        %v764 = vpack.c.b16 %v727, %v726
        %v765 = vpack.c.b16 %v729, %v728
        %v766 = vpack.c.b16 %v731, %v730
        %v767 = vpack.c.b16 %v733, %v732
        %v768 = vpack.c.b16 %v735, %v734
        %v769 = vpack.c.b16 %v737, %v736
        %802 = vmatprep.subr.bf16.mxu0 0
        %803 = vmatpush1.bf16.msra.mxu0 %v745
        %804 = vmatprep.subr.bf16.mxu0 0
        %805 = vmatpush1.bf16.msra.mxu0 %v744
        %806 = vmatprep.subr.bf16.mxu0 0
        %807 = vmatpush1.bf16.msra.mxu0 %v743
        %808 = vmatprep.subr.bf16.mxu0 0
        %809 = vmatpush1.bf16.msra.mxu0 %v742
        %810 = vmatprep.subr.bf16.mxu0 0
        %811 = vmatpush1.bf16.msra.mxu0 %v741
        %812 = vmatprep.subr.bf16.mxu0 0
        %813 = vmatpush1.bf16.msra.mxu0 %v740
        %814 = vmatprep.subr.bf16.mxu0 0
        %815 = vmatpush1.bf16.msra.mxu0 %v739
        %816 = vmatprep.subr.bf16.mxu0 0
        %817 = vmatpush1.bf16.msra.mxu0 %v738
        %818 = vmatprep.subr.bf16.mxu0 0
        %819 = vmatpush2.bf16.msra.mxu0 %v753
        %820 = vmatprep.subr.bf16.mxu0 0
        %821 = vmatpush2.bf16.msra.mxu0 %v752
        %822 = vmatprep.subr.bf16.mxu0 0
        %823 = vmatpush2.bf16.msra.mxu0 %v751
        %824 = vmatprep.subr.bf16.mxu0 0
        %825 = vmatpush2.bf16.msra.mxu0 %v750
        %826 = vmatprep.subr.bf16.mxu0 0
        %827 = vmatpush2.bf16.msra.mxu0 %v749
        %828 = vmatprep.subr.bf16.mxu0 0
        %829 = vmatpush2.bf16.msra.mxu0 %v748
        %830 = vmatprep.subr.bf16.mxu0 0
        %831 = vmatpush2.bf16.msra.mxu0 %v747
        %832 = vmatprep.subr.bf16.mxu0 0
        %833 = vmatpush2.bf16.msra.mxu0 %v746
        %834 = vmatprep.mubr.bf16.mxu0 %v428
        %835 = vmatmul.mubr.bf16.gmra.mxu0 %v380
        %v836 = vpop.f32.mrf.mxu0
        %v837 = vadd.f32 %v608, %v836
        %v838 = vpop.f32.mrf.mxu0
        %v839 = vpop.f32.mrf.mxu0
        %v840 = vadd.f32 %v608, %v839
        %v841 = vpop.f32.mrf.mxu0
        %842 = vmatprep.mubr.bf16.mxu0 %v429
        %843 = vmatmul.mubr.bf16.gmra.mxu0 %v381
        %v844 = vpop.f32.mrf.mxu0
        %v845 = vadd.f32 %v608, %v844
        %v846 = vpop.f32.mrf.mxu0
        %v847 = vpop.f32.mrf.mxu0
        %v848 = vadd.f32 %v608, %v847
        %v849 = vpop.f32.mrf.mxu0
        %850 = vmatprep.mubr.bf16.mxu0 %v430
        %851 = vmatmul.mubr.bf16.gmra.mxu0 %v382
        %v852 = vpop.f32.mrf.mxu0
        %v853 = vadd.f32 %v608, %v852
        %v854 = vpop.f32.mrf.mxu0
        %v855 = vpop.f32.mrf.mxu0
        %v856 = vadd.f32 %v608, %v855
        %v857 = vpop.f32.mrf.mxu0
        %858 = vmatprep.mubr.bf16.mxu0 %v431
        %859 = vmatmul.mubr.bf16.gmra.mxu0 %v383
        %v860 = vpop.f32.mrf.mxu0
        %v861 = vadd.f32 %v608, %v860
        %v862 = vpop.f32.mrf.mxu0
        %v863 = vpop.f32.mrf.mxu0
        %v864 = vadd.f32 %v608, %v863
        %v865 = vpop.f32.mrf.mxu0
        %866 = vmatprep.mubr.bf16.mxu0 %v432
        %867 = vmatmul.mubr.bf16.gmra.mxu0 %v384
        %v868 = vpop.f32.mrf.mxu0
        %v869 = vadd.f32 %v608, %v868
        %v870 = vpop.f32.mrf.mxu0
        %v871 = vpop.f32.mrf.mxu0
        %v872 = vadd.f32 %v608, %v871
        %v873 = vpop.f32.mrf.mxu0
        %874 = vmatprep.mubr.bf16.mxu0 %v433
        %875 = vmatmul.mubr.bf16.gmra.mxu0 %v385
        %v876 = vpop.f32.mrf.mxu0
        %v877 = vadd.f32 %v608, %v876
        %v878 = vpop.f32.mrf.mxu0
        %v879 = vpop.f32.mrf.mxu0
        %v880 = vadd.f32 %v608, %v879
        %v881 = vpop.f32.mrf.mxu0
        %882 = vmatprep.mubr.bf16.mxu0 %v434
        %883 = vmatmul.mubr.bf16.gmra.mxu0 %v386
        %v884 = vpop.f32.mrf.mxu0
        %v885 = vadd.f32 %v608, %v884
        %v886 = vpop.f32.mrf.mxu0
        %v887 = vpop.f32.mrf.mxu0
        %v888 = vadd.f32 %v608, %v887
        %v889 = vpop.f32.mrf.mxu0
        %890 = vmatprep.mubr.bf16.mxu0 %v435
        %891 = vmatmul.mubr.bf16.gmra.mxu0 %v387
        %v892 = vpop.f32.mrf.mxu0
        %v893 = vadd.f32 %v608, %v892
        %v894 = vpop.f32.mrf.mxu0
        %v895 = vpop.f32.mrf.mxu0
        %v896 = vadd.f32 %v608, %v895
        %v897 = vpop.f32.mrf.mxu0
        %898 = vmatprep.mubr.bf16.mxu0 %v436
        %899 = vmatmul.mubr.bf16.gmra.mxu0 %v388
        %v900 = vpop.f32.mrf.mxu0
        %v901 = vadd.f32 %v608, %v900
        %v902 = vpop.f32.mrf.mxu0
        %v903 = vpop.f32.mrf.mxu0
        %v904 = vadd.f32 %v608, %v903
        %v905 = vpop.f32.mrf.mxu0
        %906 = vmatprep.mubr.bf16.mxu0 %v437
        %907 = vmatmul.mubr.bf16.gmra.mxu0 %v389
        %v908 = vpop.f32.mrf.mxu0
        %v909 = vadd.f32 %v608, %v908
        %v910 = vpop.f32.mrf.mxu0
        %v911 = vpop.f32.mrf.mxu0
        %v912 = vadd.f32 %v608, %v911
        %v913 = vpop.f32.mrf.mxu0
        %914 = vmatprep.mubr.bf16.mxu0 %v438
        %915 = vmatmul.mubr.bf16.gmra.mxu0 %v390
        %v916 = vpop.f32.mrf.mxu0
        %v917 = vadd.f32 %v608, %v916
        %v918 = vpop.f32.mrf.mxu0
        %v919 = vpop.f32.mrf.mxu0
        %v920 = vadd.f32 %v608, %v919
        %v921 = vpop.f32.mrf.mxu0
        %922 = vmatprep.mubr.bf16.mxu0 %v439
        %923 = vmatmul.mubr.bf16.gmra.mxu0 %v391
        %v924 = vpop.f32.mrf.mxu0
        %v925 = vadd.f32 %v608, %v924
        %v926 = vpop.f32.mrf.mxu0
        %v927 = vpop.f32.mrf.mxu0
        %v928 = vadd.f32 %v608, %v927
        %v929 = vpop.f32.mrf.mxu0
        %930 = vmatprep.mubr.bf16.mxu0 %v440
        %931 = vmatmul.mubr.bf16.gmra.mxu0 %v392
        %v932 = vpop.f32.mrf.mxu0
        %v933 = vadd.f32 %v608, %v932
        %v934 = vpop.f32.mrf.mxu0
        %v935 = vpop.f32.mrf.mxu0
        %v936 = vadd.f32 %v608, %v935
        %v937 = vpop.f32.mrf.mxu0
        %938 = vmatprep.mubr.bf16.mxu0 %v441
        %939 = vmatmul.mubr.bf16.gmra.mxu0 %v393
        %v940 = vpop.f32.mrf.mxu0
        %v941 = vadd.f32 %v608, %v940
        %v942 = vpop.f32.mrf.mxu0
        %v943 = vpop.f32.mrf.mxu0
        %v944 = vadd.f32 %v608, %v943
        %v945 = vpop.f32.mrf.mxu0
        %946 = vmatprep.mubr.bf16.mxu0 %v442
        %947 = vmatmul.mubr.bf16.gmra.mxu0 %v394
        %v948 = vpop.f32.mrf.mxu0
        %v949 = vadd.f32 %v608, %v948
        %v950 = vpop.f32.mrf.mxu0
        %v951 = vpop.f32.mrf.mxu0
        %v952 = vadd.f32 %v608, %v951
        %v953 = vpop.f32.mrf.mxu0
        %954 = vmatprep.mubr.bf16.mxu0 %v443
        %955 = vmatmul.mubr.bf16.gmra.mxu0 %v395
        %v956 = vpop.f32.mrf.mxu0
        %v957 = vadd.f32 %v608, %v956
        %v958 = vpop.f32.mrf.mxu0
        %v959 = vpop.f32.mrf.mxu0
        %v960 = vadd.f32 %v608, %v959
        %v961 = vpop.f32.mrf.mxu0
        %962 = vdwg.mxu0
        %963 = vmatprep.subr.bf16.mxu0 0
        %964 = vmatpush1.bf16.msra.mxu0 %v761
        %965 = vmatprep.subr.bf16.mxu0 0
        %966 = vmatpush1.bf16.msra.mxu0 %v760
        %967 = vmatprep.subr.bf16.mxu0 0
        %968 = vmatpush1.bf16.msra.mxu0 %v759
        %969 = vmatprep.subr.bf16.mxu0 0
        %970 = vmatpush1.bf16.msra.mxu0 %v758
        %971 = vmatprep.subr.bf16.mxu0 0
        %972 = vmatpush1.bf16.msra.mxu0 %v757
        %973 = vmatprep.subr.bf16.mxu0 0
        %974 = vmatpush1.bf16.msra.mxu0 %v756
        %975 = vmatprep.subr.bf16.mxu0 0
        %976 = vmatpush1.bf16.msra.mxu0 %v755
        %977 = vmatprep.subr.bf16.mxu0 0
        %978 = vmatpush1.bf16.msra.mxu0 %v754
        %979 = vmatprep.subr.bf16.mxu0 0
        %980 = vmatpush2.bf16.msra.mxu0 %v769
        %981 = vmatprep.subr.bf16.mxu0 0
        %982 = vmatpush2.bf16.msra.mxu0 %v768
        %983 = vmatprep.subr.bf16.mxu0 0
        %984 = vmatpush2.bf16.msra.mxu0 %v767
        %985 = vmatprep.subr.bf16.mxu0 0
        %986 = vmatpush2.bf16.msra.mxu0 %v766
        %987 = vmatprep.subr.bf16.mxu0 0
        %988 = vmatpush2.bf16.msra.mxu0 %v765
        %989 = vmatprep.subr.bf16.mxu0 0
        %990 = vmatpush2.bf16.msra.mxu0 %v764
        %991 = vmatprep.subr.bf16.mxu0 0
        %992 = vmatpush2.bf16.msra.mxu0 %v763
        %993 = vmatprep.subr.bf16.mxu0 0
        %994 = vmatpush2.bf16.msra.mxu0 %v762
        %995 = vmatprep.mubr.bf16.mxu0 %v524
        %996 = vmatmul.mubr.bf16.gmra.mxu0 %v476
        %v997 = vpop.f32.mrf.mxu0
        %v998 = vadd.f32 %v837, %v997
        %v999 = vpop.f32.mrf.mxu0
        %v1000 = vpop.f32.mrf.mxu0
        %v1001 = vadd.f32 %v840, %v1000
        %v1002 = vpop.f32.mrf.mxu0
        %1003 = vmatprep.mubr.bf16.mxu0 %v525
        %1004 = vmatmul.mubr.bf16.gmra.mxu0 %v477
        %v1005 = vpop.f32.mrf.mxu0
        %v1006 = vadd.f32 %v845, %v1005
        %v1007 = vpop.f32.mrf.mxu0
        %v1008 = vpop.f32.mrf.mxu0
        %v1009 = vadd.f32 %v848, %v1008
        %v1010 = vpop.f32.mrf.mxu0
        %1011 = vmatprep.mubr.bf16.mxu0 %v526
        %1012 = vmatmul.mubr.bf16.gmra.mxu0 %v478
        %v1013 = vpop.f32.mrf.mxu0
        %v1014 = vadd.f32 %v853, %v1013
        %v1015 = vpop.f32.mrf.mxu0
        %v1016 = vpop.f32.mrf.mxu0
        %v1017 = vadd.f32 %v856, %v1016
        %v1018 = vpop.f32.mrf.mxu0
        %1019 = vmatprep.mubr.bf16.mxu0 %v527
        %1020 = vmatmul.mubr.bf16.gmra.mxu0 %v479
        %v1021 = vpop.f32.mrf.mxu0
        %v1022 = vadd.f32 %v861, %v1021
        %v1023 = vpop.f32.mrf.mxu0
        %v1024 = vpop.f32.mrf.mxu0
        %v1025 = vadd.f32 %v864, %v1024
        %v1026 = vpop.f32.mrf.mxu0
        %1027 = vmatprep.mubr.bf16.mxu0 %v528
        %1028 = vmatmul.mubr.bf16.gmra.mxu0 %v480
        %v1029 = vpop.f32.mrf.mxu0
        %v1030 = vadd.f32 %v869, %v1029
        %v1031 = vpop.f32.mrf.mxu0
        %v1032 = vpop.f32.mrf.mxu0
        %v1033 = vadd.f32 %v872, %v1032
        %v1034 = vpop.f32.mrf.mxu0
        %1035 = vmatprep.mubr.bf16.mxu0 %v529
        %1036 = vmatmul.mubr.bf16.gmra.mxu0 %v481
        %v1037 = vpop.f32.mrf.mxu0
        %v1038 = vadd.f32 %v877, %v1037
        %v1039 = vpop.f32.mrf.mxu0
        %v1040 = vpop.f32.mrf.mxu0
        %v1041 = vadd.f32 %v880, %v1040
        %v1042 = vpop.f32.mrf.mxu0
        %1043 = vmatprep.mubr.bf16.mxu0 %v530
        %1044 = vmatmul.mubr.bf16.gmra.mxu0 %v482
        %v1045 = vpop.f32.mrf.mxu0
        %v1046 = vadd.f32 %v885, %v1045
        %v1047 = vpop.f32.mrf.mxu0
        %v1048 = vpop.f32.mrf.mxu0
        %v1049 = vadd.f32 %v888, %v1048
        %v1050 = vpop.f32.mrf.mxu0
        %1051 = vmatprep.mubr.bf16.mxu0 %v531
        %1052 = vmatmul.mubr.bf16.gmra.mxu0 %v483
        %v1053 = vpop.f32.mrf.mxu0
        %v1054 = vadd.f32 %v893, %v1053
        %v1055 = vpop.f32.mrf.mxu0
        %v1056 = vpop.f32.mrf.mxu0
        %v1057 = vadd.f32 %v896, %v1056
        %v1058 = vpop.f32.mrf.mxu0
        %1059 = vmatprep.mubr.bf16.mxu0 %v532
        %1060 = vmatmul.mubr.bf16.gmra.mxu0 %v484
        %v1061 = vpop.f32.mrf.mxu0
        %v1062 = vadd.f32 %v901, %v1061
        %v1063 = vpop.f32.mrf.mxu0
        %v1064 = vpop.f32.mrf.mxu0
        %v1065 = vadd.f32 %v904, %v1064
        %v1066 = vpop.f32.mrf.mxu0
        %1067 = vmatprep.mubr.bf16.mxu0 %v533
        %1068 = vmatmul.mubr.bf16.gmra.mxu0 %v485
        %v1069 = vpop.f32.mrf.mxu0
        %v1070 = vadd.f32 %v909, %v1069
        %v1071 = vpop.f32.mrf.mxu0
        %v1072 = vpop.f32.mrf.mxu0
        %v1073 = vadd.f32 %v912, %v1072
        %v1074 = vpop.f32.mrf.mxu0
        %1075 = vmatprep.mubr.bf16.mxu0 %v534
        %1076 = vmatmul.mubr.bf16.gmra.mxu0 %v486
        %v1077 = vpop.f32.mrf.mxu0
        %v1078 = vadd.f32 %v917, %v1077
        %v1079 = vpop.f32.mrf.mxu0
        %v1080 = vpop.f32.mrf.mxu0
        %v1081 = vadd.f32 %v920, %v1080
        %v1082 = vpop.f32.mrf.mxu0
        %1083 = vmatprep.mubr.bf16.mxu0 %v535
        %1084 = vmatmul.mubr.bf16.gmra.mxu0 %v487
        %v1085 = vpop.f32.mrf.mxu0
        %v1086 = vadd.f32 %v925, %v1085
        %v1087 = vpop.f32.mrf.mxu0
        %v1088 = vpop.f32.mrf.mxu0
        %v1089 = vadd.f32 %v928, %v1088
        %v1090 = vpop.f32.mrf.mxu0
        %1091 = vmatprep.mubr.bf16.mxu0 %v536
        %1092 = vmatmul.mubr.bf16.gmra.mxu0 %v488
        %v1093 = vpop.f32.mrf.mxu0
        %v1094 = vadd.f32 %v933, %v1093
        %v1095 = vpop.f32.mrf.mxu0
        %v1096 = vpop.f32.mrf.mxu0
        %v1097 = vadd.f32 %v936, %v1096
        %v1098 = vpop.f32.mrf.mxu0
        %1099 = vmatprep.mubr.bf16.mxu0 %v537
        %1100 = vmatmul.mubr.bf16.gmra.mxu0 %v489
        %v1101 = vpop.f32.mrf.mxu0
        %v1102 = vadd.f32 %v941, %v1101
        %v1103 = vpop.f32.mrf.mxu0
        %v1104 = vpop.f32.mrf.mxu0
        %v1105 = vadd.f32 %v944, %v1104
        %v1106 = vpop.f32.mrf.mxu0
        %1107 = vmatprep.mubr.bf16.mxu0 %v538
        %1108 = vmatmul.mubr.bf16.gmra.mxu0 %v490
        %v1109 = vpop.f32.mrf.mxu0
        %v1110 = vadd.f32 %v949, %v1109
        %v1111 = vpop.f32.mrf.mxu0
        %v1112 = vpop.f32.mrf.mxu0
        %v1113 = vadd.f32 %v952, %v1112
        %v1114 = vpop.f32.mrf.mxu0
        %1115 = vmatprep.mubr.bf16.mxu0 %v539
        %1116 = vmatmul.mubr.bf16.gmra.mxu0 %v491
        %v1117 = vpop.f32.mrf.mxu0
        %v1118 = vadd.f32 %v957, %v1117
        %v1119 = vpop.f32.mrf.mxu0
        %v1120 = vpop.f32.mrf.mxu0
        %v1121 = vadd.f32 %v960, %v1120
        %v1122 = vpop.f32.mrf.mxu0
        %1123 = vdwg.mxu0
        %v1124 = vld [vmem:[#allocation2 + $0x9] sm:$0xff]
        %v1125 = vld [vmem:[#allocation2 + $0x11] sm:$0xff]
        %v1126 = vld [vmem:[#allocation2 + $0x29] sm:$0xff]
        %v1127 = vld [vmem:[#allocation2 + $0x31] sm:$0xff]
        %v1128 = vld [vmem:[#allocation2 + $0x49] sm:$0xff]
        %v1129 = vld [vmem:[#allocation2 + $0x51] sm:$0xff]
        %v1130 = vld [vmem:[#allocation2 + $0x69] sm:$0xff]
        %v1131 = vld [vmem:[#allocation2 + $0x71] sm:$0xff]
        %v1132 = vld [vmem:[#allocation2 + $0x89] sm:$0xff]
        %v1133 = vld [vmem:[#allocation2 + $0x91] sm:$0xff]
        %v1134 = vld [vmem:[#allocation2 + $0xa9] sm:$0xff]
        %v1135 = vld [vmem:[#allocation2 + $0xb1] sm:$0xff]
        %v1136 = vld [vmem:[#allocation2 + $0xc9] sm:$0xff]
        %v1137 = vld [vmem:[#allocation2 + $0xd1] sm:$0xff]
        %v1138 = vld [vmem:[#allocation2 + $0xe9] sm:$0xff]
        %v1139 = vld [vmem:[#allocation2 + $0xf1] sm:$0xff]
        %v1140 = vld [vmem:[#allocation2 + $0x109] sm:$0xff]
        %v1141 = vld [vmem:[#allocation2 + $0x111] sm:$0xff]
        %v1142 = vld [vmem:[#allocation2 + $0x129] sm:$0xff]
        %v1143 = vld [vmem:[#allocation2 + $0x131] sm:$0xff]
        %v1144 = vld [vmem:[#allocation2 + $0x149] sm:$0xff]
        %v1145 = vld [vmem:[#allocation2 + $0x151] sm:$0xff]
        %v1146 = vld [vmem:[#allocation2 + $0x169] sm:$0xff]
        %v1147 = vld [vmem:[#allocation2 + $0x171] sm:$0xff]
        %v1148 = vld [vmem:[#allocation2 + $0x189] sm:$0xff]
        %v1149 = vld [vmem:[#allocation2 + $0x191] sm:$0xff]
        %v1150 = vld [vmem:[#allocation2 + $0x1a9] sm:$0xff]
        %v1151 = vld [vmem:[#allocation2 + $0x1b1] sm:$0xff]
        %v1152 = vld [vmem:[#allocation2 + $0x1c9] sm:$0xff]
        %v1153 = vld [vmem:[#allocation2 + $0x1d1] sm:$0xff]
        %v1154 = vld [vmem:[#allocation2 + $0x1e9] sm:$0xff]
        %v1155 = vld [vmem:[#allocation2 + $0x1f1] sm:$0xff]
        %v1156 = vpack.c.bf16 %v1125, %v1124
        %v1157 = vpack.c.bf16 %v1127, %v1126
        %v1158 = vpack.c.bf16 %v1129, %v1128
        %v1159 = vpack.c.bf16 %v1131, %v1130
        %v1160 = vpack.c.bf16 %v1133, %v1132
        %v1161 = vpack.c.bf16 %v1135, %v1134
        %v1162 = vpack.c.bf16 %v1137, %v1136
        %v1163 = vpack.c.bf16 %v1139, %v1138
        %v1164 = vpack.c.bf16 %v1141, %v1140
        %v1165 = vpack.c.bf16 %v1143, %v1142
        %v1166 = vpack.c.bf16 %v1145, %v1144
        %v1167 = vpack.c.bf16 %v1147, %v1146
        %v1168 = vpack.c.bf16 %v1149, %v1148
        %v1169 = vpack.c.bf16 %v1151, %v1150
        %v1170 = vpack.c.bf16 %v1153, %v1152
        %v1171 = vpack.c.bf16 %v1155, %v1154
        %v1172 = vld [vmem:[%s314 + $0x9] sm:$0xff]
        %v1173 = vld [vmem:[%s314 + $0x11] sm:$0xff]
        %v1174 = vld [vmem:[%s314 + $0x29] sm:$0xff]
        %v1175 = vld [vmem:[%s314 + $0x31] sm:$0xff]
        %v1176 = vld [vmem:[%s314 + $0x49] sm:$0xff]
        %v1177 = vld [vmem:[%s314 + $0x51] sm:$0xff]
        %v1178 = vld [vmem:[%s314 + $0x69] sm:$0xff]
        %v1179 = vld [vmem:[%s314 + $0x71] sm:$0xff]
        %v1180 = vld [vmem:[%s314 + $0x89] sm:$0xff]
        %v1181 = vld [vmem:[%s314 + $0x91] sm:$0xff]
        %v1182 = vld [vmem:[%s314 + $0xa9] sm:$0xff]
        %v1183 = vld [vmem:[%s314 + $0xb1] sm:$0xff]
        %v1184 = vld [vmem:[%s314 + $0xc9] sm:$0xff]
        %v1185 = vld [vmem:[%s314 + $0xd1] sm:$0xff]
        %v1186 = vld [vmem:[%s314 + $0xe9] sm:$0xff]
        %v1187 = vld [vmem:[%s314 + $0xf1] sm:$0xff]
        %v1188 = vld [vmem:[%s314 + $0x109] sm:$0xff]
        %v1189 = vld [vmem:[%s314 + $0x111] sm:$0xff]
        %v1190 = vld [vmem:[%s314 + $0x129] sm:$0xff]
        %v1191 = vld [vmem:[%s314 + $0x131] sm:$0xff]
        %v1192 = vld [vmem:[%s314 + $0x149] sm:$0xff]
        %v1193 = vld [vmem:[%s314 + $0x151] sm:$0xff]
        %v1194 = vld [vmem:[%s314 + $0x169] sm:$0xff]
        %v1195 = vld [vmem:[%s314 + $0x171] sm:$0xff]
        %v1196 = vld [vmem:[%s314 + $0x189] sm:$0xff]
        %v1197 = vld [vmem:[%s314 + $0x191] sm:$0xff]
        %v1198 = vld [vmem:[%s314 + $0x1a9] sm:$0xff]
        %v1199 = vld [vmem:[%s314 + $0x1b1] sm:$0xff]
        %v1200 = vld [vmem:[%s314 + $0x1c9] sm:$0xff]
        %v1201 = vld [vmem:[%s314 + $0x1d1] sm:$0xff]
        %v1202 = vld [vmem:[%s314 + $0x1e9] sm:$0xff]
        %v1203 = vld [vmem:[%s314 + $0x1f1] sm:$0xff]
        %v1204 = vpack.c.bf16 %v1173, %v1172
        %v1205 = vpack.c.bf16 %v1175, %v1174
        %v1206 = vpack.c.bf16 %v1177, %v1176
        %v1207 = vpack.c.bf16 %v1179, %v1178
        %v1208 = vpack.c.bf16 %v1181, %v1180
        %v1209 = vpack.c.bf16 %v1183, %v1182
        %v1210 = vpack.c.bf16 %v1185, %v1184
        %v1211 = vpack.c.bf16 %v1187, %v1186
        %v1212 = vpack.c.bf16 %v1189, %v1188
        %v1213 = vpack.c.bf16 %v1191, %v1190
        %v1214 = vpack.c.bf16 %v1193, %v1192
        %v1215 = vpack.c.bf16 %v1195, %v1194
        %v1216 = vpack.c.bf16 %v1197, %v1196
        %v1217 = vpack.c.bf16 %v1199, %v1198
        %v1218 = vpack.c.bf16 %v1201, %v1200
        %v1219 = vpack.c.bf16 %v1203, %v1202
        %s1220 = scalar_lea.vmem [#allocation6], 256
        %v1221 = vld [vmem:[%s1220] sm:$0xf]
        %v1222 = vld [vmem:[%s1220 + $0x4] sm:$0xf]
        %v1223 = vld [vmem:[%s1220 + $0x8] sm:$0xf]
        %v1224 = vld [vmem:[%s1220 + $0xc] sm:$0xf]
        %v1225 = vld [vmem:[%s1220 + $0x10] sm:$0xf]
        %v1226 = vld [vmem:[%s1220 + $0x14] sm:$0xf]
        %v1227 = vld [vmem:[%s1220 + $0x18] sm:$0xf]
        %v1228 = vld [vmem:[%s1220 + $0x1c] sm:$0xf]
        %v1229 = vld [vmem:[%s1220 + $0x20] sm:$0xf]
        %v1230 = vld [vmem:[%s1220 + $0x24] sm:$0xf]
        %v1231 = vld [vmem:[%s1220 + $0x28] sm:$0xf]
        %v1232 = vld [vmem:[%s1220 + $0x2c] sm:$0xf]
        %v1233 = vld [vmem:[%s1220 + $0x30] sm:$0xf]
        %v1234 = vld [vmem:[%s1220 + $0x34] sm:$0xf]
        %v1235 = vld [vmem:[%s1220 + $0x38] sm:$0xf]
        %v1236 = vld [vmem:[%s1220 + $0x3c] sm:$0xf]
        %v1237 = vld [vmem:[%s1220 + $0x40] sm:$0xf]
        %v1238 = vld [vmem:[%s1220 + $0x44] sm:$0xf]
        %v1239 = vld [vmem:[%s1220 + $0x48] sm:$0xf]
        %v1240 = vld [vmem:[%s1220 + $0x4c] sm:$0xf]
        %v1241 = vld [vmem:[%s1220 + $0x50] sm:$0xf]
        %v1242 = vld [vmem:[%s1220 + $0x54] sm:$0xf]
        %v1243 = vld [vmem:[%s1220 + $0x58] sm:$0xf]
        %v1244 = vld [vmem:[%s1220 + $0x5c] sm:$0xf]
        %v1245 = vld [vmem:[%s1220 + $0x60] sm:$0xf]
        %v1246 = vld [vmem:[%s1220 + $0x64] sm:$0xf]
        %v1247 = vld [vmem:[%s1220 + $0x68] sm:$0xf]
        %v1248 = vld [vmem:[%s1220 + $0x6c] sm:$0xf]
        %v1249 = vld [vmem:[%s1220 + $0x70] sm:$0xf]
        %v1250 = vld [vmem:[%s1220 + $0x74] sm:$0xf]
        %v1251 = vld [vmem:[%s1220 + $0x78] sm:$0xf]
        %v1252 = vld [vmem:[%s1220 + $0x7c] sm:$0xf]
        %v1253 = vld [vmem:[%s1220 + $0x80] sm:$0xf]
        %v1254 = vld [vmem:[%s1220 + $0x84] sm:$0xf]
        %v1255 = vld [vmem:[%s1220 + $0x88] sm:$0xf]
        %v1256 = vld [vmem:[%s1220 + $0x8c] sm:$0xf]
        %v1257 = vld [vmem:[%s1220 + $0x90] sm:$0xf]
        %v1258 = vld [vmem:[%s1220 + $0x94] sm:$0xf]
        %v1259 = vld [vmem:[%s1220 + $0x98] sm:$0xf]
        %v1260 = vld [vmem:[%s1220 + $0x9c] sm:$0xf]
        %v1261 = vld [vmem:[%s1220 + $0xa0] sm:$0xf]
        %v1262 = vld [vmem:[%s1220 + $0xa4] sm:$0xf]
        %v1263 = vld [vmem:[%s1220 + $0xa8] sm:$0xf]
        %v1264 = vld [vmem:[%s1220 + $0xac] sm:$0xf]
        %v1265 = vld [vmem:[%s1220 + $0xb0] sm:$0xf]
        %v1266 = vld [vmem:[%s1220 + $0xb4] sm:$0xf]
        %v1267 = vld [vmem:[%s1220 + $0xb8] sm:$0xf]
        %v1268 = vld [vmem:[%s1220 + $0xbc] sm:$0xf]
        %v1269 = vld [vmem:[%s1220 + $0xc0] sm:$0xf]
        %v1270 = vld [vmem:[%s1220 + $0xc4] sm:$0xf]
        %v1271 = vld [vmem:[%s1220 + $0xc8] sm:$0xf]
        %v1272 = vld [vmem:[%s1220 + $0xcc] sm:$0xf]
        %v1273 = vld [vmem:[%s1220 + $0xd0] sm:$0xf]
        %v1274 = vld [vmem:[%s1220 + $0xd4] sm:$0xf]
        %v1275 = vld [vmem:[%s1220 + $0xd8] sm:$0xf]
        %v1276 = vld [vmem:[%s1220 + $0xdc] sm:$0xf]
        %v1277 = vld [vmem:[%s1220 + $0xe0] sm:$0xf]
        %v1278 = vld [vmem:[%s1220 + $0xe4] sm:$0xf]
        %v1279 = vld [vmem:[%s1220 + $0xe8] sm:$0xf]
        %v1280 = vld [vmem:[%s1220 + $0xec] sm:$0xf]
        %v1281 = vld [vmem:[%s1220 + $0xf0] sm:$0xf]
        %v1282 = vld [vmem:[%s1220 + $0xf4] sm:$0xf]
        %v1283 = vld [vmem:[%s1220 + $0xf8] sm:$0xf]
        %v1284 = vld [vmem:[%s1220 + $0xfc] sm:$0xf]
        %v1349 = vunpack.c.l.b16 %v1221
        %v1350 = vunpack.c.l.b16 %v1222
        %v1351 = vunpack.c.l.b16 %v1223
        %v1352 = vunpack.c.l.b16 %v1224
        %v1353 = vunpack.c.l.b16 %v1225
        %v1354 = vunpack.c.l.b16 %v1226
        %v1355 = vunpack.c.l.b16 %v1227
        %v1356 = vunpack.c.l.b16 %v1228
        %v1357 = vunpack.c.l.b16 %v1229
        %v1358 = vunpack.c.l.b16 %v1230
        %v1359 = vunpack.c.l.b16 %v1231
        %v1360 = vunpack.c.l.b16 %v1232
        %v1361 = vunpack.c.l.b16 %v1233
        %v1362 = vunpack.c.l.b16 %v1234
        %v1363 = vunpack.c.l.b16 %v1235
        %v1364 = vunpack.c.l.b16 %v1236
        %v1365 = vunpack.c.l.b16 %v1237
        %v1366 = vunpack.c.l.b16 %v1238
        %v1367 = vunpack.c.l.b16 %v1239
        %v1368 = vunpack.c.l.b16 %v1240
        %v1369 = vunpack.c.l.b16 %v1241
        %v1370 = vunpack.c.l.b16 %v1242
        %v1371 = vunpack.c.l.b16 %v1243
        %v1372 = vunpack.c.l.b16 %v1244
        %v1373 = vunpack.c.l.b16 %v1245
        %v1374 = vunpack.c.l.b16 %v1246
        %v1375 = vunpack.c.l.b16 %v1247
        %v1376 = vunpack.c.l.b16 %v1248
        %v1377 = vunpack.c.l.b16 %v1249
        %v1378 = vunpack.c.l.b16 %v1250
        %v1379 = vunpack.c.l.b16 %v1251
        %v1380 = vunpack.c.l.b16 %v1252
        %v1381 = vunpack.c.l.b16 %v1253
        %v1382 = vunpack.c.l.b16 %v1254
        %v1383 = vunpack.c.l.b16 %v1255
        %v1384 = vunpack.c.l.b16 %v1256
        %v1385 = vunpack.c.l.b16 %v1257
        %v1386 = vunpack.c.l.b16 %v1258
        %v1387 = vunpack.c.l.b16 %v1259
        %v1388 = vunpack.c.l.b16 %v1260
        %v1389 = vunpack.c.l.b16 %v1261
        %v1390 = vunpack.c.l.b16 %v1262
        %v1391 = vunpack.c.l.b16 %v1263
        %v1392 = vunpack.c.l.b16 %v1264
        %v1393 = vunpack.c.l.b16 %v1265
        %v1394 = vunpack.c.l.b16 %v1266
        %v1395 = vunpack.c.l.b16 %v1267
        %v1396 = vunpack.c.l.b16 %v1268
        %v1397 = vunpack.c.l.b16 %v1269
        %v1398 = vunpack.c.l.b16 %v1270
        %v1399 = vunpack.c.l.b16 %v1271
        %v1400 = vunpack.c.l.b16 %v1272
        %v1401 = vunpack.c.l.b16 %v1273
        %v1402 = vunpack.c.l.b16 %v1274
        %v1403 = vunpack.c.l.b16 %v1275
        %v1404 = vunpack.c.l.b16 %v1276
        %v1405 = vunpack.c.l.b16 %v1277
        %v1406 = vunpack.c.l.b16 %v1278
        %v1407 = vunpack.c.l.b16 %v1279
        %v1408 = vunpack.c.l.b16 %v1280
        %v1409 = vunpack.c.l.b16 %v1281
        %v1410 = vunpack.c.l.b16 %v1282
        %v1411 = vunpack.c.l.b16 %v1283
        %v1412 = vunpack.c.l.b16 %v1284
        %v1413 = vpack.c.b16 %v1350, %v1349
        %v1414 = vpack.c.b16 %v1352, %v1351
        %v1415 = vpack.c.b16 %v1354, %v1353
        %v1416 = vpack.c.b16 %v1356, %v1355
        %v1417 = vpack.c.b16 %v1358, %v1357
        %v1418 = vpack.c.b16 %v1360, %v1359
        %v1419 = vpack.c.b16 %v1362, %v1361
        %v1420 = vpack.c.b16 %v1364, %v1363
        %v1421 = vpack.c.b16 %v1366, %v1365
        %v1422 = vpack.c.b16 %v1368, %v1367
        %v1423 = vpack.c.b16 %v1370, %v1369
        %v1424 = vpack.c.b16 %v1372, %v1371
        %v1425 = vpack.c.b16 %v1374, %v1373
        %v1426 = vpack.c.b16 %v1376, %v1375
        %v1427 = vpack.c.b16 %v1378, %v1377
        %v1428 = vpack.c.b16 %v1380, %v1379
        %v1429 = vpack.c.b16 %v1382, %v1381
        %v1430 = vpack.c.b16 %v1384, %v1383
        %v1431 = vpack.c.b16 %v1386, %v1385
        %v1432 = vpack.c.b16 %v1388, %v1387
        %v1433 = vpack.c.b16 %v1390, %v1389
        %v1434 = vpack.c.b16 %v1392, %v1391
        %v1435 = vpack.c.b16 %v1394, %v1393
        %v1436 = vpack.c.b16 %v1396, %v1395
        %v1437 = vpack.c.b16 %v1398, %v1397
        %v1438 = vpack.c.b16 %v1400, %v1399
        %v1439 = vpack.c.b16 %v1402, %v1401
        %v1440 = vpack.c.b16 %v1404, %v1403
        %v1441 = vpack.c.b16 %v1406, %v1405
        %v1442 = vpack.c.b16 %v1408, %v1407
        %v1443 = vpack.c.b16 %v1410, %v1409
        %v1444 = vpack.c.b16 %v1412, %v1411
        %1477 = vmatprep.subr.bf16.mxu0 0
        %1478 = vmatpush1.bf16.msra.mxu0 %v1420
        %1479 = vmatprep.subr.bf16.mxu0 0
        %1480 = vmatpush1.bf16.msra.mxu0 %v1419
        %1481 = vmatprep.subr.bf16.mxu0 0
        %1482 = vmatpush1.bf16.msra.mxu0 %v1418
        %1483 = vmatprep.subr.bf16.mxu0 0
        %1484 = vmatpush1.bf16.msra.mxu0 %v1417
        %1485 = vmatprep.subr.bf16.mxu0 0
        %1486 = vmatpush1.bf16.msra.mxu0 %v1416
        %1487 = vmatprep.subr.bf16.mxu0 0
        %1488 = vmatpush1.bf16.msra.mxu0 %v1415
        %1489 = vmatprep.subr.bf16.mxu0 0
        %1490 = vmatpush1.bf16.msra.mxu0 %v1414
        %1491 = vmatprep.subr.bf16.mxu0 0
        %1492 = vmatpush1.bf16.msra.mxu0 %v1413
        %1493 = vmatprep.subr.bf16.mxu0 0
        %1494 = vmatpush2.bf16.msra.mxu0 %v1428
        %1495 = vmatprep.subr.bf16.mxu0 0
        %1496 = vmatpush2.bf16.msra.mxu0 %v1427
        %1497 = vmatprep.subr.bf16.mxu0 0
        %1498 = vmatpush2.bf16.msra.mxu0 %v1426
        %1499 = vmatprep.subr.bf16.mxu0 0
        %1500 = vmatpush2.bf16.msra.mxu0 %v1425
        %1501 = vmatprep.subr.bf16.mxu0 0
        %1502 = vmatpush2.bf16.msra.mxu0 %v1424
        %1503 = vmatprep.subr.bf16.mxu0 0
        %1504 = vmatpush2.bf16.msra.mxu0 %v1423
        %1505 = vmatprep.subr.bf16.mxu0 0
        %1506 = vmatpush2.bf16.msra.mxu0 %v1422
        %1507 = vmatprep.subr.bf16.mxu0 0
        %1508 = vmatpush2.bf16.msra.mxu0 %v1421
        %1509 = vmatprep.mubr.bf16.mxu0 %v1156
        %1510 = vmatmul.mubr.bf16.gmra.mxu0 %v428
        %v1511 = vpop.f32.mrf.mxu0
        %v1512 = vadd.f32 %v608, %v1511
        %v1513 = vpop.f32.mrf.mxu0
        %v1514 = vpop.f32.mrf.mxu0
        %v1515 = vadd.f32 %v608, %v1514
        %v1516 = vpop.f32.mrf.mxu0
        %1517 = vmatprep.mubr.bf16.mxu0 %v1157
        %1518 = vmatmul.mubr.bf16.gmra.mxu0 %v429
        %v1519 = vpop.f32.mrf.mxu0
        %v1520 = vadd.f32 %v608, %v1519
        %v1521 = vpop.f32.mrf.mxu0
        %v1522 = vpop.f32.mrf.mxu0
        %v1523 = vadd.f32 %v608, %v1522
        %v1524 = vpop.f32.mrf.mxu0
        %1525 = vmatprep.mubr.bf16.mxu0 %v1158
        %1526 = vmatmul.mubr.bf16.gmra.mxu0 %v430
        %v1527 = vpop.f32.mrf.mxu0
        %v1528 = vadd.f32 %v608, %v1527
        %v1529 = vpop.f32.mrf.mxu0
        %v1530 = vpop.f32.mrf.mxu0
        %v1531 = vadd.f32 %v608, %v1530
        %v1532 = vpop.f32.mrf.mxu0
        %1533 = vmatprep.mubr.bf16.mxu0 %v1159
        %1534 = vmatmul.mubr.bf16.gmra.mxu0 %v431
        %v1535 = vpop.f32.mrf.mxu0
        %v1536 = vadd.f32 %v608, %v1535
        %v1537 = vpop.f32.mrf.mxu0
        %v1538 = vpop.f32.mrf.mxu0
        %v1539 = vadd.f32 %v608, %v1538
        %v1540 = vpop.f32.mrf.mxu0
        %1541 = vmatprep.mubr.bf16.mxu0 %v1160
        %1542 = vmatmul.mubr.bf16.gmra.mxu0 %v432
        %v1543 = vpop.f32.mrf.mxu0
        %v1544 = vadd.f32 %v608, %v1543
        %v1545 = vpop.f32.mrf.mxu0
        %v1546 = vpop.f32.mrf.mxu0
        %v1547 = vadd.f32 %v608, %v1546
        %v1548 = vpop.f32.mrf.mxu0
        %1549 = vmatprep.mubr.bf16.mxu0 %v1161
        %1550 = vmatmul.mubr.bf16.gmra.mxu0 %v433
        %v1551 = vpop.f32.mrf.mxu0
        %v1552 = vadd.f32 %v608, %v1551
        %v1553 = vpop.f32.mrf.mxu0
        %v1554 = vpop.f32.mrf.mxu0
        %v1555 = vadd.f32 %v608, %v1554
        %v1556 = vpop.f32.mrf.mxu0
        %1557 = vmatprep.mubr.bf16.mxu0 %v1162
        %1558 = vmatmul.mubr.bf16.gmra.mxu0 %v434
        %v1559 = vpop.f32.mrf.mxu0
        %v1560 = vadd.f32 %v608, %v1559
        %v1561 = vpop.f32.mrf.mxu0
        %v1562 = vpop.f32.mrf.mxu0
        %v1563 = vadd.f32 %v608, %v1562
        %v1564 = vpop.f32.mrf.mxu0
        %1565 = vmatprep.mubr.bf16.mxu0 %v1163
        %1566 = vmatmul.mubr.bf16.gmra.mxu0 %v435
        %v1567 = vpop.f32.mrf.mxu0
        %v1568 = vadd.f32 %v608, %v1567
        %v1569 = vpop.f32.mrf.mxu0
        %v1570 = vpop.f32.mrf.mxu0
        %v1571 = vadd.f32 %v608, %v1570
        %v1572 = vpop.f32.mrf.mxu0
        %1573 = vmatprep.mubr.bf16.mxu0 %v1164
        %1574 = vmatmul.mubr.bf16.gmra.mxu0 %v436
        %v1575 = vpop.f32.mrf.mxu0
        %v1576 = vadd.f32 %v608, %v1575
        %v1577 = vpop.f32.mrf.mxu0
        %v1578 = vpop.f32.mrf.mxu0
        %v1579 = vadd.f32 %v608, %v1578
        %v1580 = vpop.f32.mrf.mxu0
        %1581 = vmatprep.mubr.bf16.mxu0 %v1165
        %1582 = vmatmul.mubr.bf16.gmra.mxu0 %v437
        %v1583 = vpop.f32.mrf.mxu0
        %v1584 = vadd.f32 %v608, %v1583
        %v1585 = vpop.f32.mrf.mxu0
        %v1586 = vpop.f32.mrf.mxu0
        %v1587 = vadd.f32 %v608, %v1586
        %v1588 = vpop.f32.mrf.mxu0
        %1589 = vmatprep.mubr.bf16.mxu0 %v1166
        %1590 = vmatmul.mubr.bf16.gmra.mxu0 %v438
        %v1591 = vpop.f32.mrf.mxu0
        %v1592 = vadd.f32 %v608, %v1591
        %v1593 = vpop.f32.mrf.mxu0
        %v1594 = vpop.f32.mrf.mxu0
        %v1595 = vadd.f32 %v608, %v1594
        %v1596 = vpop.f32.mrf.mxu0
        %1597 = vmatprep.mubr.bf16.mxu0 %v1167
        %1598 = vmatmul.mubr.bf16.gmra.mxu0 %v439
        %v1599 = vpop.f32.mrf.mxu0
        %v1600 = vadd.f32 %v608, %v1599
        %v1601 = vpop.f32.mrf.mxu0
        %v1602 = vpop.f32.mrf.mxu0
        %v1603 = vadd.f32 %v608, %v1602
        %v1604 = vpop.f32.mrf.mxu0
        %1605 = vmatprep.mubr.bf16.mxu0 %v1168
        %1606 = vmatmul.mubr.bf16.gmra.mxu0 %v440
        %v1607 = vpop.f32.mrf.mxu0
        %v1608 = vadd.f32 %v608, %v1607
        %v1609 = vpop.f32.mrf.mxu0
        %v1610 = vpop.f32.mrf.mxu0
        %v1611 = vadd.f32 %v608, %v1610
        %v1612 = vpop.f32.mrf.mxu0
        %1613 = vmatprep.mubr.bf16.mxu0 %v1169
        %1614 = vmatmul.mubr.bf16.gmra.mxu0 %v441
        %v1615 = vpop.f32.mrf.mxu0
        %v1616 = vadd.f32 %v608, %v1615
        %v1617 = vpop.f32.mrf.mxu0
        %v1618 = vpop.f32.mrf.mxu0
        %v1619 = vadd.f32 %v608, %v1618
        %v1620 = vpop.f32.mrf.mxu0
        %1621 = vmatprep.mubr.bf16.mxu0 %v1170
        %1622 = vmatmul.mubr.bf16.gmra.mxu0 %v442
        %v1623 = vpop.f32.mrf.mxu0
        %v1624 = vadd.f32 %v608, %v1623
        %v1625 = vpop.f32.mrf.mxu0
        %v1626 = vpop.f32.mrf.mxu0
        %v1627 = vadd.f32 %v608, %v1626
        %v1628 = vpop.f32.mrf.mxu0
        %1629 = vmatprep.mubr.bf16.mxu0 %v1171
        %1630 = vmatmul.mubr.bf16.gmra.mxu0 %v443
        %v1631 = vpop.f32.mrf.mxu0
        %v1632 = vadd.f32 %v608, %v1631
        %v1633 = vpop.f32.mrf.mxu0
        %v1634 = vpop.f32.mrf.mxu0
        %v1635 = vadd.f32 %v608, %v1634
        %v1636 = vpop.f32.mrf.mxu0
        %1637 = vdwg.mxu0
        %1638 = vmatprep.subr.bf16.mxu0 0
        %1639 = vmatpush1.bf16.msra.mxu0 %v1436
        %1640 = vmatprep.subr.bf16.mxu0 0
        %1641 = vmatpush1.bf16.msra.mxu0 %v1435
        %1642 = vmatprep.subr.bf16.mxu0 0
        %1643 = vmatpush1.bf16.msra.mxu0 %v1434
        %1644 = vmatprep.subr.bf16.mxu0 0
        %1645 = vmatpush1.bf16.msra.mxu0 %v1433
        %1646 = vmatprep.subr.bf16.mxu0 0
        %1647 = vmatpush1.bf16.msra.mxu0 %v1432
        %1648 = vmatprep.subr.bf16.mxu0 0
        %1649 = vmatpush1.bf16.msra.mxu0 %v1431
        %1650 = vmatprep.subr.bf16.mxu0 0
        %1651 = vmatpush1.bf16.msra.mxu0 %v1430
        %1652 = vmatprep.subr.bf16.mxu0 0
        %1653 = vmatpush1.bf16.msra.mxu0 %v1429
        %1654 = vmatprep.subr.bf16.mxu0 0
        %1655 = vmatpush2.bf16.msra.mxu0 %v1444
        %1656 = vmatprep.subr.bf16.mxu0 0
        %1657 = vmatpush2.bf16.msra.mxu0 %v1443
        %1658 = vmatprep.subr.bf16.mxu0 0
        %1659 = vmatpush2.bf16.msra.mxu0 %v1442
        %1660 = vmatprep.subr.bf16.mxu0 0
        %1661 = vmatpush2.bf16.msra.mxu0 %v1441
        %1662 = vmatprep.subr.bf16.mxu0 0
        %1663 = vmatpush2.bf16.msra.mxu0 %v1440
        %1664 = vmatprep.subr.bf16.mxu0 0
        %1665 = vmatpush2.bf16.msra.mxu0 %v1439
        %1666 = vmatprep.subr.bf16.mxu0 0
        %1667 = vmatpush2.bf16.msra.mxu0 %v1438
        %1668 = vmatprep.subr.bf16.mxu0 0
        %1669 = vmatpush2.bf16.msra.mxu0 %v1437
        %1670 = vmatprep.mubr.bf16.mxu0 %v1204
        %1671 = vmatmul.mubr.bf16.gmra.mxu0 %v524
        %v1672 = vpop.f32.mrf.mxu0
        %v1673 = vadd.f32 %v1512, %v1672
        %v1674 = vpop.f32.mrf.mxu0
        %v1675 = vpop.f32.mrf.mxu0
        %v1676 = vadd.f32 %v1515, %v1675
        %v1677 = vpop.f32.mrf.mxu0
        %1678 = vmatprep.mubr.bf16.mxu0 %v1205
        %1679 = vmatmul.mubr.bf16.gmra.mxu0 %v525
        %v1680 = vpop.f32.mrf.mxu0
        %v1681 = vadd.f32 %v1520, %v1680
        %v1682 = vpop.f32.mrf.mxu0
        %v1683 = vpop.f32.mrf.mxu0
        %v1684 = vadd.f32 %v1523, %v1683
        %v1685 = vpop.f32.mrf.mxu0
        %1686 = vmatprep.mubr.bf16.mxu0 %v1206
        %1687 = vmatmul.mubr.bf16.gmra.mxu0 %v526
        %v1688 = vpop.f32.mrf.mxu0
        %v1689 = vadd.f32 %v1528, %v1688
        %v1690 = vpop.f32.mrf.mxu0
        %v1691 = vpop.f32.mrf.mxu0
        %v1692 = vadd.f32 %v1531, %v1691
        %v1693 = vpop.f32.mrf.mxu0
        %1694 = vmatprep.mubr.bf16.mxu0 %v1207
        %1695 = vmatmul.mubr.bf16.gmra.mxu0 %v527
        %v1696 = vpop.f32.mrf.mxu0
        %v1697 = vadd.f32 %v1536, %v1696
        %v1698 = vpop.f32.mrf.mxu0
        %v1699 = vpop.f32.mrf.mxu0
        %v1700 = vadd.f32 %v1539, %v1699
        %v1701 = vpop.f32.mrf.mxu0
        %1702 = vmatprep.mubr.bf16.mxu0 %v1208
        %1703 = vmatmul.mubr.bf16.gmra.mxu0 %v528
        %v1704 = vpop.f32.mrf.mxu0
        %v1705 = vadd.f32 %v1544, %v1704
        %v1706 = vpop.f32.mrf.mxu0
        %v1707 = vpop.f32.mrf.mxu0
        %v1708 = vadd.f32 %v1547, %v1707
        %v1709 = vpop.f32.mrf.mxu0
        %1710 = vmatprep.mubr.bf16.mxu0 %v1209
        %1711 = vmatmul.mubr.bf16.gmra.mxu0 %v529
        %v1712 = vpop.f32.mrf.mxu0
        %v1713 = vadd.f32 %v1552, %v1712
        %v1714 = vpop.f32.mrf.mxu0
        %v1715 = vpop.f32.mrf.mxu0
        %v1716 = vadd.f32 %v1555, %v1715
        %v1717 = vpop.f32.mrf.mxu0
        %1718 = vmatprep.mubr.bf16.mxu0 %v1210
        %1719 = vmatmul.mubr.bf16.gmra.mxu0 %v530
        %v1720 = vpop.f32.mrf.mxu0
        %v1721 = vadd.f32 %v1560, %v1720
        %v1722 = vpop.f32.mrf.mxu0
        %v1723 = vpop.f32.mrf.mxu0
        %v1724 = vadd.f32 %v1563, %v1723
        %v1725 = vpop.f32.mrf.mxu0
        %1726 = vmatprep.mubr.bf16.mxu0 %v1211
        %1727 = vmatmul.mubr.bf16.gmra.mxu0 %v531
        %v1728 = vpop.f32.mrf.mxu0
        %v1729 = vadd.f32 %v1568, %v1728
        %v1730 = vpop.f32.mrf.mxu0
        %v1731 = vpop.f32.mrf.mxu0
        %v1732 = vadd.f32 %v1571, %v1731
        %v1733 = vpop.f32.mrf.mxu0
        %1734 = vmatprep.mubr.bf16.mxu0 %v1212
        %1735 = vmatmul.mubr.bf16.gmra.mxu0 %v532
        %v1736 = vpop.f32.mrf.mxu0
        %v1737 = vadd.f32 %v1576, %v1736
        %v1738 = vpop.f32.mrf.mxu0
        %v1739 = vpop.f32.mrf.mxu0
        %v1740 = vadd.f32 %v1579, %v1739
        %v1741 = vpop.f32.mrf.mxu0
        %1742 = vmatprep.mubr.bf16.mxu0 %v1213
        %1743 = vmatmul.mubr.bf16.gmra.mxu0 %v533
        %v1744 = vpop.f32.mrf.mxu0
        %v1745 = vadd.f32 %v1584, %v1744
        %v1746 = vpop.f32.mrf.mxu0
        %v1747 = vpop.f32.mrf.mxu0
        %v1748 = vadd.f32 %v1587, %v1747
        %v1749 = vpop.f32.mrf.mxu0
        %1750 = vmatprep.mubr.bf16.mxu0 %v1214
        %1751 = vmatmul.mubr.bf16.gmra.mxu0 %v534
        %v1752 = vpop.f32.mrf.mxu0
        %v1753 = vadd.f32 %v1592, %v1752
        %v1754 = vpop.f32.mrf.mxu0
        %v1755 = vpop.f32.mrf.mxu0
        %v1756 = vadd.f32 %v1595, %v1755
        %v1757 = vpop.f32.mrf.mxu0
        %1758 = vmatprep.mubr.bf16.mxu0 %v1215
        %1759 = vmatmul.mubr.bf16.gmra.mxu0 %v535
        %v1760 = vpop.f32.mrf.mxu0
        %v1761 = vadd.f32 %v1600, %v1760
        %v1762 = vpop.f32.mrf.mxu0
        %v1763 = vpop.f32.mrf.mxu0
        %v1764 = vadd.f32 %v1603, %v1763
        %v1765 = vpop.f32.mrf.mxu0
        %1766 = vmatprep.mubr.bf16.mxu0 %v1216
        %1767 = vmatmul.mubr.bf16.gmra.mxu0 %v536
        %v1768 = vpop.f32.mrf.mxu0
        %v1769 = vadd.f32 %v1608, %v1768
        %v1770 = vpop.f32.mrf.mxu0
        %v1771 = vpop.f32.mrf.mxu0
        %v1772 = vadd.f32 %v1611, %v1771
        %v1773 = vpop.f32.mrf.mxu0
        %1774 = vmatprep.mubr.bf16.mxu0 %v1217
        %1775 = vmatmul.mubr.bf16.gmra.mxu0 %v537
        %v1776 = vpop.f32.mrf.mxu0
        %v1777 = vadd.f32 %v1616, %v1776
        %v1778 = vpop.f32.mrf.mxu0
        %v1779 = vpop.f32.mrf.mxu0
        %v1780 = vadd.f32 %v1619, %v1779
        %v1781 = vpop.f32.mrf.mxu0
        %1782 = vmatprep.mubr.bf16.mxu0 %v1218
        %1783 = vmatmul.mubr.bf16.gmra.mxu0 %v538
        %v1784 = vpop.f32.mrf.mxu0
        %v1785 = vadd.f32 %v1624, %v1784
        %v1786 = vpop.f32.mrf.mxu0
        %v1787 = vpop.f32.mrf.mxu0
        %v1788 = vadd.f32 %v1627, %v1787
        %v1789 = vpop.f32.mrf.mxu0
        %1790 = vmatprep.mubr.bf16.mxu0 %v1219
        %1791 = vmatmul.mubr.bf16.gmra.mxu0 %v539
        %v1792 = vpop.f32.mrf.mxu0
        %v1793 = vadd.f32 %v1632, %v1792
        %v1794 = vpop.f32.mrf.mxu0
        %v1795 = vpop.f32.mrf.mxu0
        %v1796 = vadd.f32 %v1635, %v1795
        %v1797 = vpop.f32.mrf.mxu0
        %1798 = vdwg.mxu0
        %1799 = vst [vmem:[%s203] sm:$0xff] %v998
        %1800 = vst [vmem:[%s203 + $0x8] sm:$0xff] %v1673
        %1801 = vst [vmem:[%s203 + $0x10] sm:$0xff] %v1001
        %1802 = vst [vmem:[%s203 + $0x18] sm:$0xff] %v1676
        %1803 = vst [vmem:[%s203 + $0x40] sm:$0xff] %v1006
        %1804 = vst [vmem:[%s203 + $0x48] sm:$0xff] %v1681
        %1805 = vst [vmem:[%s203 + $0x50] sm:$0xff] %v1009
        %1806 = vst [vmem:[%s203 + $0x58] sm:$0xff] %v1684
        %1807 = vst [vmem:[%s203 + $0x80] sm:$0xff] %v1014
        %1808 = vst [vmem:[%s203 + $0x88] sm:$0xff] %v1689
        %1809 = vst [vmem:[%s203 + $0x90] sm:$0xff] %v1017
        %1810 = vst [vmem:[%s203 + $0x98] sm:$0xff] %v1692
        %1811 = vst [vmem:[%s203 + $0xc0] sm:$0xff] %v1022
        %1812 = vst [vmem:[%s203 + $0xc8] sm:$0xff] %v1697
        %1813 = vst [vmem:[%s203 + $0xd0] sm:$0xff] %v1025
        %1814 = vst [vmem:[%s203 + $0xd8] sm:$0xff] %v1700
        %1815 = vst [vmem:[%s203 + $0x100] sm:$0xff] %v1030
        %1816 = vst [vmem:[%s203 + $0x108] sm:$0xff] %v1705
        %1817 = vst [vmem:[%s203 + $0x110] sm:$0xff] %v1033
        %1818 = vst [vmem:[%s203 + $0x118] sm:$0xff] %v1708
        %1819 = vst [vmem:[%s203 + $0x140] sm:$0xff] %v1038
        %1820 = vst [vmem:[%s203 + $0x148] sm:$0xff] %v1713
        %1821 = vst [vmem:[%s203 + $0x150] sm:$0xff] %v1041
        %1822 = vst [vmem:[%s203 + $0x158] sm:$0xff] %v1716
        %1823 = vst [vmem:[%s203 + $0x180] sm:$0xff] %v1046
        %1824 = vst [vmem:[%s203 + $0x188] sm:$0xff] %v1721
        %1825 = vst [vmem:[%s203 + $0x190] sm:$0xff] %v1049
        %1826 = vst [vmem:[%s203 + $0x198] sm:$0xff] %v1724
        %1827 = vst [vmem:[%s203 + $0x1c0] sm:$0xff] %v1054
        %1828 = vst [vmem:[%s203 + $0x1c8] sm:$0xff] %v1729
        %1829 = vst [vmem:[%s203 + $0x1d0] sm:$0xff] %v1057
        %1830 = vst [vmem:[%s203 + $0x1d8] sm:$0xff] %v1732
        %1831 = vst [vmem:[%s203 + $0x200] sm:$0xff] %v1062
        %1832 = vst [vmem:[%s203 + $0x208] sm:$0xff] %v1737
        %1833 = vst [vmem:[%s203 + $0x210] sm:$0xff] %v1065
        %1834 = vst [vmem:[%s203 + $0x218] sm:$0xff] %v1740
        %1835 = vst [vmem:[%s203 + $0x240] sm:$0xff] %v1070
        %1836 = vst [vmem:[%s203 + $0x248] sm:$0xff] %v1745
        %1837 = vst [vmem:[%s203 + $0x250] sm:$0xff] %v1073
        %1838 = vst [vmem:[%s203 + $0x258] sm:$0xff] %v1748
        %1839 = vst [vmem:[%s203 + $0x280] sm:$0xff] %v1078
        %1840 = vst [vmem:[%s203 + $0x288] sm:$0xff] %v1753
        %1841 = vst [vmem:[%s203 + $0x290] sm:$0xff] %v1081
        %1842 = vst [vmem:[%s203 + $0x298] sm:$0xff] %v1756
        %1843 = vst [vmem:[%s203 + $0x2c0] sm:$0xff] %v1086
        %1844 = vst [vmem:[%s203 + $0x2c8] sm:$0xff] %v1761
        %1845 = vst [vmem:[%s203 + $0x2d0] sm:$0xff] %v1089
        %1846 = vst [vmem:[%s203 + $0x2d8] sm:$0xff] %v1764
        %1847 = vst [vmem:[%s203 + $0x300] sm:$0xff] %v1094
        %1848 = vst [vmem:[%s203 + $0x308] sm:$0xff] %v1769
        %1849 = vst [vmem:[%s203 + $0x310] sm:$0xff] %v1097
        %1850 = vst [vmem:[%s203 + $0x318] sm:$0xff] %v1772
        %1851 = vst [vmem:[%s203 + $0x340] sm:$0xff] %v1102
        %1852 = vst [vmem:[%s203 + $0x348] sm:$0xff] %v1777
        %1853 = vst [vmem:[%s203 + $0x350] sm:$0xff] %v1105
        %1854 = vst [vmem:[%s203 + $0x358] sm:$0xff] %v1780
        %1855 = vst [vmem:[%s203 + $0x380] sm:$0xff] %v1110
        %1856 = vst [vmem:[%s203 + $0x388] sm:$0xff] %v1785
        %1857 = vst [vmem:[%s203 + $0x390] sm:$0xff] %v1113
        %1858 = vst [vmem:[%s203 + $0x398] sm:$0xff] %v1788
        %1859 = vst [vmem:[%s203 + $0x3c0] sm:$0xff] %v1118
        %1860 = vst [vmem:[%s203 + $0x3c8] sm:$0xff] %v1793
        %1861 = vst [vmem:[%s203 + $0x3d0] sm:$0xff] %v1121
        %1862 = vst [vmem:[%s203 + $0x3d8] sm:$0xff] %v1796
        %v1863 = vld [vmem:[%s314 + $0x7] sm:$0xff]
        %v1864 = vld [vmem:[%s314 + $0xf] sm:$0xff]
        %v1865 = vld [vmem:[%s314 + $0x27] sm:$0xff]
        %v1866 = vld [vmem:[%s314 + $0x2f] sm:$0xff]
        %v1867 = vld [vmem:[%s314 + $0x47] sm:$0xff]
        %v1868 = vld [vmem:[%s314 + $0x4f] sm:$0xff]
        %v1869 = vld [vmem:[%s314 + $0x67] sm:$0xff]
        %v1870 = vld [vmem:[%s314 + $0x6f] sm:$0xff]
        %v1871 = vld [vmem:[%s314 + $0x87] sm:$0xff]
        %v1872 = vld [vmem:[%s314 + $0x8f] sm:$0xff]
        %v1873 = vld [vmem:[%s314 + $0xa7] sm:$0xff]
        %v1874 = vld [vmem:[%s314 + $0xaf] sm:$0xff]
        %v1875 = vld [vmem:[%s314 + $0xc7] sm:$0xff]
        %v1876 = vld [vmem:[%s314 + $0xcf] sm:$0xff]
        %v1877 = vld [vmem:[%s314 + $0xe7] sm:$0xff]
        %v1878 = vld [vmem:[%s314 + $0xef] sm:$0xff]
        %v1879 = vld [vmem:[%s314 + $0x107] sm:$0xff]
        %v1880 = vld [vmem:[%s314 + $0x10f] sm:$0xff]
        %v1881 = vld [vmem:[%s314 + $0x127] sm:$0xff]
        %v1882 = vld [vmem:[%s314 + $0x12f] sm:$0xff]
        %v1883 = vld [vmem:[%s314 + $0x147] sm:$0xff]
        %v1884 = vld [vmem:[%s314 + $0x14f] sm:$0xff]
        %v1885 = vld [vmem:[%s314 + $0x167] sm:$0xff]
        %v1886 = vld [vmem:[%s314 + $0x16f] sm:$0xff]
        %v1887 = vld [vmem:[%s314 + $0x187] sm:$0xff]
        %v1888 = vld [vmem:[%s314 + $0x18f] sm:$0xff]
        %v1889 = vld [vmem:[%s314 + $0x1a7] sm:$0xff]
        %v1890 = vld [vmem:[%s314 + $0x1af] sm:$0xff]
        %v1891 = vld [vmem:[%s314 + $0x1c7] sm:$0xff]
        %v1892 = vld [vmem:[%s314 + $0x1cf] sm:$0xff]
        %v1893 = vld [vmem:[%s314 + $0x1e7] sm:$0xff]
        %v1894 = vld [vmem:[%s314 + $0x1ef] sm:$0xff]
        %v1895 = vpack.c.bf16 %v1864, %v1863
        %v1896 = vpack.c.bf16 %v1866, %v1865
        %v1897 = vpack.c.bf16 %v1868, %v1867
        %v1898 = vpack.c.bf16 %v1870, %v1869
        %v1899 = vpack.c.bf16 %v1872, %v1871
        %v1900 = vpack.c.bf16 %v1874, %v1873
        %v1901 = vpack.c.bf16 %v1876, %v1875
        %v1902 = vpack.c.bf16 %v1878, %v1877
        %v1903 = vpack.c.bf16 %v1880, %v1879
        %v1904 = vpack.c.bf16 %v1882, %v1881
        %v1905 = vpack.c.bf16 %v1884, %v1883
        %v1906 = vpack.c.bf16 %v1886, %v1885
        %v1907 = vpack.c.bf16 %v1888, %v1887
        %v1908 = vpack.c.bf16 %v1890, %v1889
        %v1909 = vpack.c.bf16 %v1892, %v1891
        %v1910 = vpack.c.bf16 %v1894, %v1893
        %v1911 = vld [vmem:[%s314 + $0x8] sm:$0xff]
        %v1912 = vld [vmem:[%s314 + $0x10] sm:$0xff]
        %v1913 = vld [vmem:[%s314 + $0x28] sm:$0xff]
        %v1914 = vld [vmem:[%s314 + $0x30] sm:$0xff]
        %v1915 = vld [vmem:[%s314 + $0x48] sm:$0xff]
        %v1916 = vld [vmem:[%s314 + $0x50] sm:$0xff]
        %v1917 = vld [vmem:[%s314 + $0x68] sm:$0xff]
        %v1918 = vld [vmem:[%s314 + $0x70] sm:$0xff]
        %v1919 = vld [vmem:[%s314 + $0x88] sm:$0xff]
        %v1920 = vld [vmem:[%s314 + $0x90] sm:$0xff]
        %v1921 = vld [vmem:[%s314 + $0xa8] sm:$0xff]
        %v1922 = vld [vmem:[%s314 + $0xb0] sm:$0xff]
        %v1923 = vld [vmem:[%s314 + $0xc8] sm:$0xff]
        %v1924 = vld [vmem:[%s314 + $0xd0] sm:$0xff]
        %v1925 = vld [vmem:[%s314 + $0xe8] sm:$0xff]
        %v1926 = vld [vmem:[%s314 + $0xf0] sm:$0xff]
        %v1927 = vld [vmem:[%s314 + $0x108] sm:$0xff]
        %v1928 = vld [vmem:[%s314 + $0x110] sm:$0xff]
        %v1929 = vld [vmem:[%s314 + $0x128] sm:$0xff]
        %v1930 = vld [vmem:[%s314 + $0x130] sm:$0xff]
        %v1931 = vld [vmem:[%s314 + $0x148] sm:$0xff]
        %v1932 = vld [vmem:[%s314 + $0x150] sm:$0xff]
        %v1933 = vld [vmem:[%s314 + $0x168] sm:$0xff]
        %v1934 = vld [vmem:[%s314 + $0x170] sm:$0xff]
        %v1935 = vld [vmem:[%s314 + $0x188] sm:$0xff]
        %v1936 = vld [vmem:[%s314 + $0x190] sm:$0xff]
        %v1937 = vld [vmem:[%s314 + $0x1a8] sm:$0xff]
        %v1938 = vld [vmem:[%s314 + $0x1b0] sm:$0xff]
        %v1939 = vld [vmem:[%s314 + $0x1c8] sm:$0xff]
        %v1940 = vld [vmem:[%s314 + $0x1d0] sm:$0xff]
        %v1941 = vld [vmem:[%s314 + $0x1e8] sm:$0xff]
        %v1942 = vld [vmem:[%s314 + $0x1f0] sm:$0xff]
        %v1943 = vpack.c.bf16 %v1912, %v1911
        %v1944 = vpack.c.bf16 %v1914, %v1913
        %v1945 = vpack.c.bf16 %v1916, %v1915
        %v1946 = vpack.c.bf16 %v1918, %v1917
        %v1947 = vpack.c.bf16 %v1920, %v1919
        %v1948 = vpack.c.bf16 %v1922, %v1921
        %v1949 = vpack.c.bf16 %v1924, %v1923
        %v1950 = vpack.c.bf16 %v1926, %v1925
        %v1951 = vpack.c.bf16 %v1928, %v1927
        %v1952 = vpack.c.bf16 %v1930, %v1929
        %v1953 = vpack.c.bf16 %v1932, %v1931
        %v1954 = vpack.c.bf16 %v1934, %v1933
        %v1955 = vpack.c.bf16 %v1936, %v1935
        %v1956 = vpack.c.bf16 %v1938, %v1937
        %v1957 = vpack.c.bf16 %v1940, %v1939
        %v1958 = vpack.c.bf16 %v1942, %v1941
        %s1959 = scalar_lea.vmem [#allocation2], 64
        %v1960 = vld [vmem:[%s1959 + $0x7] sm:$0xff]
        %v1961 = vld [vmem:[%s1959 + $0xf] sm:$0xff]
        %v1962 = vld [vmem:[%s1959 + $0x27] sm:$0xff]
        %v1963 = vld [vmem:[%s1959 + $0x2f] sm:$0xff]
        %v1964 = vld [vmem:[%s1959 + $0x47] sm:$0xff]
        %v1965 = vld [vmem:[%s1959 + $0x4f] sm:$0xff]
        %v1966 = vld [vmem:[%s1959 + $0x67] sm:$0xff]
        %v1967 = vld [vmem:[%s1959 + $0x6f] sm:$0xff]
        %v1968 = vld [vmem:[%s1959 + $0x87] sm:$0xff]
        %v1969 = vld [vmem:[%s1959 + $0x8f] sm:$0xff]
        %v1970 = vld [vmem:[%s1959 + $0xa7] sm:$0xff]
        %v1971 = vld [vmem:[%s1959 + $0xaf] sm:$0xff]
        %v1972 = vld [vmem:[%s1959 + $0xc7] sm:$0xff]
        %v1973 = vld [vmem:[%s1959 + $0xcf] sm:$0xff]
        %v1974 = vld [vmem:[%s1959 + $0xe7] sm:$0xff]
        %v1975 = vld [vmem:[%s1959 + $0xef] sm:$0xff]
        %v1976 = vld [vmem:[%s1959 + $0x107] sm:$0xff]
        %v1977 = vld [vmem:[%s1959 + $0x10f] sm:$0xff]
        %v1978 = vld [vmem:[%s1959 + $0x127] sm:$0xff]
        %v1979 = vld [vmem:[%s1959 + $0x12f] sm:$0xff]
        %v1980 = vld [vmem:[%s1959 + $0x147] sm:$0xff]
        %v1981 = vld [vmem:[%s1959 + $0x14f] sm:$0xff]
        %v1982 = vld [vmem:[%s1959 + $0x167] sm:$0xff]
        %v1983 = vld [vmem:[%s1959 + $0x16f] sm:$0xff]
        %v1984 = vld [vmem:[%s1959 + $0x187] sm:$0xff]
        %v1985 = vld [vmem:[%s1959 + $0x18f] sm:$0xff]
        %v1986 = vld [vmem:[%s1959 + $0x1a7] sm:$0xff]
        %v1987 = vld [vmem:[%s1959 + $0x1af] sm:$0xff]
        %v1988 = vld [vmem:[%s1959 + $0x1c7] sm:$0xff]
        %v1989 = vld [vmem:[%s1959 + $0x1cf] sm:$0xff]
        %v1990 = vld [vmem:[%s1959 + $0x1e7] sm:$0xff]
        %v1991 = vld [vmem:[%s1959 + $0x1ef] sm:$0xff]
        %v1992 = vpack.c.bf16 %v1961, %v1960
        %v1993 = vpack.c.bf16 %v1963, %v1962
        %v1994 = vpack.c.bf16 %v1965, %v1964
        %v1995 = vpack.c.bf16 %v1967, %v1966
        %v1996 = vpack.c.bf16 %v1969, %v1968
        %v1997 = vpack.c.bf16 %v1971, %v1970
        %v1998 = vpack.c.bf16 %v1973, %v1972
        %v1999 = vpack.c.bf16 %v1975, %v1974
        %v2000 = vpack.c.bf16 %v1977, %v1976
        %v2001 = vpack.c.bf16 %v1979, %v1978
        %v2002 = vpack.c.bf16 %v1981, %v1980
        %v2003 = vpack.c.bf16 %v1983, %v1982
        %v2004 = vpack.c.bf16 %v1985, %v1984
        %v2005 = vpack.c.bf16 %v1987, %v1986
        %v2006 = vpack.c.bf16 %v1989, %v1988
        %v2007 = vpack.c.bf16 %v1991, %v1990
        %v2008 = vld [vmem:[%s1959 + $0x8] sm:$0xff]
        %v2009 = vld [vmem:[%s1959 + $0x10] sm:$0xff]
        %v2010 = vld [vmem:[%s1959 + $0x28] sm:$0xff]
        %v2011 = vld [vmem:[%s1959 + $0x30] sm:$0xff]
        %v2012 = vld [vmem:[%s1959 + $0x48] sm:$0xff]
        %v2013 = vld [vmem:[%s1959 + $0x50] sm:$0xff]
        %v2014 = vld [vmem:[%s1959 + $0x68] sm:$0xff]
        %v2015 = vld [vmem:[%s1959 + $0x70] sm:$0xff]
        %v2016 = vld [vmem:[%s1959 + $0x88] sm:$0xff]
        %v2017 = vld [vmem:[%s1959 + $0x90] sm:$0xff]
        %v2018 = vld [vmem:[%s1959 + $0xa8] sm:$0xff]
        %v2019 = vld [vmem:[%s1959 + $0xb0] sm:$0xff]
        %v2020 = vld [vmem:[%s1959 + $0xc8] sm:$0xff]
        %v2021 = vld [vmem:[%s1959 + $0xd0] sm:$0xff]
        %v2022 = vld [vmem:[%s1959 + $0xe8] sm:$0xff]
        %v2023 = vld [vmem:[%s1959 + $0xf0] sm:$0xff]
        %v2024 = vld [vmem:[%s1959 + $0x108] sm:$0xff]
        %v2025 = vld [vmem:[%s1959 + $0x110] sm:$0xff]
        %v2026 = vld [vmem:[%s1959 + $0x128] sm:$0xff]
        %v2027 = vld [vmem:[%s1959 + $0x130] sm:$0xff]
        %v2028 = vld [vmem:[%s1959 + $0x148] sm:$0xff]
        %v2029 = vld [vmem:[%s1959 + $0x150] sm:$0xff]
        %v2030 = vld [vmem:[%s1959 + $0x168] sm:$0xff]
        %v2031 = vld [vmem:[%s1959 + $0x170] sm:$0xff]
        %v2032 = vld [vmem:[%s1959 + $0x188] sm:$0xff]
        %v2033 = vld [vmem:[%s1959 + $0x190] sm:$0xff]
        %v2034 = vld [vmem:[%s1959 + $0x1a8] sm:$0xff]
        %v2035 = vld [vmem:[%s1959 + $0x1b0] sm:$0xff]
        %v2036 = vld [vmem:[%s1959 + $0x1c8] sm:$0xff]
        %v2037 = vld [vmem:[%s1959 + $0x1d0] sm:$0xff]
        %v2038 = vld [vmem:[%s1959 + $0x1e8] sm:$0xff]
        %v2039 = vld [vmem:[%s1959 + $0x1f0] sm:$0xff]
        %v2040 = vpack.c.bf16 %v2009, %v2008
        %v2041 = vpack.c.bf16 %v2011, %v2010
        %v2042 = vpack.c.bf16 %v2013, %v2012
        %v2043 = vpack.c.bf16 %v2015, %v2014
        %v2044 = vpack.c.bf16 %v2017, %v2016
        %v2045 = vpack.c.bf16 %v2019, %v2018
        %v2046 = vpack.c.bf16 %v2021, %v2020
        %v2047 = vpack.c.bf16 %v2023, %v2022
        %v2048 = vpack.c.bf16 %v2025, %v2024
        %v2049 = vpack.c.bf16 %v2027, %v2026
        %v2050 = vpack.c.bf16 %v2029, %v2028
        %v2051 = vpack.c.bf16 %v2031, %v2030
        %v2052 = vpack.c.bf16 %v2033, %v2032
        %v2053 = vpack.c.bf16 %v2035, %v2034
        %v2054 = vpack.c.bf16 %v2037, %v2036
        %v2055 = vpack.c.bf16 %v2039, %v2038
        %s2056 = scalar_lea.vmem [#allocation6], 512
        %v2057 = vld [vmem:[%s2056] sm:$0xf]
        %v2058 = vld [vmem:[%s2056 + $0x4] sm:$0xf]
        %v2059 = vld [vmem:[%s2056 + $0x8] sm:$0xf]
        %v2060 = vld [vmem:[%s2056 + $0xc] sm:$0xf]
        %v2061 = vld [vmem:[%s2056 + $0x10] sm:$0xf]
        %v2062 = vld [vmem:[%s2056 + $0x14] sm:$0xf]
        %v2063 = vld [vmem:[%s2056 + $0x18] sm:$0xf]
        %v2064 = vld [vmem:[%s2056 + $0x1c] sm:$0xf]
        %v2065 = vld [vmem:[%s2056 + $0x20] sm:$0xf]
        %v2066 = vld [vmem:[%s2056 + $0x24] sm:$0xf]
        %v2067 = vld [vmem:[%s2056 + $0x28] sm:$0xf]
        %v2068 = vld [vmem:[%s2056 + $0x2c] sm:$0xf]
        %v2069 = vld [vmem:[%s2056 + $0x30] sm:$0xf]
        %v2070 = vld [vmem:[%s2056 + $0x34] sm:$0xf]
        %v2071 = vld [vmem:[%s2056 + $0x38] sm:$0xf]
        %v2072 = vld [vmem:[%s2056 + $0x3c] sm:$0xf]
        %v2073 = vld [vmem:[%s2056 + $0x40] sm:$0xf]
        %v2074 = vld [vmem:[%s2056 + $0x44] sm:$0xf]
        %v2075 = vld [vmem:[%s2056 + $0x48] sm:$0xf]
        %v2076 = vld [vmem:[%s2056 + $0x4c] sm:$0xf]
        %v2077 = vld [vmem:[%s2056 + $0x50] sm:$0xf]
        %v2078 = vld [vmem:[%s2056 + $0x54] sm:$0xf]
        %v2079 = vld [vmem:[%s2056 + $0x58] sm:$0xf]
        %v2080 = vld [vmem:[%s2056 + $0x5c] sm:$0xf]
        %v2081 = vld [vmem:[%s2056 + $0x60] sm:$0xf]
        %v2082 = vld [vmem:[%s2056 + $0x64] sm:$0xf]
        %v2083 = vld [vmem:[%s2056 + $0x68] sm:$0xf]
        %v2084 = vld [vmem:[%s2056 + $0x6c] sm:$0xf]
        %v2085 = vld [vmem:[%s2056 + $0x70] sm:$0xf]
        %v2086 = vld [vmem:[%s2056 + $0x74] sm:$0xf]
        %v2087 = vld [vmem:[%s2056 + $0x78] sm:$0xf]
        %v2088 = vld [vmem:[%s2056 + $0x7c] sm:$0xf]
        %v2089 = vld [vmem:[%s2056 + $0x80] sm:$0xf]
        %v2090 = vld [vmem:[%s2056 + $0x84] sm:$0xf]
        %v2091 = vld [vmem:[%s2056 + $0x88] sm:$0xf]
        %v2092 = vld [vmem:[%s2056 + $0x8c] sm:$0xf]
        %v2093 = vld [vmem:[%s2056 + $0x90] sm:$0xf]
        %v2094 = vld [vmem:[%s2056 + $0x94] sm:$0xf]
        %v2095 = vld [vmem:[%s2056 + $0x98] sm:$0xf]
        %v2096 = vld [vmem:[%s2056 + $0x9c] sm:$0xf]
        %v2097 = vld [vmem:[%s2056 + $0xa0] sm:$0xf]
        %v2098 = vld [vmem:[%s2056 + $0xa4] sm:$0xf]
        %v2099 = vld [vmem:[%s2056 + $0xa8] sm:$0xf]
        %v2100 = vld [vmem:[%s2056 + $0xac] sm:$0xf]
        %v2101 = vld [vmem:[%s2056 + $0xb0] sm:$0xf]
        %v2102 = vld [vmem:[%s2056 + $0xb4] sm:$0xf]
        %v2103 = vld [vmem:[%s2056 + $0xb8] sm:$0xf]
        %v2104 = vld [vmem:[%s2056 + $0xbc] sm:$0xf]
        %v2105 = vld [vmem:[%s2056 + $0xc0] sm:$0xf]
        %v2106 = vld [vmem:[%s2056 + $0xc4] sm:$0xf]
        %v2107 = vld [vmem:[%s2056 + $0xc8] sm:$0xf]
        %v2108 = vld [vmem:[%s2056 + $0xcc] sm:$0xf]
        %v2109 = vld [vmem:[%s2056 + $0xd0] sm:$0xf]
        %v2110 = vld [vmem:[%s2056 + $0xd4] sm:$0xf]
        %v2111 = vld [vmem:[%s2056 + $0xd8] sm:$0xf]
        %v2112 = vld [vmem:[%s2056 + $0xdc] sm:$0xf]
        %v2113 = vld [vmem:[%s2056 + $0xe0] sm:$0xf]
        %v2114 = vld [vmem:[%s2056 + $0xe4] sm:$0xf]
        %v2115 = vld [vmem:[%s2056 + $0xe8] sm:$0xf]
        %v2116 = vld [vmem:[%s2056 + $0xec] sm:$0xf]
        %v2117 = vld [vmem:[%s2056 + $0xf0] sm:$0xf]
        %v2118 = vld [vmem:[%s2056 + $0xf4] sm:$0xf]
        %v2119 = vld [vmem:[%s2056 + $0xf8] sm:$0xf]
        %v2120 = vld [vmem:[%s2056 + $0xfc] sm:$0xf]
        %v2185 = vunpack.c.l.b16 %v2057
        %v2186 = vunpack.c.l.b16 %v2058
        %v2187 = vunpack.c.l.b16 %v2059
        %v2188 = vunpack.c.l.b16 %v2060
        %v2189 = vunpack.c.l.b16 %v2061
        %v2190 = vunpack.c.l.b16 %v2062
        %v2191 = vunpack.c.l.b16 %v2063
        %v2192 = vunpack.c.l.b16 %v2064
        %v2193 = vunpack.c.l.b16 %v2065
        %v2194 = vunpack.c.l.b16 %v2066
        %v2195 = vunpack.c.l.b16 %v2067
        %v2196 = vunpack.c.l.b16 %v2068
        %v2197 = vunpack.c.l.b16 %v2069
        %v2198 = vunpack.c.l.b16 %v2070
        %v2199 = vunpack.c.l.b16 %v2071
        %v2200 = vunpack.c.l.b16 %v2072
        %v2201 = vunpack.c.l.b16 %v2073
        %v2202 = vunpack.c.l.b16 %v2074
        %v2203 = vunpack.c.l.b16 %v2075
        %v2204 = vunpack.c.l.b16 %v2076
        %v2205 = vunpack.c.l.b16 %v2077
        %v2206 = vunpack.c.l.b16 %v2078
        %v2207 = vunpack.c.l.b16 %v2079
        %v2208 = vunpack.c.l.b16 %v2080
        %v2209 = vunpack.c.l.b16 %v2081
        %v2210 = vunpack.c.l.b16 %v2082
        %v2211 = vunpack.c.l.b16 %v2083
        %v2212 = vunpack.c.l.b16 %v2084
        %v2213 = vunpack.c.l.b16 %v2085
        %v2214 = vunpack.c.l.b16 %v2086
        %v2215 = vunpack.c.l.b16 %v2087
        %v2216 = vunpack.c.l.b16 %v2088
        %v2217 = vunpack.c.l.b16 %v2089
        %v2218 = vunpack.c.l.b16 %v2090
        %v2219 = vunpack.c.l.b16 %v2091
        %v2220 = vunpack.c.l.b16 %v2092
        %v2221 = vunpack.c.l.b16 %v2093
        %v2222 = vunpack.c.l.b16 %v2094
        %v2223 = vunpack.c.l.b16 %v2095
        %v2224 = vunpack.c.l.b16 %v2096
        %v2225 = vunpack.c.l.b16 %v2097
        %v2226 = vunpack.c.l.b16 %v2098
        %v2227 = vunpack.c.l.b16 %v2099
        %v2228 = vunpack.c.l.b16 %v2100
        %v2229 = vunpack.c.l.b16 %v2101
        %v2230 = vunpack.c.l.b16 %v2102
        %v2231 = vunpack.c.l.b16 %v2103
        %v2232 = vunpack.c.l.b16 %v2104
        %v2233 = vunpack.c.l.b16 %v2105
        %v2234 = vunpack.c.l.b16 %v2106
        %v2235 = vunpack.c.l.b16 %v2107
        %v2236 = vunpack.c.l.b16 %v2108
        %v2237 = vunpack.c.l.b16 %v2109
        %v2238 = vunpack.c.l.b16 %v2110
        %v2239 = vunpack.c.l.b16 %v2111
        %v2240 = vunpack.c.l.b16 %v2112
        %v2241 = vunpack.c.l.b16 %v2113
        %v2242 = vunpack.c.l.b16 %v2114
        %v2243 = vunpack.c.l.b16 %v2115
        %v2244 = vunpack.c.l.b16 %v2116
        %v2245 = vunpack.c.l.b16 %v2117
        %v2246 = vunpack.c.l.b16 %v2118
        %v2247 = vunpack.c.l.b16 %v2119
        %v2248 = vunpack.c.l.b16 %v2120
        %v2249 = vpack.c.b16 %v2186, %v2185
        %v2250 = vpack.c.b16 %v2188, %v2187
        %v2251 = vpack.c.b16 %v2190, %v2189
        %v2252 = vpack.c.b16 %v2192, %v2191
        %v2253 = vpack.c.b16 %v2194, %v2193
        %v2254 = vpack.c.b16 %v2196, %v2195
        %v2255 = vpack.c.b16 %v2198, %v2197
        %v2256 = vpack.c.b16 %v2200, %v2199
        %v2257 = vpack.c.b16 %v2202, %v2201
        %v2258 = vpack.c.b16 %v2204, %v2203
        %v2259 = vpack.c.b16 %v2206, %v2205
        %v2260 = vpack.c.b16 %v2208, %v2207
        %v2261 = vpack.c.b16 %v2210, %v2209
        %v2262 = vpack.c.b16 %v2212, %v2211
        %v2263 = vpack.c.b16 %v2214, %v2213
        %v2264 = vpack.c.b16 %v2216, %v2215
        %v2265 = vpack.c.b16 %v2218, %v2217
        %v2266 = vpack.c.b16 %v2220, %v2219
        %v2267 = vpack.c.b16 %v2222, %v2221
        %v2268 = vpack.c.b16 %v2224, %v2223
        %v2269 = vpack.c.b16 %v2226, %v2225
        %v2270 = vpack.c.b16 %v2228, %v2227
        %v2271 = vpack.c.b16 %v2230, %v2229
        %v2272 = vpack.c.b16 %v2232, %v2231
        %v2273 = vpack.c.b16 %v2234, %v2233
        %v2274 = vpack.c.b16 %v2236, %v2235
        %v2275 = vpack.c.b16 %v2238, %v2237
        %v2276 = vpack.c.b16 %v2240, %v2239
        %v2277 = vpack.c.b16 %v2242, %v2241
        %v2278 = vpack.c.b16 %v2244, %v2243
        %v2279 = vpack.c.b16 %v2246, %v2245
        %v2280 = vpack.c.b16 %v2248, %v2247
        %2313 = vmatprep.subr.bf16.mxu0 0
        %2314 = vmatpush1.bf16.msra.mxu0 %v2256
        %2315 = vmatprep.subr.bf16.mxu0 0
        %2316 = vmatpush1.bf16.msra.mxu0 %v2255
        %2317 = vmatprep.subr.bf16.mxu0 0
        %2318 = vmatpush1.bf16.msra.mxu0 %v2254
        %2319 = vmatprep.subr.bf16.mxu0 0
        %2320 = vmatpush1.bf16.msra.mxu0 %v2253
        %2321 = vmatprep.subr.bf16.mxu0 0
        %2322 = vmatpush1.bf16.msra.mxu0 %v2252
        %2323 = vmatprep.subr.bf16.mxu0 0
        %2324 = vmatpush1.bf16.msra.mxu0 %v2251
        %2325 = vmatprep.subr.bf16.mxu0 0
        %2326 = vmatpush1.bf16.msra.mxu0 %v2250
        %2327 = vmatprep.subr.bf16.mxu0 0
        %2328 = vmatpush1.bf16.msra.mxu0 %v2249
        %2329 = vmatprep.subr.bf16.mxu0 0
        %2330 = vmatpush2.bf16.msra.mxu0 %v2264
        %2331 = vmatprep.subr.bf16.mxu0 0
        %2332 = vmatpush2.bf16.msra.mxu0 %v2263
        %2333 = vmatprep.subr.bf16.mxu0 0
        %2334 = vmatpush2.bf16.msra.mxu0 %v2262
        %2335 = vmatprep.subr.bf16.mxu0 0
        %2336 = vmatpush2.bf16.msra.mxu0 %v2261
        %2337 = vmatprep.subr.bf16.mxu0 0
        %2338 = vmatpush2.bf16.msra.mxu0 %v2260
        %2339 = vmatprep.subr.bf16.mxu0 0
        %2340 = vmatpush2.bf16.msra.mxu0 %v2259
        %2341 = vmatprep.subr.bf16.mxu0 0
        %2342 = vmatpush2.bf16.msra.mxu0 %v2258
        %2343 = vmatprep.subr.bf16.mxu0 0
        %2344 = vmatpush2.bf16.msra.mxu0 %v2257
        %2345 = vmatprep.mubr.bf16.mxu0 %v1943
        %2346 = vmatmul.mubr.bf16.gmra.mxu0 %v1895
        %v2347 = vpop.f32.mrf.mxu0
        %v2348 = vadd.f32 %v608, %v2347
        %v2349 = vpop.f32.mrf.mxu0
        %v2350 = vpop.f32.mrf.mxu0
        %v2351 = vadd.f32 %v608, %v2350
        %v2352 = vpop.f32.mrf.mxu0
        %2353 = vmatprep.mubr.bf16.mxu0 %v1944
        %2354 = vmatmul.mubr.bf16.gmra.mxu0 %v1896
        %v2355 = vpop.f32.mrf.mxu0
        %v2356 = vadd.f32 %v608, %v2355
        %v2357 = vpop.f32.mrf.mxu0
        %v2358 = vpop.f32.mrf.mxu0
        %v2359 = vadd.f32 %v608, %v2358
        %v2360 = vpop.f32.mrf.mxu0
        %2361 = vmatprep.mubr.bf16.mxu0 %v1945
        %2362 = vmatmul.mubr.bf16.gmra.mxu0 %v1897
        %v2363 = vpop.f32.mrf.mxu0
        %v2364 = vadd.f32 %v608, %v2363
        %v2365 = vpop.f32.mrf.mxu0
        %v2366 = vpop.f32.mrf.mxu0
        %v2367 = vadd.f32 %v608, %v2366
        %v2368 = vpop.f32.mrf.mxu0
        %2369 = vmatprep.mubr.bf16.mxu0 %v1946
        %2370 = vmatmul.mubr.bf16.gmra.mxu0 %v1898
        %v2371 = vpop.f32.mrf.mxu0
        %v2372 = vadd.f32 %v608, %v2371
        %v2373 = vpop.f32.mrf.mxu0
        %v2374 = vpop.f32.mrf.mxu0
        %v2375 = vadd.f32 %v608, %v2374
        %v2376 = vpop.f32.mrf.mxu0
        %2377 = vmatprep.mubr.bf16.mxu0 %v1947
        %2378 = vmatmul.mubr.bf16.gmra.mxu0 %v1899
        %v2379 = vpop.f32.mrf.mxu0
        %v2380 = vadd.f32 %v608, %v2379
        %v2381 = vpop.f32.mrf.mxu0
        %v2382 = vpop.f32.mrf.mxu0
        %v2383 = vadd.f32 %v608, %v2382
        %v2384 = vpop.f32.mrf.mxu0
        %2385 = vmatprep.mubr.bf16.mxu0 %v1948
        %2386 = vmatmul.mubr.bf16.gmra.mxu0 %v1900
        %v2387 = vpop.f32.mrf.mxu0
        %v2388 = vadd.f32 %v608, %v2387
        %v2389 = vpop.f32.mrf.mxu0
        %v2390 = vpop.f32.mrf.mxu0
        %v2391 = vadd.f32 %v608, %v2390
        %v2392 = vpop.f32.mrf.mxu0
        %2393 = vmatprep.mubr.bf16.mxu0 %v1949
        %2394 = vmatmul.mubr.bf16.gmra.mxu0 %v1901
        %v2395 = vpop.f32.mrf.mxu0
        %v2396 = vadd.f32 %v608, %v2395
        %v2397 = vpop.f32.mrf.mxu0
        %v2398 = vpop.f32.mrf.mxu0
        %v2399 = vadd.f32 %v608, %v2398
        %v2400 = vpop.f32.mrf.mxu0
        %2401 = vmatprep.mubr.bf16.mxu0 %v1950
        %2402 = vmatmul.mubr.bf16.gmra.mxu0 %v1902
        %v2403 = vpop.f32.mrf.mxu0
        %v2404 = vadd.f32 %v608, %v2403
        %v2405 = vpop.f32.mrf.mxu0
        %v2406 = vpop.f32.mrf.mxu0
        %v2407 = vadd.f32 %v608, %v2406
        %v2408 = vpop.f32.mrf.mxu0
        %2409 = vmatprep.mubr.bf16.mxu0 %v1951
        %2410 = vmatmul.mubr.bf16.gmra.mxu0 %v1903
        %v2411 = vpop.f32.mrf.mxu0
        %v2412 = vadd.f32 %v608, %v2411
        %v2413 = vpop.f32.mrf.mxu0
        %v2414 = vpop.f32.mrf.mxu0
        %v2415 = vadd.f32 %v608, %v2414
        %v2416 = vpop.f32.mrf.mxu0
        %2417 = vmatprep.mubr.bf16.mxu0 %v1952
        %2418 = vmatmul.mubr.bf16.gmra.mxu0 %v1904
        %v2419 = vpop.f32.mrf.mxu0
        %v2420 = vadd.f32 %v608, %v2419
        %v2421 = vpop.f32.mrf.mxu0
        %v2422 = vpop.f32.mrf.mxu0
        %v2423 = vadd.f32 %v608, %v2422
        %v2424 = vpop.f32.mrf.mxu0
        %2425 = vmatprep.mubr.bf16.mxu0 %v1953
        %2426 = vmatmul.mubr.bf16.gmra.mxu0 %v1905
        %v2427 = vpop.f32.mrf.mxu0
        %v2428 = vadd.f32 %v608, %v2427
        %v2429 = vpop.f32.mrf.mxu0
        %v2430 = vpop.f32.mrf.mxu0
        %v2431 = vadd.f32 %v608, %v2430
        %v2432 = vpop.f32.mrf.mxu0
        %2433 = vmatprep.mubr.bf16.mxu0 %v1954
        %2434 = vmatmul.mubr.bf16.gmra.mxu0 %v1906
        %v2435 = vpop.f32.mrf.mxu0
        %v2436 = vadd.f32 %v608, %v2435
        %v2437 = vpop.f32.mrf.mxu0
        %v2438 = vpop.f32.mrf.mxu0
        %v2439 = vadd.f32 %v608, %v2438
        %v2440 = vpop.f32.mrf.mxu0
        %2441 = vmatprep.mubr.bf16.mxu0 %v1955
        %2442 = vmatmul.mubr.bf16.gmra.mxu0 %v1907
        %v2443 = vpop.f32.mrf.mxu0
        %v2444 = vadd.f32 %v608, %v2443
        %v2445 = vpop.f32.mrf.mxu0
        %v2446 = vpop.f32.mrf.mxu0
        %v2447 = vadd.f32 %v608, %v2446
        %v2448 = vpop.f32.mrf.mxu0
        %2449 = vmatprep.mubr.bf16.mxu0 %v1956
        %2450 = vmatmul.mubr.bf16.gmra.mxu0 %v1908
        %v2451 = vpop.f32.mrf.mxu0
        %v2452 = vadd.f32 %v608, %v2451
        %v2453 = vpop.f32.mrf.mxu0
        %v2454 = vpop.f32.mrf.mxu0
        %v2455 = vadd.f32 %v608, %v2454
        %v2456 = vpop.f32.mrf.mxu0
        %2457 = vmatprep.mubr.bf16.mxu0 %v1957
        %2458 = vmatmul.mubr.bf16.gmra.mxu0 %v1909
        %v2459 = vpop.f32.mrf.mxu0
        %v2460 = vadd.f32 %v608, %v2459
        %v2461 = vpop.f32.mrf.mxu0
        %v2462 = vpop.f32.mrf.mxu0
        %v2463 = vadd.f32 %v608, %v2462
        %v2464 = vpop.f32.mrf.mxu0
        %2465 = vmatprep.mubr.bf16.mxu0 %v1958
        %2466 = vmatmul.mubr.bf16.gmra.mxu0 %v1910
        %v2467 = vpop.f32.mrf.mxu0
        %v2468 = vadd.f32 %v608, %v2467
        %v2469 = vpop.f32.mrf.mxu0
        %v2470 = vpop.f32.mrf.mxu0
        %v2471 = vadd.f32 %v608, %v2470
        %v2472 = vpop.f32.mrf.mxu0
        %2473 = vdwg.mxu0
        %2474 = vmatprep.subr.bf16.mxu0 0
        %2475 = vmatpush1.bf16.msra.mxu0 %v2272
        %2476 = vmatprep.subr.bf16.mxu0 0
        %2477 = vmatpush1.bf16.msra.mxu0 %v2271
        %2478 = vmatprep.subr.bf16.mxu0 0
        %2479 = vmatpush1.bf16.msra.mxu0 %v2270
        %2480 = vmatprep.subr.bf16.mxu0 0
        %2481 = vmatpush1.bf16.msra.mxu0 %v2269
        %2482 = vmatprep.subr.bf16.mxu0 0
        %2483 = vmatpush1.bf16.msra.mxu0 %v2268
        %2484 = vmatprep.subr.bf16.mxu0 0
        %2485 = vmatpush1.bf16.msra.mxu0 %v2267
        %2486 = vmatprep.subr.bf16.mxu0 0
        %2487 = vmatpush1.bf16.msra.mxu0 %v2266
        %2488 = vmatprep.subr.bf16.mxu0 0
        %2489 = vmatpush1.bf16.msra.mxu0 %v2265
        %2490 = vmatprep.subr.bf16.mxu0 0
        %2491 = vmatpush2.bf16.msra.mxu0 %v2280
        %2492 = vmatprep.subr.bf16.mxu0 0
        %2493 = vmatpush2.bf16.msra.mxu0 %v2279
        %2494 = vmatprep.subr.bf16.mxu0 0
        %2495 = vmatpush2.bf16.msra.mxu0 %v2278
        %2496 = vmatprep.subr.bf16.mxu0 0
        %2497 = vmatpush2.bf16.msra.mxu0 %v2277
        %2498 = vmatprep.subr.bf16.mxu0 0
        %2499 = vmatpush2.bf16.msra.mxu0 %v2276
        %2500 = vmatprep.subr.bf16.mxu0 0
        %2501 = vmatpush2.bf16.msra.mxu0 %v2275
        %2502 = vmatprep.subr.bf16.mxu0 0
        %2503 = vmatpush2.bf16.msra.mxu0 %v2274
        %2504 = vmatprep.subr.bf16.mxu0 0
        %2505 = vmatpush2.bf16.msra.mxu0 %v2273
        %2506 = vmatprep.mubr.bf16.mxu0 %v2040
        %2507 = vmatmul.mubr.bf16.gmra.mxu0 %v1992
        %v2508 = vpop.f32.mrf.mxu0
        %v2509 = vadd.f32 %v2348, %v2508
        %v2510 = vpop.f32.mrf.mxu0
        %v2511 = vpop.f32.mrf.mxu0
        %v2512 = vadd.f32 %v2351, %v2511
        %v2513 = vpop.f32.mrf.mxu0
        %2514 = vmatprep.mubr.bf16.mxu0 %v2041
        %2515 = vmatmul.mubr.bf16.gmra.mxu0 %v1993
        %v2516 = vpop.f32.mrf.mxu0
        %v2517 = vadd.f32 %v2356, %v2516
        %v2518 = vpop.f32.mrf.mxu0
        %v2519 = vpop.f32.mrf.mxu0
        %v2520 = vadd.f32 %v2359, %v2519
        %v2521 = vpop.f32.mrf.mxu0
        %2522 = vmatprep.mubr.bf16.mxu0 %v2042
        %2523 = vmatmul.mubr.bf16.gmra.mxu0 %v1994
        %v2524 = vpop.f32.mrf.mxu0
        %v2525 = vadd.f32 %v2364, %v2524
        %v2526 = vpop.f32.mrf.mxu0
        %v2527 = vpop.f32.mrf.mxu0
        %v2528 = vadd.f32 %v2367, %v2527
        %v2529 = vpop.f32.mrf.mxu0
        %2530 = vmatprep.mubr.bf16.mxu0 %v2043
        %2531 = vmatmul.mubr.bf16.gmra.mxu0 %v1995
        %v2532 = vpop.f32.mrf.mxu0
        %v2533 = vadd.f32 %v2372, %v2532
        %v2534 = vpop.f32.mrf.mxu0
        %v2535 = vpop.f32.mrf.mxu0
        %v2536 = vadd.f32 %v2375, %v2535
        %v2537 = vpop.f32.mrf.mxu0
        %2538 = vmatprep.mubr.bf16.mxu0 %v2044
        %2539 = vmatmul.mubr.bf16.gmra.mxu0 %v1996
        %v2540 = vpop.f32.mrf.mxu0
        %v2541 = vadd.f32 %v2380, %v2540
        %v2542 = vpop.f32.mrf.mxu0
        %v2543 = vpop.f32.mrf.mxu0
        %v2544 = vadd.f32 %v2383, %v2543
        %v2545 = vpop.f32.mrf.mxu0
        %2546 = vmatprep.mubr.bf16.mxu0 %v2045
        %2547 = vmatmul.mubr.bf16.gmra.mxu0 %v1997
        %v2548 = vpop.f32.mrf.mxu0
        %v2549 = vadd.f32 %v2388, %v2548
        %v2550 = vpop.f32.mrf.mxu0
        %v2551 = vpop.f32.mrf.mxu0
        %v2552 = vadd.f32 %v2391, %v2551
        %v2553 = vpop.f32.mrf.mxu0
        %2554 = vmatprep.mubr.bf16.mxu0 %v2046
        %2555 = vmatmul.mubr.bf16.gmra.mxu0 %v1998
        %v2556 = vpop.f32.mrf.mxu0
        %v2557 = vadd.f32 %v2396, %v2556
        %v2558 = vpop.f32.mrf.mxu0
        %v2559 = vpop.f32.mrf.mxu0
        %v2560 = vadd.f32 %v2399, %v2559
        %v2561 = vpop.f32.mrf.mxu0
        %2562 = vmatprep.mubr.bf16.mxu0 %v2047
        %2563 = vmatmul.mubr.bf16.gmra.mxu0 %v1999
        %v2564 = vpop.f32.mrf.mxu0
        %v2565 = vadd.f32 %v2404, %v2564
        %v2566 = vpop.f32.mrf.mxu0
        %v2567 = vpop.f32.mrf.mxu0
        %v2568 = vadd.f32 %v2407, %v2567
        %v2569 = vpop.f32.mrf.mxu0
        %2570 = vmatprep.mubr.bf16.mxu0 %v2048
        %2571 = vmatmul.mubr.bf16.gmra.mxu0 %v2000
        %v2572 = vpop.f32.mrf.mxu0
        %v2573 = vadd.f32 %v2412, %v2572
        %v2574 = vpop.f32.mrf.mxu0
        %v2575 = vpop.f32.mrf.mxu0
        %v2576 = vadd.f32 %v2415, %v2575
        %v2577 = vpop.f32.mrf.mxu0
        %2578 = vmatprep.mubr.bf16.mxu0 %v2049
        %2579 = vmatmul.mubr.bf16.gmra.mxu0 %v2001
        %v2580 = vpop.f32.mrf.mxu0
        %v2581 = vadd.f32 %v2420, %v2580
        %v2582 = vpop.f32.mrf.mxu0
        %v2583 = vpop.f32.mrf.mxu0
        %v2584 = vadd.f32 %v2423, %v2583
        %v2585 = vpop.f32.mrf.mxu0
        %2586 = vmatprep.mubr.bf16.mxu0 %v2050
        %2587 = vmatmul.mubr.bf16.gmra.mxu0 %v2002
        %v2588 = vpop.f32.mrf.mxu0
        %v2589 = vadd.f32 %v2428, %v2588
        %v2590 = vpop.f32.mrf.mxu0
        %v2591 = vpop.f32.mrf.mxu0
        %v2592 = vadd.f32 %v2431, %v2591
        %v2593 = vpop.f32.mrf.mxu0
        %2594 = vmatprep.mubr.bf16.mxu0 %v2051
        %2595 = vmatmul.mubr.bf16.gmra.mxu0 %v2003
        %v2596 = vpop.f32.mrf.mxu0
        %v2597 = vadd.f32 %v2436, %v2596
        %v2598 = vpop.f32.mrf.mxu0
        %v2599 = vpop.f32.mrf.mxu0
        %v2600 = vadd.f32 %v2439, %v2599
        %v2601 = vpop.f32.mrf.mxu0
        %2602 = vmatprep.mubr.bf16.mxu0 %v2052
        %2603 = vmatmul.mubr.bf16.gmra.mxu0 %v2004
        %v2604 = vpop.f32.mrf.mxu0
        %v2605 = vadd.f32 %v2444, %v2604
        %v2606 = vpop.f32.mrf.mxu0
        %v2607 = vpop.f32.mrf.mxu0
        %v2608 = vadd.f32 %v2447, %v2607
        %v2609 = vpop.f32.mrf.mxu0
        %2610 = vmatprep.mubr.bf16.mxu0 %v2053
        %2611 = vmatmul.mubr.bf16.gmra.mxu0 %v2005
        %v2612 = vpop.f32.mrf.mxu0
        %v2613 = vadd.f32 %v2452, %v2612
        %v2614 = vpop.f32.mrf.mxu0
        %v2615 = vpop.f32.mrf.mxu0
        %v2616 = vadd.f32 %v2455, %v2615
        %v2617 = vpop.f32.mrf.mxu0
        %2618 = vmatprep.mubr.bf16.mxu0 %v2054
        %2619 = vmatmul.mubr.bf16.gmra.mxu0 %v2006
        %v2620 = vpop.f32.mrf.mxu0
        %v2621 = vadd.f32 %v2460, %v2620
        %v2622 = vpop.f32.mrf.mxu0
        %v2623 = vpop.f32.mrf.mxu0
        %v2624 = vadd.f32 %v2463, %v2623
        %v2625 = vpop.f32.mrf.mxu0
        %2626 = vmatprep.mubr.bf16.mxu0 %v2055
        %2627 = vmatmul.mubr.bf16.gmra.mxu0 %v2007
        %v2628 = vpop.f32.mrf.mxu0
        %v2629 = vadd.f32 %v2468, %v2628
        %v2630 = vpop.f32.mrf.mxu0
        %v2631 = vpop.f32.mrf.mxu0
        %v2632 = vadd.f32 %v2471, %v2631
        %v2633 = vpop.f32.mrf.mxu0
        %2634 = vdwg.mxu0
        %v2635 = vld [vmem:[%s314 + $0x9] sm:$0xff]
        %v2636 = vld [vmem:[%s314 + $0x11] sm:$0xff]
        %v2637 = vld [vmem:[%s314 + $0x29] sm:$0xff]
        %v2638 = vld [vmem:[%s314 + $0x31] sm:$0xff]
        %v2639 = vld [vmem:[%s314 + $0x49] sm:$0xff]
        %v2640 = vld [vmem:[%s314 + $0x51] sm:$0xff]
        %v2641 = vld [vmem:[%s314 + $0x69] sm:$0xff]
        %v2642 = vld [vmem:[%s314 + $0x71] sm:$0xff]
        %v2643 = vld [vmem:[%s314 + $0x89] sm:$0xff]
        %v2644 = vld [vmem:[%s314 + $0x91] sm:$0xff]
        %v2645 = vld [vmem:[%s314 + $0xa9] sm:$0xff]
        %v2646 = vld [vmem:[%s314 + $0xb1] sm:$0xff]
        %v2647 = vld [vmem:[%s314 + $0xc9] sm:$0xff]
        %v2648 = vld [vmem:[%s314 + $0xd1] sm:$0xff]
        %v2649 = vld [vmem:[%s314 + $0xe9] sm:$0xff]
        %v2650 = vld [vmem:[%s314 + $0xf1] sm:$0xff]
        %v2651 = vld [vmem:[%s314 + $0x109] sm:$0xff]
        %v2652 = vld [vmem:[%s314 + $0x111] sm:$0xff]
        %v2653 = vld [vmem:[%s314 + $0x129] sm:$0xff]
        %v2654 = vld [vmem:[%s314 + $0x131] sm:$0xff]
        %v2655 = vld [vmem:[%s314 + $0x149] sm:$0xff]
        %v2656 = vld [vmem:[%s314 + $0x151] sm:$0xff]
        %v2657 = vld [vmem:[%s314 + $0x169] sm:$0xff]
        %v2658 = vld [vmem:[%s314 + $0x171] sm:$0xff]
        %v2659 = vld [vmem:[%s314 + $0x189] sm:$0xff]
        %v2660 = vld [vmem:[%s314 + $0x191] sm:$0xff]
        %v2661 = vld [vmem:[%s314 + $0x1a9] sm:$0xff]
        %v2662 = vld [vmem:[%s314 + $0x1b1] sm:$0xff]
        %v2663 = vld [vmem:[%s314 + $0x1c9] sm:$0xff]
        %v2664 = vld [vmem:[%s314 + $0x1d1] sm:$0xff]
        %v2665 = vld [vmem:[%s314 + $0x1e9] sm:$0xff]
        %v2666 = vld [vmem:[%s314 + $0x1f1] sm:$0xff]
        %v2667 = vpack.c.bf16 %v2636, %v2635
        %v2668 = vpack.c.bf16 %v2638, %v2637
        %v2669 = vpack.c.bf16 %v2640, %v2639
        %v2670 = vpack.c.bf16 %v2642, %v2641
        %v2671 = vpack.c.bf16 %v2644, %v2643
        %v2672 = vpack.c.bf16 %v2646, %v2645
        %v2673 = vpack.c.bf16 %v2648, %v2647
        %v2674 = vpack.c.bf16 %v2650, %v2649
        %v2675 = vpack.c.bf16 %v2652, %v2651
        %v2676 = vpack.c.bf16 %v2654, %v2653
        %v2677 = vpack.c.bf16 %v2656, %v2655
        %v2678 = vpack.c.bf16 %v2658, %v2657
        %v2679 = vpack.c.bf16 %v2660, %v2659
        %v2680 = vpack.c.bf16 %v2662, %v2661
        %v2681 = vpack.c.bf16 %v2664, %v2663
        %v2682 = vpack.c.bf16 %v2666, %v2665
        %v2683 = vld [vmem:[%s1959 + $0x9] sm:$0xff]
        %v2684 = vld [vmem:[%s1959 + $0x11] sm:$0xff]
        %v2685 = vld [vmem:[%s1959 + $0x29] sm:$0xff]
        %v2686 = vld [vmem:[%s1959 + $0x31] sm:$0xff]
        %v2687 = vld [vmem:[%s1959 + $0x49] sm:$0xff]
        %v2688 = vld [vmem:[%s1959 + $0x51] sm:$0xff]
        %v2689 = vld [vmem:[%s1959 + $0x69] sm:$0xff]
        %v2690 = vld [vmem:[%s1959 + $0x71] sm:$0xff]
        %v2691 = vld [vmem:[%s1959 + $0x89] sm:$0xff]
        %v2692 = vld [vmem:[%s1959 + $0x91] sm:$0xff]
        %v2693 = vld [vmem:[%s1959 + $0xa9] sm:$0xff]
        %v2694 = vld [vmem:[%s1959 + $0xb1] sm:$0xff]
        %v2695 = vld [vmem:[%s1959 + $0xc9] sm:$0xff]
        %v2696 = vld [vmem:[%s1959 + $0xd1] sm:$0xff]
        %v2697 = vld [vmem:[%s1959 + $0xe9] sm:$0xff]
        %v2698 = vld [vmem:[%s1959 + $0xf1] sm:$0xff]
        %v2699 = vld [vmem:[%s1959 + $0x109] sm:$0xff]
        %v2700 = vld [vmem:[%s1959 + $0x111] sm:$0xff]
        %v2701 = vld [vmem:[%s1959 + $0x129] sm:$0xff]
        %v2702 = vld [vmem:[%s1959 + $0x131] sm:$0xff]
        %v2703 = vld [vmem:[%s1959 + $0x149] sm:$0xff]
        %v2704 = vld [vmem:[%s1959 + $0x151] sm:$0xff]
        %v2705 = vld [vmem:[%s1959 + $0x169] sm:$0xff]
        %v2706 = vld [vmem:[%s1959 + $0x171] sm:$0xff]
        %v2707 = vld [vmem:[%s1959 + $0x189] sm:$0xff]
        %v2708 = vld [vmem:[%s1959 + $0x191] sm:$0xff]
        %v2709 = vld [vmem:[%s1959 + $0x1a9] sm:$0xff]
        %v2710 = vld [vmem:[%s1959 + $0x1b1] sm:$0xff]
        %v2711 = vld [vmem:[%s1959 + $0x1c9] sm:$0xff]
        %v2712 = vld [vmem:[%s1959 + $0x1d1] sm:$0xff]
        %v2713 = vld [vmem:[%s1959 + $0x1e9] sm:$0xff]
        %v2714 = vld [vmem:[%s1959 + $0x1f1] sm:$0xff]
        %v2715 = vpack.c.bf16 %v2684, %v2683
        %v2716 = vpack.c.bf16 %v2686, %v2685
        %v2717 = vpack.c.bf16 %v2688, %v2687
        %v2718 = vpack.c.bf16 %v2690, %v2689
        %v2719 = vpack.c.bf16 %v2692, %v2691
        %v2720 = vpack.c.bf16 %v2694, %v2693
        %v2721 = vpack.c.bf16 %v2696, %v2695
        %v2722 = vpack.c.bf16 %v2698, %v2697
        %v2723 = vpack.c.bf16 %v2700, %v2699
        %v2724 = vpack.c.bf16 %v2702, %v2701
        %v2725 = vpack.c.bf16 %v2704, %v2703
        %v2726 = vpack.c.bf16 %v2706, %v2705
        %v2727 = vpack.c.bf16 %v2708, %v2707
        %v2728 = vpack.c.bf16 %v2710, %v2709
        %v2729 = vpack.c.bf16 %v2712, %v2711
        %v2730 = vpack.c.bf16 %v2714, %v2713
        %s2731 = scalar_lea.vmem [#allocation6], 768
        %v2732 = vld [vmem:[%s2731] sm:$0xf]
        %v2733 = vld [vmem:[%s2731 + $0x4] sm:$0xf]
        %v2734 = vld [vmem:[%s2731 + $0x8] sm:$0xf]
        %v2735 = vld [vmem:[%s2731 + $0xc] sm:$0xf]
        %v2736 = vld [vmem:[%s2731 + $0x10] sm:$0xf]
        %v2737 = vld [vmem:[%s2731 + $0x14] sm:$0xf]
        %v2738 = vld [vmem:[%s2731 + $0x18] sm:$0xf]
        %v2739 = vld [vmem:[%s2731 + $0x1c] sm:$0xf]
        %v2740 = vld [vmem:[%s2731 + $0x20] sm:$0xf]
        %v2741 = vld [vmem:[%s2731 + $0x24] sm:$0xf]
        %v2742 = vld [vmem:[%s2731 + $0x28] sm:$0xf]
        %v2743 = vld [vmem:[%s2731 + $0x2c] sm:$0xf]
        %v2744 = vld [vmem:[%s2731 + $0x30] sm:$0xf]
        %v2745 = vld [vmem:[%s2731 + $0x34] sm:$0xf]
        %v2746 = vld [vmem:[%s2731 + $0x38] sm:$0xf]
        %v2747 = vld [vmem:[%s2731 + $0x3c] sm:$0xf]
        %v2748 = vld [vmem:[%s2731 + $0x40] sm:$0xf]
        %v2749 = vld [vmem:[%s2731 + $0x44] sm:$0xf]
        %v2750 = vld [vmem:[%s2731 + $0x48] sm:$0xf]
        %v2751 = vld [vmem:[%s2731 + $0x4c] sm:$0xf]
        %v2752 = vld [vmem:[%s2731 + $0x50] sm:$0xf]
        %v2753 = vld [vmem:[%s2731 + $0x54] sm:$0xf]
        %v2754 = vld [vmem:[%s2731 + $0x58] sm:$0xf]
        %v2755 = vld [vmem:[%s2731 + $0x5c] sm:$0xf]
        %v2756 = vld [vmem:[%s2731 + $0x60] sm:$0xf]
        %v2757 = vld [vmem:[%s2731 + $0x64] sm:$0xf]
        %v2758 = vld [vmem:[%s2731 + $0x68] sm:$0xf]
        %v2759 = vld [vmem:[%s2731 + $0x6c] sm:$0xf]
        %v2760 = vld [vmem:[%s2731 + $0x70] sm:$0xf]
        %v2761 = vld [vmem:[%s2731 + $0x74] sm:$0xf]
        %v2762 = vld [vmem:[%s2731 + $0x78] sm:$0xf]
        %v2763 = vld [vmem:[%s2731 + $0x7c] sm:$0xf]
        %v2764 = vld [vmem:[%s2731 + $0x80] sm:$0xf]
        %v2765 = vld [vmem:[%s2731 + $0x84] sm:$0xf]
        %v2766 = vld [vmem:[%s2731 + $0x88] sm:$0xf]
        %v2767 = vld [vmem:[%s2731 + $0x8c] sm:$0xf]
        %v2768 = vld [vmem:[%s2731 + $0x90] sm:$0xf]
        %v2769 = vld [vmem:[%s2731 + $0x94] sm:$0xf]
        %v2770 = vld [vmem:[%s2731 + $0x98] sm:$0xf]
        %v2771 = vld [vmem:[%s2731 + $0x9c] sm:$0xf]
        %v2772 = vld [vmem:[%s2731 + $0xa0] sm:$0xf]
        %v2773 = vld [vmem:[%s2731 + $0xa4] sm:$0xf]
        %v2774 = vld [vmem:[%s2731 + $0xa8] sm:$0xf]
        %v2775 = vld [vmem:[%s2731 + $0xac] sm:$0xf]
        %v2776 = vld [vmem:[%s2731 + $0xb0] sm:$0xf]
        %v2777 = vld [vmem:[%s2731 + $0xb4] sm:$0xf]
        %v2778 = vld [vmem:[%s2731 + $0xb8] sm:$0xf]
        %v2779 = vld [vmem:[%s2731 + $0xbc] sm:$0xf]
        %v2780 = vld [vmem:[%s2731 + $0xc0] sm:$0xf]
        %v2781 = vld [vmem:[%s2731 + $0xc4] sm:$0xf]
        %v2782 = vld [vmem:[%s2731 + $0xc8] sm:$0xf]
        %v2783 = vld [vmem:[%s2731 + $0xcc] sm:$0xf]
        %v2784 = vld [vmem:[%s2731 + $0xd0] sm:$0xf]
        %v2785 = vld [vmem:[%s2731 + $0xd4] sm:$0xf]
        %v2786 = vld [vmem:[%s2731 + $0xd8] sm:$0xf]
        %v2787 = vld [vmem:[%s2731 + $0xdc] sm:$0xf]
        %v2788 = vld [vmem:[%s2731 + $0xe0] sm:$0xf]
        %v2789 = vld [vmem:[%s2731 + $0xe4] sm:$0xf]
        %v2790 = vld [vmem:[%s2731 + $0xe8] sm:$0xf]
        %v2791 = vld [vmem:[%s2731 + $0xec] sm:$0xf]
        %v2792 = vld [vmem:[%s2731 + $0xf0] sm:$0xf]
        %v2793 = vld [vmem:[%s2731 + $0xf4] sm:$0xf]
        %v2794 = vld [vmem:[%s2731 + $0xf8] sm:$0xf]
        %v2795 = vld [vmem:[%s2731 + $0xfc] sm:$0xf]
        %v2860 = vunpack.c.l.b16 %v2732
        %v2861 = vunpack.c.l.b16 %v2733
        %v2862 = vunpack.c.l.b16 %v2734
        %v2863 = vunpack.c.l.b16 %v2735
        %v2864 = vunpack.c.l.b16 %v2736
        %v2865 = vunpack.c.l.b16 %v2737
        %v2866 = vunpack.c.l.b16 %v2738
        %v2867 = vunpack.c.l.b16 %v2739
        %v2868 = vunpack.c.l.b16 %v2740
        %v2869 = vunpack.c.l.b16 %v2741
        %v2870 = vunpack.c.l.b16 %v2742
        %v2871 = vunpack.c.l.b16 %v2743
        %v2872 = vunpack.c.l.b16 %v2744
        %v2873 = vunpack.c.l.b16 %v2745
        %v2874 = vunpack.c.l.b16 %v2746
        %v2875 = vunpack.c.l.b16 %v2747
        %v2876 = vunpack.c.l.b16 %v2748
        %v2877 = vunpack.c.l.b16 %v2749
        %v2878 = vunpack.c.l.b16 %v2750
        %v2879 = vunpack.c.l.b16 %v2751
        %v2880 = vunpack.c.l.b16 %v2752
        %v2881 = vunpack.c.l.b16 %v2753
        %v2882 = vunpack.c.l.b16 %v2754
        %v2883 = vunpack.c.l.b16 %v2755
        %v2884 = vunpack.c.l.b16 %v2756
        %v2885 = vunpack.c.l.b16 %v2757
        %v2886 = vunpack.c.l.b16 %v2758
        %v2887 = vunpack.c.l.b16 %v2759
        %v2888 = vunpack.c.l.b16 %v2760
        %v2889 = vunpack.c.l.b16 %v2761
        %v2890 = vunpack.c.l.b16 %v2762
        %v2891 = vunpack.c.l.b16 %v2763
        %v2892 = vunpack.c.l.b16 %v2764
        %v2893 = vunpack.c.l.b16 %v2765
        %v2894 = vunpack.c.l.b16 %v2766
        %v2895 = vunpack.c.l.b16 %v2767
        %v2896 = vunpack.c.l.b16 %v2768
        %v2897 = vunpack.c.l.b16 %v2769
        %v2898 = vunpack.c.l.b16 %v2770
        %v2899 = vunpack.c.l.b16 %v2771
        %v2900 = vunpack.c.l.b16 %v2772
        %v2901 = vunpack.c.l.b16 %v2773
        %v2902 = vunpack.c.l.b16 %v2774
        %v2903 = vunpack.c.l.b16 %v2775
        %v2904 = vunpack.c.l.b16 %v2776
        %v2905 = vunpack.c.l.b16 %v2777
        %v2906 = vunpack.c.l.b16 %v2778
        %v2907 = vunpack.c.l.b16 %v2779
        %v2908 = vunpack.c.l.b16 %v2780
        %v2909 = vunpack.c.l.b16 %v2781
        %v2910 = vunpack.c.l.b16 %v2782
        %v2911 = vunpack.c.l.b16 %v2783
        %v2912 = vunpack.c.l.b16 %v2784
        %v2913 = vunpack.c.l.b16 %v2785
        %v2914 = vunpack.c.l.b16 %v2786
        %v2915 = vunpack.c.l.b16 %v2787
        %v2916 = vunpack.c.l.b16 %v2788
        %v2917 = vunpack.c.l.b16 %v2789
        %v2918 = vunpack.c.l.b16 %v2790
        %v2919 = vunpack.c.l.b16 %v2791
        %v2920 = vunpack.c.l.b16 %v2792
        %v2921 = vunpack.c.l.b16 %v2793
        %v2922 = vunpack.c.l.b16 %v2794
        %v2923 = vunpack.c.l.b16 %v2795
        %v2924 = vpack.c.b16 %v2861, %v2860
        %v2925 = vpack.c.b16 %v2863, %v2862
        %v2926 = vpack.c.b16 %v2865, %v2864
        %v2927 = vpack.c.b16 %v2867, %v2866
        %v2928 = vpack.c.b16 %v2869, %v2868
        %v2929 = vpack.c.b16 %v2871, %v2870
        %v2930 = vpack.c.b16 %v2873, %v2872
        %v2931 = vpack.c.b16 %v2875, %v2874
        %v2932 = vpack.c.b16 %v2877, %v2876
        %v2933 = vpack.c.b16 %v2879, %v2878
        %v2934 = vpack.c.b16 %v2881, %v2880
        %v2935 = vpack.c.b16 %v2883, %v2882
        %v2936 = vpack.c.b16 %v2885, %v2884
        %v2937 = vpack.c.b16 %v2887, %v2886
        %v2938 = vpack.c.b16 %v2889, %v2888
        %v2939 = vpack.c.b16 %v2891, %v2890
        %v2940 = vpack.c.b16 %v2893, %v2892
        %v2941 = vpack.c.b16 %v2895, %v2894
        %v2942 = vpack.c.b16 %v2897, %v2896
        %v2943 = vpack.c.b16 %v2899, %v2898
        %v2944 = vpack.c.b16 %v2901, %v2900
        %v2945 = vpack.c.b16 %v2903, %v2902
        %v2946 = vpack.c.b16 %v2905, %v2904
        %v2947 = vpack.c.b16 %v2907, %v2906
        %v2948 = vpack.c.b16 %v2909, %v2908
        %v2949 = vpack.c.b16 %v2911, %v2910
        %v2950 = vpack.c.b16 %v2913, %v2912
        %v2951 = vpack.c.b16 %v2915, %v2914
        %v2952 = vpack.c.b16 %v2917, %v2916
        %v2953 = vpack.c.b16 %v2919, %v2918
        %v2954 = vpack.c.b16 %v2921, %v2920
        %v2955 = vpack.c.b16 %v2923, %v2922
        %2988 = vmatprep.subr.bf16.mxu0 0
        %2989 = vmatpush1.bf16.msra.mxu0 %v2931
        %2990 = vmatprep.subr.bf16.mxu0 0
        %2991 = vmatpush1.bf16.msra.mxu0 %v2930
        %2992 = vmatprep.subr.bf16.mxu0 0
        %2993 = vmatpush1.bf16.msra.mxu0 %v2929
        %2994 = vmatprep.subr.bf16.mxu0 0
        %2995 = vmatpush1.bf16.msra.mxu0 %v2928
        %2996 = vmatprep.subr.bf16.mxu0 0
        %2997 = vmatpush1.bf16.msra.mxu0 %v2927
        %2998 = vmatprep.subr.bf16.mxu0 0
        %2999 = vmatpush1.bf16.msra.mxu0 %v2926
        %3000 = vmatprep.subr.bf16.mxu0 0
        %3001 = vmatpush1.bf16.msra.mxu0 %v2925
        %3002 = vmatprep.subr.bf16.mxu0 0
        %3003 = vmatpush1.bf16.msra.mxu0 %v2924
        %3004 = vmatprep.subr.bf16.mxu0 0
        %3005 = vmatpush2.bf16.msra.mxu0 %v2939
        %3006 = vmatprep.subr.bf16.mxu0 0
        %3007 = vmatpush2.bf16.msra.mxu0 %v2938
        %3008 = vmatprep.subr.bf16.mxu0 0
        %3009 = vmatpush2.bf16.msra.mxu0 %v2937
        %3010 = vmatprep.subr.bf16.mxu0 0
        %3011 = vmatpush2.bf16.msra.mxu0 %v2936
        %3012 = vmatprep.subr.bf16.mxu0 0
        %3013 = vmatpush2.bf16.msra.mxu0 %v2935
        %3014 = vmatprep.subr.bf16.mxu0 0
        %3015 = vmatpush2.bf16.msra.mxu0 %v2934
        %3016 = vmatprep.subr.bf16.mxu0 0
        %3017 = vmatpush2.bf16.msra.mxu0 %v2933
        %3018 = vmatprep.subr.bf16.mxu0 0
        %3019 = vmatpush2.bf16.msra.mxu0 %v2932
        %3020 = vmatprep.mubr.bf16.mxu0 %v2667
        %3021 = vmatmul.mubr.bf16.gmra.mxu0 %v1943
        %v3022 = vpop.f32.mrf.mxu0
        %v3023 = vadd.f32 %v608, %v3022
        %v3024 = vpop.f32.mrf.mxu0
        %v3025 = vpop.f32.mrf.mxu0
        %v3026 = vadd.f32 %v608, %v3025
        %v3027 = vpop.f32.mrf.mxu0
        %3028 = vmatprep.mubr.bf16.mxu0 %v2668
        %3029 = vmatmul.mubr.bf16.gmra.mxu0 %v1944
        %v3030 = vpop.f32.mrf.mxu0
        %v3031 = vadd.f32 %v608, %v3030
        %v3032 = vpop.f32.mrf.mxu0
        %v3033 = vpop.f32.mrf.mxu0
        %v3034 = vadd.f32 %v608, %v3033
        %v3035 = vpop.f32.mrf.mxu0
        %3036 = vmatprep.mubr.bf16.mxu0 %v2669
        %3037 = vmatmul.mubr.bf16.gmra.mxu0 %v1945
        %v3038 = vpop.f32.mrf.mxu0
        %v3039 = vadd.f32 %v608, %v3038
        %v3040 = vpop.f32.mrf.mxu0
        %v3041 = vpop.f32.mrf.mxu0
        %v3042 = vadd.f32 %v608, %v3041
        %v3043 = vpop.f32.mrf.mxu0
        %3044 = vmatprep.mubr.bf16.mxu0 %v2670
        %3045 = vmatmul.mubr.bf16.gmra.mxu0 %v1946
        %v3046 = vpop.f32.mrf.mxu0
        %v3047 = vadd.f32 %v608, %v3046
        %v3048 = vpop.f32.mrf.mxu0
        %v3049 = vpop.f32.mrf.mxu0
        %v3050 = vadd.f32 %v608, %v3049
        %v3051 = vpop.f32.mrf.mxu0
        %3052 = vmatprep.mubr.bf16.mxu0 %v2671
        %3053 = vmatmul.mubr.bf16.gmra.mxu0 %v1947
        %v3054 = vpop.f32.mrf.mxu0
        %v3055 = vadd.f32 %v608, %v3054
        %v3056 = vpop.f32.mrf.mxu0
        %v3057 = vpop.f32.mrf.mxu0
        %v3058 = vadd.f32 %v608, %v3057
        %v3059 = vpop.f32.mrf.mxu0
        %3060 = vmatprep.mubr.bf16.mxu0 %v2672
        %3061 = vmatmul.mubr.bf16.gmra.mxu0 %v1948
        %v3062 = vpop.f32.mrf.mxu0
        %v3063 = vadd.f32 %v608, %v3062
        %v3064 = vpop.f32.mrf.mxu0
        %v3065 = vpop.f32.mrf.mxu0
        %v3066 = vadd.f32 %v608, %v3065
        %v3067 = vpop.f32.mrf.mxu0
        %3068 = vmatprep.mubr.bf16.mxu0 %v2673
        %3069 = vmatmul.mubr.bf16.gmra.mxu0 %v1949
        %v3070 = vpop.f32.mrf.mxu0
        %v3071 = vadd.f32 %v608, %v3070
        %v3072 = vpop.f32.mrf.mxu0
        %v3073 = vpop.f32.mrf.mxu0
        %v3074 = vadd.f32 %v608, %v3073
        %v3075 = vpop.f32.mrf.mxu0
        %3076 = vmatprep.mubr.bf16.mxu0 %v2674
        %3077 = vmatmul.mubr.bf16.gmra.mxu0 %v1950
        %v3078 = vpop.f32.mrf.mxu0
        %v3079 = vadd.f32 %v608, %v3078
        %v3080 = vpop.f32.mrf.mxu0
        %v3081 = vpop.f32.mrf.mxu0
        %v3082 = vadd.f32 %v608, %v3081
        %v3083 = vpop.f32.mrf.mxu0
        %3084 = vmatprep.mubr.bf16.mxu0 %v2675
        %3085 = vmatmul.mubr.bf16.gmra.mxu0 %v1951
        %v3086 = vpop.f32.mrf.mxu0
        %v3087 = vadd.f32 %v608, %v3086
        %v3088 = vpop.f32.mrf.mxu0
        %v3089 = vpop.f32.mrf.mxu0
        %v3090 = vadd.f32 %v608, %v3089
        %v3091 = vpop.f32.mrf.mxu0
        %3092 = vmatprep.mubr.bf16.mxu0 %v2676
        %3093 = vmatmul.mubr.bf16.gmra.mxu0 %v1952
        %v3094 = vpop.f32.mrf.mxu0
        %v3095 = vadd.f32 %v608, %v3094
        %v3096 = vpop.f32.mrf.mxu0
        %v3097 = vpop.f32.mrf.mxu0
        %v3098 = vadd.f32 %v608, %v3097
        %v3099 = vpop.f32.mrf.mxu0
        %3100 = vmatprep.mubr.bf16.mxu0 %v2677
        %3101 = vmatmul.mubr.bf16.gmra.mxu0 %v1953
        %v3102 = vpop.f32.mrf.mxu0
        %v3103 = vadd.f32 %v608, %v3102
        %v3104 = vpop.f32.mrf.mxu0
        %v3105 = vpop.f32.mrf.mxu0
        %v3106 = vadd.f32 %v608, %v3105
        %v3107 = vpop.f32.mrf.mxu0
        %3108 = vmatprep.mubr.bf16.mxu0 %v2678
        %3109 = vmatmul.mubr.bf16.gmra.mxu0 %v1954
        %v3110 = vpop.f32.mrf.mxu0
        %v3111 = vadd.f32 %v608, %v3110
        %v3112 = vpop.f32.mrf.mxu0
        %v3113 = vpop.f32.mrf.mxu0
        %v3114 = vadd.f32 %v608, %v3113
        %v3115 = vpop.f32.mrf.mxu0
        %3116 = vmatprep.mubr.bf16.mxu0 %v2679
        %3117 = vmatmul.mubr.bf16.gmra.mxu0 %v1955
        %v3118 = vpop.f32.mrf.mxu0
        %v3119 = vadd.f32 %v608, %v3118
        %v3120 = vpop.f32.mrf.mxu0
        %v3121 = vpop.f32.mrf.mxu0
        %v3122 = vadd.f32 %v608, %v3121
        %v3123 = vpop.f32.mrf.mxu0
        %3124 = vmatprep.mubr.bf16.mxu0 %v2680
        %3125 = vmatmul.mubr.bf16.gmra.mxu0 %v1956
        %v3126 = vpop.f32.mrf.mxu0
        %v3127 = vadd.f32 %v608, %v3126
        %v3128 = vpop.f32.mrf.mxu0
        %v3129 = vpop.f32.mrf.mxu0
        %v3130 = vadd.f32 %v608, %v3129
        %v3131 = vpop.f32.mrf.mxu0
        %3132 = vmatprep.mubr.bf16.mxu0 %v2681
        %3133 = vmatmul.mubr.bf16.gmra.mxu0 %v1957
        %v3134 = vpop.f32.mrf.mxu0
        %v3135 = vadd.f32 %v608, %v3134
        %v3136 = vpop.f32.mrf.mxu0
        %v3137 = vpop.f32.mrf.mxu0
        %v3138 = vadd.f32 %v608, %v3137
        %v3139 = vpop.f32.mrf.mxu0
        %3140 = vmatprep.mubr.bf16.mxu0 %v2682
        %3141 = vmatmul.mubr.bf16.gmra.mxu0 %v1958
        %v3142 = vpop.f32.mrf.mxu0
        %v3143 = vadd.f32 %v608, %v3142
        %v3144 = vpop.f32.mrf.mxu0
        %v3145 = vpop.f32.mrf.mxu0
        %v3146 = vadd.f32 %v608, %v3145
        %v3147 = vpop.f32.mrf.mxu0
        %3148 = vdwg.mxu0
        %3149 = vmatprep.subr.bf16.mxu0 0
        %3150 = vmatpush1.bf16.msra.mxu0 %v2947
        %3151 = vmatprep.subr.bf16.mxu0 0
        %3152 = vmatpush1.bf16.msra.mxu0 %v2946
        %3153 = vmatprep.subr.bf16.mxu0 0
        %3154 = vmatpush1.bf16.msra.mxu0 %v2945
        %3155 = vmatprep.subr.bf16.mxu0 0
        %3156 = vmatpush1.bf16.msra.mxu0 %v2944
        %3157 = vmatprep.subr.bf16.mxu0 0
        %3158 = vmatpush1.bf16.msra.mxu0 %v2943
        %3159 = vmatprep.subr.bf16.mxu0 0
        %3160 = vmatpush1.bf16.msra.mxu0 %v2942
        %3161 = vmatprep.subr.bf16.mxu0 0
        %3162 = vmatpush1.bf16.msra.mxu0 %v2941
        %3163 = vmatprep.subr.bf16.mxu0 0
        %3164 = vmatpush1.bf16.msra.mxu0 %v2940
        %3165 = vmatprep.subr.bf16.mxu0 0
        %3166 = vmatpush2.bf16.msra.mxu0 %v2955
        %3167 = vmatprep.subr.bf16.mxu0 0
        %3168 = vmatpush2.bf16.msra.mxu0 %v2954
        %3169 = vmatprep.subr.bf16.mxu0 0
        %3170 = vmatpush2.bf16.msra.mxu0 %v2953
        %3171 = vmatprep.subr.bf16.mxu0 0
        %3172 = vmatpush2.bf16.msra.mxu0 %v2952
        %3173 = vmatprep.subr.bf16.mxu0 0
        %3174 = vmatpush2.bf16.msra.mxu0 %v2951
        %3175 = vmatprep.subr.bf16.mxu0 0
        %3176 = vmatpush2.bf16.msra.mxu0 %v2950
        %3177 = vmatprep.subr.bf16.mxu0 0
        %3178 = vmatpush2.bf16.msra.mxu0 %v2949
        %3179 = vmatprep.subr.bf16.mxu0 0
        %3180 = vmatpush2.bf16.msra.mxu0 %v2948
        %3181 = vmatprep.mubr.bf16.mxu0 %v2715
        %3182 = vmatmul.mubr.bf16.gmra.mxu0 %v2040
        %v3183 = vpop.f32.mrf.mxu0
        %v3184 = vadd.f32 %v3023, %v3183
        %v3185 = vpop.f32.mrf.mxu0
        %v3186 = vpop.f32.mrf.mxu0
        %v3187 = vadd.f32 %v3026, %v3186
        %v3188 = vpop.f32.mrf.mxu0
        %3189 = vmatprep.mubr.bf16.mxu0 %v2716
        %3190 = vmatmul.mubr.bf16.gmra.mxu0 %v2041
        %v3191 = vpop.f32.mrf.mxu0
        %v3192 = vadd.f32 %v3031, %v3191
        %v3193 = vpop.f32.mrf.mxu0
        %v3194 = vpop.f32.mrf.mxu0
        %v3195 = vadd.f32 %v3034, %v3194
        %v3196 = vpop.f32.mrf.mxu0
        %3197 = vmatprep.mubr.bf16.mxu0 %v2717
        %3198 = vmatmul.mubr.bf16.gmra.mxu0 %v2042
        %v3199 = vpop.f32.mrf.mxu0
        %v3200 = vadd.f32 %v3039, %v3199
        %v3201 = vpop.f32.mrf.mxu0
        %v3202 = vpop.f32.mrf.mxu0
        %v3203 = vadd.f32 %v3042, %v3202
        %v3204 = vpop.f32.mrf.mxu0
        %3205 = vmatprep.mubr.bf16.mxu0 %v2718
        %3206 = vmatmul.mubr.bf16.gmra.mxu0 %v2043
        %v3207 = vpop.f32.mrf.mxu0
        %v3208 = vadd.f32 %v3047, %v3207
        %v3209 = vpop.f32.mrf.mxu0
        %v3210 = vpop.f32.mrf.mxu0
        %v3211 = vadd.f32 %v3050, %v3210
        %v3212 = vpop.f32.mrf.mxu0
        %3213 = vmatprep.mubr.bf16.mxu0 %v2719
        %3214 = vmatmul.mubr.bf16.gmra.mxu0 %v2044
        %v3215 = vpop.f32.mrf.mxu0
        %v3216 = vadd.f32 %v3055, %v3215
        %v3217 = vpop.f32.mrf.mxu0
        %v3218 = vpop.f32.mrf.mxu0
        %v3219 = vadd.f32 %v3058, %v3218
        %v3220 = vpop.f32.mrf.mxu0
        %3221 = vmatprep.mubr.bf16.mxu0 %v2720
        %3222 = vmatmul.mubr.bf16.gmra.mxu0 %v2045
        %v3223 = vpop.f32.mrf.mxu0
        %v3224 = vadd.f32 %v3063, %v3223
        %v3225 = vpop.f32.mrf.mxu0
        %v3226 = vpop.f32.mrf.mxu0
        %v3227 = vadd.f32 %v3066, %v3226
        %v3228 = vpop.f32.mrf.mxu0
        %3229 = vmatprep.mubr.bf16.mxu0 %v2721
        %3230 = vmatmul.mubr.bf16.gmra.mxu0 %v2046
        %v3231 = vpop.f32.mrf.mxu0
        %v3232 = vadd.f32 %v3071, %v3231
        %v3233 = vpop.f32.mrf.mxu0
        %v3234 = vpop.f32.mrf.mxu0
        %v3235 = vadd.f32 %v3074, %v3234
        %v3236 = vpop.f32.mrf.mxu0
        %3237 = vmatprep.mubr.bf16.mxu0 %v2722
        %3238 = vmatmul.mubr.bf16.gmra.mxu0 %v2047
        %v3239 = vpop.f32.mrf.mxu0
        %v3240 = vadd.f32 %v3079, %v3239
        %v3241 = vpop.f32.mrf.mxu0
        %v3242 = vpop.f32.mrf.mxu0
        %v3243 = vadd.f32 %v3082, %v3242
        %v3244 = vpop.f32.mrf.mxu0
        %3245 = vmatprep.mubr.bf16.mxu0 %v2723
        %3246 = vmatmul.mubr.bf16.gmra.mxu0 %v2048
        %v3247 = vpop.f32.mrf.mxu0
        %v3248 = vadd.f32 %v3087, %v3247
        %v3249 = vpop.f32.mrf.mxu0
        %v3250 = vpop.f32.mrf.mxu0
        %v3251 = vadd.f32 %v3090, %v3250
        %v3252 = vpop.f32.mrf.mxu0
        %3253 = vmatprep.mubr.bf16.mxu0 %v2724
        %3254 = vmatmul.mubr.bf16.gmra.mxu0 %v2049
        %v3255 = vpop.f32.mrf.mxu0
        %v3256 = vadd.f32 %v3095, %v3255
        %v3257 = vpop.f32.mrf.mxu0
        %v3258 = vpop.f32.mrf.mxu0
        %v3259 = vadd.f32 %v3098, %v3258
        %v3260 = vpop.f32.mrf.mxu0
        %3261 = vmatprep.mubr.bf16.mxu0 %v2725
        %3262 = vmatmul.mubr.bf16.gmra.mxu0 %v2050
        %v3263 = vpop.f32.mrf.mxu0
        %v3264 = vadd.f32 %v3103, %v3263
        %v3265 = vpop.f32.mrf.mxu0
        %v3266 = vpop.f32.mrf.mxu0
        %v3267 = vadd.f32 %v3106, %v3266
        %v3268 = vpop.f32.mrf.mxu0
        %3269 = vmatprep.mubr.bf16.mxu0 %v2726
        %3270 = vmatmul.mubr.bf16.gmra.mxu0 %v2051
        %v3271 = vpop.f32.mrf.mxu0
        %v3272 = vadd.f32 %v3111, %v3271
        %v3273 = vpop.f32.mrf.mxu0
        %v3274 = vpop.f32.mrf.mxu0
        %v3275 = vadd.f32 %v3114, %v3274
        %v3276 = vpop.f32.mrf.mxu0
        %3277 = vmatprep.mubr.bf16.mxu0 %v2727
        %3278 = vmatmul.mubr.bf16.gmra.mxu0 %v2052
        %v3279 = vpop.f32.mrf.mxu0
        %v3280 = vadd.f32 %v3119, %v3279
        %v3281 = vpop.f32.mrf.mxu0
        %v3282 = vpop.f32.mrf.mxu0
        %v3283 = vadd.f32 %v3122, %v3282
        %v3284 = vpop.f32.mrf.mxu0
        %3285 = vmatprep.mubr.bf16.mxu0 %v2728
        %3286 = vmatmul.mubr.bf16.gmra.mxu0 %v2053
        %v3287 = vpop.f32.mrf.mxu0
        %v3288 = vadd.f32 %v3127, %v3287
        %v3289 = vpop.f32.mrf.mxu0
        %v3290 = vpop.f32.mrf.mxu0
        %v3291 = vadd.f32 %v3130, %v3290
        %v3292 = vpop.f32.mrf.mxu0
        %3293 = vmatprep.mubr.bf16.mxu0 %v2729
        %3294 = vmatmul.mubr.bf16.gmra.mxu0 %v2054
        %v3295 = vpop.f32.mrf.mxu0
        %v3296 = vadd.f32 %v3135, %v3295
        %v3297 = vpop.f32.mrf.mxu0
        %v3298 = vpop.f32.mrf.mxu0
        %v3299 = vadd.f32 %v3138, %v3298
        %v3300 = vpop.f32.mrf.mxu0
        %3301 = vmatprep.mubr.bf16.mxu0 %v2730
        %3302 = vmatmul.mubr.bf16.gmra.mxu0 %v2055
        %v3303 = vpop.f32.mrf.mxu0
        %v3304 = vadd.f32 %v3143, %v3303
        %v3305 = vpop.f32.mrf.mxu0
        %v3306 = vpop.f32.mrf.mxu0
        %v3307 = vadd.f32 %v3146, %v3306
        %v3308 = vpop.f32.mrf.mxu0
        %3309 = vdwg.mxu0
        %s3310 = scalar_lea.vmem %s203, 32 [#allocation8]
        %3311 = vst [vmem:[%s3310] sm:$0xff] %v2509
        %3312 = vst [vmem:[%s3310 + $0x8] sm:$0xff] %v3184
        %3313 = vst [vmem:[%s3310 + $0x10] sm:$0xff] %v2512
        %3314 = vst [vmem:[%s3310 + $0x18] sm:$0xff] %v3187
        %3315 = vst [vmem:[%s3310 + $0x40] sm:$0xff] %v2517
        %3316 = vst [vmem:[%s3310 + $0x48] sm:$0xff] %v3192
        %3317 = vst [vmem:[%s3310 + $0x50] sm:$0xff] %v2520
        %3318 = vst [vmem:[%s3310 + $0x58] sm:$0xff] %v3195
        %3319 = vst [vmem:[%s3310 + $0x80] sm:$0xff] %v2525
        %3320 = vst [vmem:[%s3310 + $0x88] sm:$0xff] %v3200
        %3321 = vst [vmem:[%s3310 + $0x90] sm:$0xff] %v2528
        %3322 = vst [vmem:[%s3310 + $0x98] sm:$0xff] %v3203
        %3323 = vst [vmem:[%s3310 + $0xc0] sm:$0xff] %v2533
        %3324 = vst [vmem:[%s3310 + $0xc8] sm:$0xff] %v3208
        %3325 = vst [vmem:[%s3310 + $0xd0] sm:$0xff] %v2536
        %3326 = vst [vmem:[%s3310 + $0xd8] sm:$0xff] %v3211
        %3327 = vst [vmem:[%s3310 + $0x100] sm:$0xff] %v2541
        %3328 = vst [vmem:[%s3310 + $0x108] sm:$0xff] %v3216
        %3329 = vst [vmem:[%s3310 + $0x110] sm:$0xff] %v2544
        %3330 = vst [vmem:[%s3310 + $0x118] sm:$0xff] %v3219
        %3331 = vst [vmem:[%s3310 + $0x140] sm:$0xff] %v2549
        %3332 = vst [vmem:[%s3310 + $0x148] sm:$0xff] %v3224
        %3333 = vst [vmem:[%s3310 + $0x150] sm:$0xff] %v2552
        %3334 = vst [vmem:[%s3310 + $0x158] sm:$0xff] %v3227
        %3335 = vst [vmem:[%s3310 + $0x180] sm:$0xff] %v2557
        %3336 = vst [vmem:[%s3310 + $0x188] sm:$0xff] %v3232
        %3337 = vst [vmem:[%s3310 + $0x190] sm:$0xff] %v2560
        %3338 = vst [vmem:[%s3310 + $0x198] sm:$0xff] %v3235
        %3339 = vst [vmem:[%s3310 + $0x1c0] sm:$0xff] %v2565
        %3340 = vst [vmem:[%s3310 + $0x1c8] sm:$0xff] %v3240
        %3341 = vst [vmem:[%s3310 + $0x1d0] sm:$0xff] %v2568
        %3342 = vst [vmem:[%s3310 + $0x1d8] sm:$0xff] %v3243
        %3343 = vst [vmem:[%s3310 + $0x200] sm:$0xff] %v2573
        %3344 = vst [vmem:[%s3310 + $0x208] sm:$0xff] %v3248
        %3345 = vst [vmem:[%s3310 + $0x210] sm:$0xff] %v2576
        %3346 = vst [vmem:[%s3310 + $0x218] sm:$0xff] %v3251
        %3347 = vst [vmem:[%s3310 + $0x240] sm:$0xff] %v2581
        %3348 = vst [vmem:[%s3310 + $0x248] sm:$0xff] %v3256
        %3349 = vst [vmem:[%s3310 + $0x250] sm:$0xff] %v2584
        %3350 = vst [vmem:[%s3310 + $0x258] sm:$0xff] %v3259
        %3351 = vst [vmem:[%s3310 + $0x280] sm:$0xff] %v2589
        %3352 = vst [vmem:[%s3310 + $0x288] sm:$0xff] %v3264
        %3353 = vst [vmem:[%s3310 + $0x290] sm:$0xff] %v2592
        %3354 = vst [vmem:[%s3310 + $0x298] sm:$0xff] %v3267
        %3355 = vst [vmem:[%s3310 + $0x2c0] sm:$0xff] %v2597
        %3356 = vst [vmem:[%s3310 + $0x2c8] sm:$0xff] %v3272
        %3357 = vst [vmem:[%s3310 + $0x2d0] sm:$0xff] %v2600
        %3358 = vst [vmem:[%s3310 + $0x2d8] sm:$0xff] %v3275
        %3359 = vst [vmem:[%s3310 + $0x300] sm:$0xff] %v2605
        %3360 = vst [vmem:[%s3310 + $0x308] sm:$0xff] %v3280
        %3361 = vst [vmem:[%s3310 + $0x310] sm:$0xff] %v2608
        %3362 = vst [vmem:[%s3310 + $0x318] sm:$0xff] %v3283
        %3363 = vst [vmem:[%s3310 + $0x340] sm:$0xff] %v2613
        %3364 = vst [vmem:[%s3310 + $0x348] sm:$0xff] %v3288
        %3365 = vst [vmem:[%s3310 + $0x350] sm:$0xff] %v2616
        %3366 = vst [vmem:[%s3310 + $0x358] sm:$0xff] %v3291
        %3367 = vst [vmem:[%s3310 + $0x380] sm:$0xff] %v2621
        %3368 = vst [vmem:[%s3310 + $0x388] sm:$0xff] %v3296
        %3369 = vst [vmem:[%s3310 + $0x390] sm:$0xff] %v2624
        %3370 = vst [vmem:[%s3310 + $0x398] sm:$0xff] %v3299
        %3371 = vst [vmem:[%s3310 + $0x3c0] sm:$0xff] %v2629
        %3372 = vst [vmem:[%s3310 + $0x3c8] sm:$0xff] %v3304
        %3373 = vst [vmem:[%s3310 + $0x3d0] sm:$0xff] %v2632
        %3374 = vst [vmem:[%s3310 + $0x3d8] sm:$0xff] %v3307
        %s3375 = sand.u32 %s97, 1
        %s3376 = scalar_lea.sflag [#allocation5], %s3375
        %s3377 = sand.u32 %s97, 1
        %s3378 = smul.addr %s3377, 1024
        %s3379 = scalar_lea.vmem [#allocation8], %s3378
        // Predicated region
        $region41: #{tpu_custom_call.1} parent=31 // pred_check
          %p3380 = pneg %p107
        $region42: #{tpu_custom_call.1} parent=31 // pred_check_branch
          %3382 = sbr.rel (%p3380) target = $region44
        $region43: #{tpu_custom_call.1} parent=31 // pred_region
          %s3384 = ssub.s32 16384, 16384
          %3385 = vsyncadd %s3376, %s3384
          %s3386 = smul.addr %s21, 128
          %s3387 = smul.addr %s3386, 128
          %s3388 = scalar_lea.hbm %s3, %s3387
          %s3389 = sshll.u32 %s3379, 4
          %s3390 = int_to_ptr.vmem [resolvable:$true] %s3389
          %3395 = dma.vmem_to_hbm [thread:$0]  %s3390, 16384, %s3388, %s3376, 256, 256, 16
        $region44: #{tpu_custom_call.1} parent=31 // pred_fallthru
          _
      $region32: #{tpu_custom_call.1} parent=5 // pred_fallthru
        _
      %p3396 = scmp.le.s32.totalorder 2, %s16
      // Predicated region
      $region45: #{tpu_custom_call.1} parent=5 // pred_check
        %p3397 = pneg %p3396
      $region46: #{tpu_custom_call.1} parent=5 // pred_check_branch
        %3399 = sbr.rel (%p3397) target = $region48
      $region47: #{tpu_custom_call.1} parent=5 // pred_region
        %s3400 = ssub.s32 %s16, 2
        // Predicated region
        $region49: #{tpu_custom_call.1} parent=47 // pred_check
          %p3401 = pneg %p113
        $region50: #{tpu_custom_call.1} parent=47 // pred_check_branch
          %3403 = sbr.rel (%p3401) target = $region52
        $region51: #{tpu_custom_call.1} parent=47 // pred_region
          %s3404 = sand.u32 %s98, 1
          %s3405 = scalar_lea.sflag [#allocation5], %s3404
          %s3406 = sand.u32 %s98, 1
          %s3407 = smul.addr %s3406, 1024
          %s3408 = scalar_lea.vmem [#allocation8], %s3407
          %3409 = dma.done %s3405, 16384
        $region52: #{tpu_custom_call.1} parent=47 // pred_fallthru
          _
      $region48: #{tpu_custom_call.1} parent=5 // pred_fallthru
        _
    $region6: #{tpu_custom_call.1} parent=1 // loop_footer
      %s20 = sadd.s32 1, %s16
    $region7: #{tpu_custom_call.1} parent=1 // loop_footer_branch
      %15 = sbr.rel target = $region3
    $region8: #{tpu_custom_call.1} parent=1 // loop_exit
      _
    %3410 = vsyncpa [#allocation4], 1
    %s3411 = scalar_lea.sflag [#allocation4], 1
    %3412 = vsyncpa %s3411, 1
    %3413 = vsyncpa [#allocation7], 1
    %3414 = vsyncpa [#allocation5], 1
    %s3415 = scalar_lea.sflag [#allocation5], 1
    %3416 = vsyncpa %s3415, 1

</llo_original>
